<compile_context>
chip_gen: v7x
topology: tpu7x:2x2x1
jax: 0.10.0
libtpu: 0.0.40
codegen_flags: <defaults>
</compile_context>

<pallas_src>
import functools
import math

import jax
import jax.numpy as jnp
from jax.experimental import pallas as pl
from jax.experimental.pallas import tpu as pltpu


# --------------------------------------------------------------------------
# In-kernel helper: bidirectional GRU recurrence + additive attention pooling
# --------------------------------------------------------------------------
def _bigru_attn(gi, T, N, whh_f, whh_b, bhn_f, bhn_b,
                watt_f, watt_b, batt, uatt, hf_ref, hb_ref):
    """Bidirectional GRU + attention pooling.

    gi:        (T*N, 6H) precomputed input-side gate pre-activations with the
               r/z biases already folded in; columns [r_f,z_f,n_f,r_b,z_b,n_b].
    whh_f/b:   (H, 3H) fused hidden-side weights per direction.
    bhn_f/b:   (1, H)  hidden-side bias of the n gate (scaled by r in-loop).
    watt_f/b:  (H, 2H) attention projection split by fwd/bwd hidden half.
    Returns (pooled_fwd, pooled_bwd), each (N, H).
    """
    H = whh_f.shape[0]
    bhn_f = jnp.broadcast_to(bhn_f, (N, H))      # hoisted broadcasts
    bhn_b = jnp.broadcast_to(bhn_b, (N, H))

    h_f = jnp.zeros((N, H), jnp.float32)
    h_b = jnp.zeros((N, H), jnp.float32)
    for t in range(T):                           # fully unrolled recurrence
        tb = T - 1 - t
        gi_f = gi[t * N:(t + 1) * N, :]
        gi_b = gi[tb * N:(tb + 1) * N, :]
        gh_f = jnp.dot(h_f, whh_f, preferred_element_type=jnp.float32)
        gh_b = jnp.dot(h_b, whh_b, preferred_element_type=jnp.float32)

        r_f = jax.nn.sigmoid(gi_f[:, 0:H] + gh_f[:, 0:H])
        z_f = jax.nn.sigmoid(gi_f[:, H:2 * H] + gh_f[:, H:2 * H])
        n_f = jnp.tanh(gi_f[:, 2 * H:3 * H] + r_f * (gh_f[:, 2 * H:3 * H] + bhn_f))
        h_f = (1.0 - z_f) * n_f + z_f * h_f

        r_b = jax.nn.sigmoid(gi_b[:, 3 * H:4 * H] + gh_b[:, 0:H])
        z_b = jax.nn.sigmoid(gi_b[:, 4 * H:5 * H] + gh_b[:, H:2 * H])
        n_b = jnp.tanh(gi_b[:, 5 * H:6 * H] + r_b * (gh_b[:, 2 * H:3 * H] + bhn_b))
        h_b = (1.0 - z_b) * n_b + z_b * h_b

        hf_ref[t * N:(t + 1) * N, :] = h_f       # full-lane-width static stores
        hb_ref[tb * N:(tb + 1) * N, :] = h_b

    hf_all = hf_ref[...]                         # (T*N, H)
    hb_all = hb_ref[...]                         # (T*N, H)

    # u = tanh([h_f | h_b] @ W_att + b_att), block-matmul form (no concat),
    # batched over all T*N rows at once.
    u = jnp.tanh(jnp.dot(hf_all, watt_f, preferred_element_type=jnp.float32)
                 + jnp.dot(hb_all, watt_b, preferred_element_type=jnp.float32)
                 + batt)                         # (T*N, 2H)

    # additive-attention scores and softmax over time (per sequence n).
    s = [jnp.sum(u[t * N:(t + 1) * N, :] * uatt, axis=-1, keepdims=True)
         for t in range(T)]                      # T x (N, 1)
    m = s[0]
    for t in range(1, T):
        m = jnp.maximum(m, s[t])
    e = [jnp.exp(s_t - m) for s_t in s]
    denom = e[0]
    for t in range(1, T):
        denom = denom + e[t]
    inv = 1.0 / denom                            # (N, 1)

    pooled_f = jnp.zeros((N, H), jnp.float32)
    pooled_b = jnp.zeros((N, H), jnp.float32)
    for t in range(T):
        a_t = e[t] * inv                         # (N, 1)
        pooled_f = pooled_f + a_t * hf_all[t * N:(t + 1) * N, :]
        pooled_b = pooled_b + a_t * hb_all[t * N:(t + 1) * N, :]
    return pooled_f, pooled_b


# --------------------------------------------------------------------------
# Fused kernel: word encoder -> document encoder -> final linear + activation
# --------------------------------------------------------------------------
def hier_att_net_kernel(x_ref,
                        # word-level encoder params
                        wih_w_ref, whhf_w_ref, whhb_w_ref, bi_w_ref,
                        bhnf_w_ref, bhnb_w_ref, wattf_w_ref, wattb_w_ref,
                        batt_w_ref, uatt_w_ref,
                        # sentence/document-level encoder params
                        wihf_s_ref, wihb_s_ref, whhf_s_ref, whhb_s_ref, bi_s_ref,
                        bhnf_s_ref, bhnb_s_ref, wattf_s_ref, wattb_s_ref,
                        batt_s_ref, uatt_s_ref,
                        # final linear
                        fwf_ref, fwb_ref, fb_ref,
                        out_ref,
                        hf_w_ref, hb_w_ref, hf_s_ref, hb_s_ref,
                        *, W, S, B, num_classes):
    SB = S * B

    # ---- word-level encoder over all S*B sentences (T=W, N=S*B) -----------
    # Hoisted, gate-fused input projection: one (W*S*B, E) @ (E, 6Hw) matmul.
    gi_w = jnp.dot(x_ref[...], wih_w_ref[...],
                   preferred_element_type=jnp.float32) + bi_w_ref[...]
    svec_f, svec_b = _bigru_attn(
        gi_w, W, SB,
        whhf_w_ref[...], whhb_w_ref[...], bhnf_w_ref[...], bhnb_w_ref[...],
        wattf_w_ref[...], wattb_w_ref[...], batt_w_ref[...], uatt_w_ref[...],
        hf_w_ref, hb_w_ref)                      # each (S*B, Hw), rows = s*B + b

    # ---- document-level encoder over sentences (T=S, N=B) -----------------
    # Sentence vectors are already time-major (rows s*B + b); input projection
    # in block-matmul form so the fwd/bwd halves never need concatenation.
    gi_s = (jnp.dot(svec_f, wihf_s_ref[...], preferred_element_type=jnp.float32)
            + jnp.dot(svec_b, wihb_s_ref[...], preferred_element_type=jnp.float32)
            + bi_s_ref[...])
    docv_f, docv_b = _bigru_attn(
        gi_s, S, B,
        whhf_s_ref[...], whhb_s_ref[...], bhnf_s_ref[...], bhnb_s_ref[...],
        wattf_s_ref[...], wattb_s_ref[...], batt_s_ref[...], uatt_s_ref[...],
        hf_s_ref, hb_s_ref)                      # each (B, Hs)

    # ---- final linear + output activation ----------------------------------
    logits = (jnp.dot(docv_f, fwf_ref[...], preferred_element_type=jnp.float32)
              + jnp.dot(docv_b, fwb_ref[...], preferred_element_type=jnp.float32)
              + fb_ref[...])
    if num_classes == 1:
        out_ref[...] = jax.nn.sigmoid(logits)
    else:
        m = jnp.max(logits, axis=-1, keepdims=True)
        e = jnp.exp(logits - m)
        out_ref[...] = e / jnp.sum(e, axis=-1, keepdims=True)


# --------------------------------------------------------------------------
# Wrappers
# --------------------------------------------------------------------------
_VMEM = pl.BlockSpec(memory_space=pltpu.MemorySpace.VMEM)


def _fuse_encoder_params(p, split_input_at=None):
    """Repack per-gate GRU + attention params into the kernel's fused layout."""
    H = p["whh_f"].shape[-1]
    wih = jnp.concatenate([p["wih_f"][0], p["wih_f"][1], p["wih_f"][2],
                           p["wih_b"][0], p["wih_b"][1], p["wih_b"][2]],
                          axis=1)                                   # (D, 6H)
    out = dict(
        whh_f=jnp.concatenate([p["whh_f"][0], p["whh_f"][1], p["whh_f"][2]], axis=1),
        whh_b=jnp.concatenate([p["whh_b"][0], p["whh_b"][1], p["whh_b"][2]], axis=1),
        bi=jnp.concatenate([p["bih_f"][0] + p["bhh_f"][0],
                            p["bih_f"][1] + p["bhh_f"][1],
                            p["bih_f"][2],
                            p["bih_b"][0] + p["bhh_b"][0],
                            p["bih_b"][1] + p["bhh_b"][1],
                            p["bih_b"][2]], axis=1),                # (1, 6H)
        bhn_f=p["bhh_f"][2], bhn_b=p["bhh_b"][2],                   # (1, H)
        watt_f=p["watt"][:H, :], watt_b=p["watt"][H:, :],           # (H, 2H)
        batt=p["batt"], uatt=p["uatt"],
    )
    if split_input_at is None:
        out["wih"] = wih
    else:
        out["wih_f"] = wih[:split_input_at]
        out["wih_b"] = wih[split_input_at:]
    return out


def hier_att_net(batch, word_p, sent_p, final_w, final_b):
    """batch: (B, S, W, E). Returns (B, num_classes)."""
    B, S, W, E = batch.shape
    Hw = word_p["whh_f"].shape[-1]
    Hs = sent_p["whh_f"].shape[-1]
    C = final_w.shape[-1]

    wp = _fuse_encoder_params(word_p)
    sp = _fuse_encoder_params(sent_p, split_input_at=Hw)
    fw_f, fw_b = final_w[:Hs], final_w[Hs:]

    # Time-major with rows ordered (w, s, b): the word encoder's pooled output
    # then comes out already time-major (s major, b minor) for the doc encoder.
    x2d = batch.transpose(2, 1, 0, 3).reshape(W * S * B, E)

    kernel = functools.partial(hier_att_net_kernel, W=W, S=S, B=B, num_classes=C)
    return pl.pallas_call(
        kernel,
        out_shape=jax.ShapeDtypeStruct((B, C), jnp.float32),
        in_specs=[_VMEM] * 25,
        out_specs=_VMEM,
        scratch_shapes=[
            pltpu.VMEM((W * S * B, Hw), jnp.float32),   # word fwd hidden states
            pltpu.VMEM((W * S * B, Hw), jnp.float32),   # word bwd hidden states
            pltpu.VMEM((S * B, Hs), jnp.float32),       # doc  fwd hidden states
            pltpu.VMEM((S * B, Hs), jnp.float32),       # doc  bwd hidden states
        ],
    )(x2d,
      wp["wih"], wp["whh_f"], wp["whh_b"], wp["bi"],
      wp["bhn_f"], wp["bhn_b"], wp["watt_f"], wp["watt_b"], wp["batt"], wp["uatt"],
      sp["wih_f"], sp["wih_b"], sp["whh_f"], sp["whh_b"], sp["bi"],
      sp["bhn_f"], sp["bhn_b"], sp["watt_f"], sp["watt_b"], sp["batt"], sp["uatt"],
      fw_f, fw_b, final_b)


# --------------------------------------------------------------------------
# Deterministic parameter init (mirrors PyTorch shape conventions)
# --------------------------------------------------------------------------
def _init_gru_dir(key, D, H):
    k = 1.0 / math.sqrt(H)
    ks = jax.random.split(key, 4)
    return dict(
        wih=jax.random.uniform(ks[0], (3, D, H), jnp.float32, -k, k),
        whh=jax.random.uniform(ks[1], (3, H, H), jnp.float32, -k, k),
        bih=jax.random.uniform(ks[2], (3, 1, H), jnp.float32, -k, k),
        bhh=jax.random.uniform(ks[3], (3, 1, H), jnp.float32, -k, k),
    )


def init_encoder(key, D, H):
    kf, kb, ka = jax.random.split(key, 3)
    fwd = _init_gru_dir(kf, D, H)
    bwd = _init_gru_dir(kb, D, H)
    ka1, ka2, ka3 = jax.random.split(ka, 3)
    ka_scale = 1.0 / math.sqrt(2 * H)
    return dict(
        wih_f=fwd["wih"], whh_f=fwd["whh"], bih_f=fwd["bih"], bhh_f=fwd["bhh"],
        wih_b=bwd["wih"], whh_b=bwd["whh"], bih_b=bwd["bih"], bhh_b=bwd["bhh"],
        watt=jax.random.uniform(ka1, (2 * H, 2 * H), jnp.float32, -ka_scale, ka_scale),
        batt=jax.random.uniform(ka2, (1, 2 * H), jnp.float32, -ka_scale, ka_scale),
        uatt=jax.random.uniform(ka3, (1, 2 * H), jnp.float32, -ka_scale, ka_scale),
    )


# --------------------------------------------------------------------------
# Pure-JAX reference (same math, per-gate form) for a correctness check
# --------------------------------------------------------------------------
def _ref_encoder(x_tnd, p):
    T, N, _ = x_tnd.shape
    H = p["whh_f"].shape[-1]

    def cell(x_t, h, wih, whh, bih, bhh):
        gi = [x_t @ wih[g] + bih[g] for g in range(3)]
        gh = [h @ whh[g] + bhh[g] for g in range(3)]
        r = jax.nn.sigmoid(gi[0] + gh[0])
        z = jax.nn.sigmoid(gi[1] + gh[1])
        n = jnp.tanh(gi[2] + r * gh[2])
        return (1.0 - z) * n + z * h

    hf, h = [], jnp.zeros((N, H), jnp.float32)
    for t in range(T):
        h = cell(x_tnd[t], h, p["wih_f"], p["whh_f"], p["bih_f"], p["bhh_f"])
        hf.append(h)
    hb, h = [None] * T, jnp.zeros((N, H), jnp.float32)
    for t in range(T - 1, -1, -1):
        h = cell(x_tnd[t], h, p["wih_b"], p["whh_b"], p["bih_b"], p["bhh_b"])
        hb[t] = h
    h_all = jnp.stack([jnp.concatenate([hf[t], hb[t]], -1) for t in range(T)], 0)
    u = jnp.tanh(h_all @ p["watt"] + p["batt"])
    s = jnp.sum(u * p["uatt"], axis=-1, keepdims=True)
    alpha = jax.nn.softmax(s, axis=0)
    return jnp.sum(alpha * h_all, axis=0)


def _ref_model(batch, word_p, sent_p, final_w, final_b):
    B, S, W, E = batch.shape
    Hw = word_p["whh_f"].shape[-1]
    x = batch.reshape(B * S, W, E).transpose(1, 0, 2)
    sv = _ref_encoder(x, word_p).reshape(B, S, 2 * Hw).transpose(1, 0, 2)
    dv = _ref_encoder(sv, sent_p)
    logits = dv @ final_w + final_b
    return jax.nn.sigmoid(logits) if final_w.shape[-1] == 1 else jax.nn.softmax(logits, -1)


# --------------------------------------------------------------------------
if __name__ == "__main__":
    B, S, W, E = 2, 4, 8, 16          # batch, sentences, words/sentence, embed
    Hw, Hs, C = 8, 8, 1               # word hidden, sent hidden, num_classes

    key = jax.random.PRNGKey(0)
    kx, kw, ks, kf = jax.random.split(key, 4)
    batch = jax.random.normal(kx, (B, S, W, E), jnp.float32)

    word_p = init_encoder(kw, E, Hw)
    sent_p = init_encoder(ks, 2 * Hw, Hs)
    kf1, kf2 = jax.random.split(kf)
    kfin = 1.0 / math.sqrt(2 * Hs)
    final_w = jax.random.uniform(kf1, (2 * Hs, C), jnp.float32, -kfin, kfin)
    final_b = jax.random.uniform(kf2, (1, C), jnp.float32, -kfin, kfin)

    out = hier_att_net(batch, word_p, sent_p, final_w, final_b)
    out = jax.block_until_ready(out)

    ref = _ref_model(batch, word_p, sent_p, final_w, final_b)
    assert out.shape == (B, C), out.shape
    assert jnp.allclose(out, ref, atol=1e-3, rtol=1e-3), (out, ref)
    print("KERNEL_OK")
</pallas_src>

<mosaic_0001>
module attributes {stable_mosaic.version = 11 : i64} {
  func.func @hier_att_net_kernel(%arg0: memref<64x16xf32, #tpu.memory_space<vmem>>, %arg1: memref<16x48xf32, #tpu.memory_space<vmem>>, %arg2: memref<8x24xf32, #tpu.memory_space<vmem>>, %arg3: memref<8x24xf32, #tpu.memory_space<vmem>>, %arg4: memref<1x48xf32, #tpu.memory_space<vmem>>, %arg5: memref<1x8xf32, #tpu.memory_space<vmem>>, %arg6: memref<1x8xf32, #tpu.memory_space<vmem>>, %arg7: memref<8x16xf32, #tpu.memory_space<vmem>>, %arg8: memref<8x16xf32, #tpu.memory_space<vmem>>, %arg9: memref<1x16xf32, #tpu.memory_space<vmem>>, %arg10: memref<1x16xf32, #tpu.memory_space<vmem>>, %arg11: memref<8x48xf32, #tpu.memory_space<vmem>>, %arg12: memref<8x48xf32, #tpu.memory_space<vmem>>, %arg13: memref<8x24xf32, #tpu.memory_space<vmem>>, %arg14: memref<8x24xf32, #tpu.memory_space<vmem>>, %arg15: memref<1x48xf32, #tpu.memory_space<vmem>>, %arg16: memref<1x8xf32, #tpu.memory_space<vmem>>, %arg17: memref<1x8xf32, #tpu.memory_space<vmem>>, %arg18: memref<8x16xf32, #tpu.memory_space<vmem>>, %arg19: memref<8x16xf32, #tpu.memory_space<vmem>>, %arg20: memref<1x16xf32, #tpu.memory_space<vmem>>, %arg21: memref<1x16xf32, #tpu.memory_space<vmem>>, %arg22: memref<8x1xf32, #tpu.memory_space<vmem>>, %arg23: memref<8x1xf32, #tpu.memory_space<vmem>>, %arg24: memref<1x1xf32, #tpu.memory_space<vmem>>, %arg25: memref<2x1xf32, #tpu.memory_space<vmem>>, %arg26: memref<64x8xf32, #tpu.memory_space<vmem>>, %arg27: memref<64x8xf32, #tpu.memory_space<vmem>>, %arg28: memref<8x8xf32, #tpu.memory_space<vmem>>, %arg29: memref<8x8xf32, #tpu.memory_space<vmem>>) attributes {dimension_semantics = [], scalar_prefetch = 0 : i64, scratch_operands = 4 : i64, tpu.core_type = #tpu.core_type<tc>} {
    %c0 = arith.constant 0 : index
    %c0_0 = arith.constant 0 : index
    %0 = vector.load %arg0[%c0, %c0_0] : memref<64x16xf32, #tpu.memory_space<vmem>>, vector<64x16xf32>
    %c0_1 = arith.constant 0 : index
    %c0_2 = arith.constant 0 : index
    %1 = vector.load %arg1[%c0_1, %c0_2] : memref<16x48xf32, #tpu.memory_space<vmem>>, vector<16x48xf32>
    %cst = arith.constant dense<0.000000e+00> : vector<64x48xf32>
    %2 = tpu.matmul %0, %1, %cst {dimension_numbers = #tpu.dot_dimension_numbers<[1], [0], [0], [1], [0, 0, 1, 1], [], []>} : vector<64x16xf32>, vector<16x48xf32>, vector<64x48xf32> -> vector<64x48xf32>
    %c0_3 = arith.constant 0 : index
    %c0_4 = arith.constant 0 : index
    %3 = vector.load %arg4[%c0_3, %c0_4] : memref<1x48xf32, #tpu.memory_space<vmem>>, vector<1x48xf32>
    %4 = vector.broadcast %3 : vector<1x48xf32> to vector<64x48xf32>
    %5 = arith.addf %2, %4 : vector<64x48xf32>
    %c0_5 = arith.constant 0 : index
    %c0_6 = arith.constant 0 : index
    %6 = vector.load %arg2[%c0_5, %c0_6] : memref<8x24xf32, #tpu.memory_space<vmem>>, vector<8x24xf32>
    %c0_7 = arith.constant 0 : index
    %c0_8 = arith.constant 0 : index
    %7 = vector.load %arg3[%c0_7, %c0_8] : memref<8x24xf32, #tpu.memory_space<vmem>>, vector<8x24xf32>
    %c0_9 = arith.constant 0 : index
    %c0_10 = arith.constant 0 : index
    %8 = vector.load %arg5[%c0_9, %c0_10] : memref<1x8xf32, #tpu.memory_space<vmem>>, vector<1x8xf32>
    %c0_11 = arith.constant 0 : index
    %c0_12 = arith.constant 0 : index
    %9 = vector.load %arg6[%c0_11, %c0_12] : memref<1x8xf32, #tpu.memory_space<vmem>>, vector<1x8xf32>
    %c0_13 = arith.constant 0 : index
    %c0_14 = arith.constant 0 : index
    %10 = vector.load %arg7[%c0_13, %c0_14] : memref<8x16xf32, #tpu.memory_space<vmem>>, vector<8x16xf32>
    %c0_15 = arith.constant 0 : index
    %c0_16 = arith.constant 0 : index
    %11 = vector.load %arg8[%c0_15, %c0_16] : memref<8x16xf32, #tpu.memory_space<vmem>>, vector<8x16xf32>
    %c0_17 = arith.constant 0 : index
    %c0_18 = arith.constant 0 : index
    %12 = vector.load %arg9[%c0_17, %c0_18] : memref<1x16xf32, #tpu.memory_space<vmem>>, vector<1x16xf32>
    %c0_19 = arith.constant 0 : index
    %c0_20 = arith.constant 0 : index
    %13 = vector.load %arg10[%c0_19, %c0_20] : memref<1x16xf32, #tpu.memory_space<vmem>>, vector<1x16xf32>
    %14 = vector.shape_cast %8 : vector<1x8xf32> to vector<1x8xf32>
    %15 = vector.broadcast %14 : vector<1x8xf32> to vector<8x8xf32>
    %16 = vector.shape_cast %9 : vector<1x8xf32> to vector<1x8xf32>
    %17 = vector.broadcast %16 : vector<1x8xf32> to vector<8x8xf32>
    %cst_21 = arith.constant 0.000000e+00 : f32
    %18 = vector.broadcast %cst_21 : f32 to vector<8x8xf32>
    %cst_22 = arith.constant 0.000000e+00 : f32
    %19 = vector.broadcast %cst_22 : f32 to vector<8x8xf32>
    %20 = vector.extract_strided_slice %5 {offsets = [0, 0], sizes = [8, 48], strides = [1, 1]} : vector<64x48xf32> to vector<8x48xf32>
    %21 = vector.extract_strided_slice %5 {offsets = [56, 0], sizes = [8, 48], strides = [1, 1]} : vector<64x48xf32> to vector<8x48xf32>
    %cst_23 = arith.constant dense<0.000000e+00> : vector<8x24xf32>
    %22 = tpu.matmul %18, %6, %cst_23 {dimension_numbers = #tpu.dot_dimension_numbers<[1], [0], [0], [1], [0, 0, 1, 1], [], []>} : vector<8x8xf32>, vector<8x24xf32>, vector<8x24xf32> -> vector<8x24xf32>
    %cst_24 = arith.constant dense<0.000000e+00> : vector<8x24xf32>
    %23 = tpu.matmul %19, %7, %cst_24 {dimension_numbers = #tpu.dot_dimension_numbers<[1], [0], [0], [1], [0, 0, 1, 1], [], []>} : vector<8x8xf32>, vector<8x24xf32>, vector<8x24xf32> -> vector<8x24xf32>
    %24 = vector.extract_strided_slice %20 {offsets = [0, 0], sizes = [8, 8], strides = [1, 1]} : vector<8x48xf32> to vector<8x8xf32>
    %25 = vector.extract_strided_slice %22 {offsets = [0, 0], sizes = [8, 8], strides = [1, 1]} : vector<8x24xf32> to vector<8x8xf32>
    %26 = arith.addf %24, %25 : vector<8x8xf32>
    %27 = arith.negf %26 : vector<8x8xf32>
    %28 = math.exp %27 : vector<8x8xf32>
    %cst_25 = arith.constant 1.000000e+00 : f32
    %29 = vector.broadcast %cst_25 : f32 to vector<8x8xf32>
    %30 = arith.addf %29, %28 : vector<8x8xf32>
    %31 = arith.divf %29, %30 : vector<8x8xf32>
    %32 = vector.extract_strided_slice %20 {offsets = [0, 8], sizes = [8, 8], strides = [1, 1]} : vector<8x48xf32> to vector<8x8xf32>
    %33 = vector.extract_strided_slice %22 {offsets = [0, 8], sizes = [8, 8], strides = [1, 1]} : vector<8x24xf32> to vector<8x8xf32>
    %34 = arith.addf %32, %33 : vector<8x8xf32>
    %35 = arith.negf %34 : vector<8x8xf32>
    %36 = math.exp %35 : vector<8x8xf32>
    %cst_26 = arith.constant 1.000000e+00 : f32
    %37 = vector.broadcast %cst_26 : f32 to vector<8x8xf32>
    %38 = arith.addf %37, %36 : vector<8x8xf32>
    %39 = arith.divf %37, %38 : vector<8x8xf32>
    %40 = vector.extract_strided_slice %20 {offsets = [0, 16], sizes = [8, 8], strides = [1, 1]} : vector<8x48xf32> to vector<8x8xf32>
    %41 = vector.extract_strided_slice %22 {offsets = [0, 16], sizes = [8, 8], strides = [1, 1]} : vector<8x24xf32> to vector<8x8xf32>
    %42 = arith.addf %41, %15 : vector<8x8xf32>
    %43 = arith.mulf %31, %42 : vector<8x8xf32>
    %44 = arith.addf %40, %43 : vector<8x8xf32>
    %45 = math.tanh %44 : vector<8x8xf32>
    %cst_27 = arith.constant 1.000000e+00 : f32
    %46 = vector.broadcast %cst_27 : f32 to vector<8x8xf32>
    %47 = arith.subf %46, %39 : vector<8x8xf32>
    %48 = arith.mulf %47, %45 : vector<8x8xf32>
    %49 = arith.mulf %39, %18 : vector<8x8xf32>
    %50 = arith.addf %48, %49 : vector<8x8xf32>
    %51 = vector.extract_strided_slice %21 {offsets = [0, 24], sizes = [8, 8], strides = [1, 1]} : vector<8x48xf32> to vector<8x8xf32>
    %52 = vector.extract_strided_slice %23 {offsets = [0, 0], sizes = [8, 8], strides = [1, 1]} : vector<8x24xf32> to vector<8x8xf32>
    %53 = arith.addf %51, %52 : vector<8x8xf32>
    %54 = arith.negf %53 : vector<8x8xf32>
    %55 = math.exp %54 : vector<8x8xf32>
    %cst_28 = arith.constant 1.000000e+00 : f32
    %56 = vector.broadcast %cst_28 : f32 to vector<8x8xf32>
    %57 = arith.addf %56, %55 : vector<8x8xf32>
    %58 = arith.divf %56, %57 : vector<8x8xf32>
    %59 = vector.extract_strided_slice %21 {offsets = [0, 32], sizes = [8, 8], strides = [1, 1]} : vector<8x48xf32> to vector<8x8xf32>
    %60 = vector.extract_strided_slice %23 {offsets = [0, 8], sizes = [8, 8], strides = [1, 1]} : vector<8x24xf32> to vector<8x8xf32>
    %61 = arith.addf %59, %60 : vector<8x8xf32>
    %62 = arith.negf %61 : vector<8x8xf32>
    %63 = math.exp %62 : vector<8x8xf32>
    %cst_29 = arith.constant 1.000000e+00 : f32
    %64 = vector.broadcast %cst_29 : f32 to vector<8x8xf32>
    %65 = arith.addf %64, %63 : vector<8x8xf32>
    %66 = arith.divf %64, %65 : vector<8x8xf32>
    %67 = vector.extract_strided_slice %21 {offsets = [0, 40], sizes = [8, 8], strides = [1, 1]} : vector<8x48xf32> to vector<8x8xf32>
    %68 = vector.extract_strided_slice %23 {offsets = [0, 16], sizes = [8, 8], strides = [1, 1]} : vector<8x24xf32> to vector<8x8xf32>
    %69 = arith.addf %68, %17 : vector<8x8xf32>
    %70 = arith.mulf %58, %69 : vector<8x8xf32>
    %71 = arith.addf %67, %70 : vector<8x8xf32>
    %72 = math.tanh %71 : vector<8x8xf32>
    %cst_30 = arith.constant 1.000000e+00 : f32
    %73 = vector.broadcast %cst_30 : f32 to vector<8x8xf32>
    %74 = arith.subf %73, %66 : vector<8x8xf32>
    %75 = arith.mulf %74, %72 : vector<8x8xf32>
    %76 = arith.mulf %66, %19 : vector<8x8xf32>
    %77 = arith.addf %75, %76 : vector<8x8xf32>
    %c0_31 = arith.constant 0 : index
    %c0_32 = arith.constant 0 : index
    %78 = vector.load %arg26[%c0_31, %c0_32] : memref<64x8xf32, #tpu.memory_space<vmem>>, vector<8x8xf32>
    tpu.vector_store %arg26[%c0_31, %c0_32], %50 {strides = array<i32>} : memref<64x8xf32, #tpu.memory_space<vmem>>, vector<8x8xf32>,
    %c56 = arith.constant 56 : index
    %c0_33 = arith.constant 0 : index
    %79 = vector.load %arg27[%c56, %c0_33] : memref<64x8xf32, #tpu.memory_space<vmem>>, vector<8x8xf32>
    tpu.vector_store %arg27[%c56, %c0_33], %77 {strides = array<i32>} : memref<64x8xf32, #tpu.memory_space<vmem>>, vector<8x8xf32>,
    %80 = vector.extract_strided_slice %5 {offsets = [8, 0], sizes = [8, 48], strides = [1, 1]} : vector<64x48xf32> to vector<8x48xf32>
    %81 = vector.extract_strided_slice %5 {offsets = [48, 0], sizes = [8, 48], strides = [1, 1]} : vector<64x48xf32> to vector<8x48xf32>
    %cst_34 = arith.constant dense<0.000000e+00> : vector<8x24xf32>
    %82 = tpu.matmul %50, %6, %cst_34 {dimension_numbers = #tpu.dot_dimension_numbers<[1], [0], [0], [1], [0, 0, 1, 1], [], []>} : vector<8x8xf32>, vector<8x24xf32>, vector<8x24xf32> -> vector<8x24xf32>
    %cst_35 = arith.constant dense<0.000000e+00> : vector<8x24xf32>
    %83 = tpu.matmul %77, %7, %cst_35 {dimension_numbers = #tpu.dot_dimension_numbers<[1], [0], [0], [1], [0, 0, 1, 1], [], []>} : vector<8x8xf32>, vector<8x24xf32>, vector<8x24xf32> -> vector<8x24xf32>
    %84 = vector.extract_strided_slice %80 {offsets = [0, 0], sizes = [8, 8], strides = [1, 1]} : vector<8x48xf32> to vector<8x8xf32>
    %85 = vector.extract_strided_slice %82 {offsets = [0, 0], sizes = [8, 8], strides = [1, 1]} : vector<8x24xf32> to vector<8x8xf32>
    %86 = arith.addf %84, %85 : vector<8x8xf32>
    %87 = arith.negf %86 : vector<8x8xf32>
    %88 = math.exp %87 : vector<8x8xf32>
    %cst_36 = arith.constant 1.000000e+00 : f32
    %89 = vector.broadcast %cst_36 : f32 to vector<8x8xf32>
    %90 = arith.addf %89, %88 : vector<8x8xf32>
    %91 = arith.divf %89, %90 : vector<8x8xf32>
    %92 = vector.extract_strided_slice %80 {offsets = [0, 8], sizes = [8, 8], strides = [1, 1]} : vector<8x48xf32> to vector<8x8xf32>
    %93 = vector.extract_strided_slice %82 {offsets = [0, 8], sizes = [8, 8], strides = [1, 1]} : vector<8x24xf32> to vector<8x8xf32>
    %94 = arith.addf %92, %93 : vector<8x8xf32>
    %95 = arith.negf %94 : vector<8x8xf32>
    %96 = math.exp %95 : vector<8x8xf32>
    %cst_37 = arith.constant 1.000000e+00 : f32
    %97 = vector.broadcast %cst_37 : f32 to vector<8x8xf32>
    %98 = arith.addf %97, %96 : vector<8x8xf32>
    %99 = arith.divf %97, %98 : vector<8x8xf32>
    %100 = vector.extract_strided_slice %80 {offsets = [0, 16], sizes = [8, 8], strides = [1, 1]} : vector<8x48xf32> to vector<8x8xf32>
    %101 = vector.extract_strided_slice %82 {offsets = [0, 16], sizes = [8, 8], strides = [1, 1]} : vector<8x24xf32> to vector<8x8xf32>
    %102 = arith.addf %101, %15 : vector<8x8xf32>
    %103 = arith.mulf %91, %102 : vector<8x8xf32>
    %104 = arith.addf %100, %103 : vector<8x8xf32>
    %105 = math.tanh %104 : vector<8x8xf32>
    %cst_38 = arith.constant 1.000000e+00 : f32
    %106 = vector.broadcast %cst_38 : f32 to vector<8x8xf32>
    %107 = arith.subf %106, %99 : vector<8x8xf32>
    %108 = arith.mulf %107, %105 : vector<8x8xf32>
    %109 = arith.mulf %99, %50 : vector<8x8xf32>
    %110 = arith.addf %108, %109 : vector<8x8xf32>
    %111 = vector.extract_strided_slice %81 {offsets = [0, 24], sizes = [8, 8], strides = [1, 1]} : vector<8x48xf32> to vector<8x8xf32>
    %112 = vector.extract_strided_slice %83 {offsets = [0, 0], sizes = [8, 8], strides = [1, 1]} : vector<8x24xf32> to vector<8x8xf32>
    %113 = arith.addf %111, %112 : vector<8x8xf32>
    %114 = arith.negf %113 : vector<8x8xf32>
    %115 = math.exp %114 : vector<8x8xf32>
    %cst_39 = arith.constant 1.000000e+00 : f32
    %116 = vector.broadcast %cst_39 : f32 to vector<8x8xf32>
    %117 = arith.addf %116, %115 : vector<8x8xf32>
    %118 = arith.divf %116, %117 : vector<8x8xf32>
    %119 = vector.extract_strided_slice %81 {offsets = [0, 32], sizes = [8, 8], strides = [1, 1]} : vector<8x48xf32> to vector<8x8xf32>
    %120 = vector.extract_strided_slice %83 {offsets = [0, 8], sizes = [8, 8], strides = [1, 1]} : vector<8x24xf32> to vector<8x8xf32>
    %121 = arith.addf %119, %120 : vector<8x8xf32>
    %122 = arith.negf %121 : vector<8x8xf32>
    %123 = math.exp %122 : vector<8x8xf32>
    %cst_40 = arith.constant 1.000000e+00 : f32
    %124 = vector.broadcast %cst_40 : f32 to vector<8x8xf32>
    %125 = arith.addf %124, %123 : vector<8x8xf32>
    %126 = arith.divf %124, %125 : vector<8x8xf32>
    %127 = vector.extract_strided_slice %81 {offsets = [0, 40], sizes = [8, 8], strides = [1, 1]} : vector<8x48xf32> to vector<8x8xf32>
    %128 = vector.extract_strided_slice %83 {offsets = [0, 16], sizes = [8, 8], strides = [1, 1]} : vector<8x24xf32> to vector<8x8xf32>
    %129 = arith.addf %128, %17 : vector<8x8xf32>
    %130 = arith.mulf %118, %129 : vector<8x8xf32>
    %131 = arith.addf %127, %130 : vector<8x8xf32>
    %132 = math.tanh %131 : vector<8x8xf32>
    %cst_41 = arith.constant 1.000000e+00 : f32
    %133 = vector.broadcast %cst_41 : f32 to vector<8x8xf32>
    %134 = arith.subf %133, %126 : vector<8x8xf32>
    %135 = arith.mulf %134, %132 : vector<8x8xf32>
    %136 = arith.mulf %126, %77 : vector<8x8xf32>
    %137 = arith.addf %135, %136 : vector<8x8xf32>
    %c8 = arith.constant 8 : index
    %c0_42 = arith.constant 0 : index
    %138 = vector.load %arg26[%c8, %c0_42] : memref<64x8xf32, #tpu.memory_space<vmem>>, vector<8x8xf32>
    tpu.vector_store %arg26[%c8, %c0_42], %110 {strides = array<i32>} : memref<64x8xf32, #tpu.memory_space<vmem>>, vector<8x8xf32>,
    %c48 = arith.constant 48 : index
    %c0_43 = arith.constant 0 : index
    %139 = vector.load %arg27[%c48, %c0_43] : memref<64x8xf32, #tpu.memory_space<vmem>>, vector<8x8xf32>
    tpu.vector_store %arg27[%c48, %c0_43], %137 {strides = array<i32>} : memref<64x8xf32, #tpu.memory_space<vmem>>, vector<8x8xf32>,
    %140 = vector.extract_strided_slice %5 {offsets = [16, 0], sizes = [8, 48], strides = [1, 1]} : vector<64x48xf32> to vector<8x48xf32>
    %141 = vector.extract_strided_slice %5 {offsets = [40, 0], sizes = [8, 48], strides = [1, 1]} : vector<64x48xf32> to vector<8x48xf32>
    %cst_44 = arith.constant dense<0.000000e+00> : vector<8x24xf32>
    %142 = tpu.matmul %110, %6, %cst_44 {dimension_numbers = #tpu.dot_dimension_numbers<[1], [0], [0], [1], [0, 0, 1, 1], [], []>} : vector<8x8xf32>, vector<8x24xf32>, vector<8x24xf32> -> vector<8x24xf32>
    %cst_45 = arith.constant dense<0.000000e+00> : vector<8x24xf32>
    %143 = tpu.matmul %137, %7, %cst_45 {dimension_numbers = #tpu.dot_dimension_numbers<[1], [0], [0], [1], [0, 0, 1, 1], [], []>} : vector<8x8xf32>, vector<8x24xf32>, vector<8x24xf32> -> vector<8x24xf32>
    %144 = vector.extract_strided_slice %140 {offsets = [0, 0], sizes = [8, 8], strides = [1, 1]} : vector<8x48xf32> to vector<8x8xf32>
    %145 = vector.extract_strided_slice %142 {offsets = [0, 0], sizes = [8, 8], strides = [1, 1]} : vector<8x24xf32> to vector<8x8xf32>
    %146 = arith.addf %144, %145 : vector<8x8xf32>
    %147 = arith.negf %146 : vector<8x8xf32>
    %148 = math.exp %147 : vector<8x8xf32>
    %cst_46 = arith.constant 1.000000e+00 : f32
    %149 = vector.broadcast %cst_46 : f32 to vector<8x8xf32>
    %150 = arith.addf %149, %148 : vector<8x8xf32>
    %151 = arith.divf %149, %150 : vector<8x8xf32>
    %152 = vector.extract_strided_slice %140 {offsets = [0, 8], sizes = [8, 8], strides = [1, 1]} : vector<8x48xf32> to vector<8x8xf32>
    %153 = vector.extract_strided_slice %142 {offsets = [0, 8], sizes = [8, 8], strides = [1, 1]} : vector<8x24xf32> to vector<8x8xf32>
    %154 = arith.addf %152, %153 : vector<8x8xf32>
    %155 = arith.negf %154 : vector<8x8xf32>
    %156 = math.exp %155 : vector<8x8xf32>
    %cst_47 = arith.constant 1.000000e+00 : f32
    %157 = vector.broadcast %cst_47 : f32 to vector<8x8xf32>
    %158 = arith.addf %157, %156 : vector<8x8xf32>
    %159 = arith.divf %157, %158 : vector<8x8xf32>
    %160 = vector.extract_strided_slice %140 {offsets = [0, 16], sizes = [8, 8], strides = [1, 1]} : vector<8x48xf32> to vector<8x8xf32>
    %161 = vector.extract_strided_slice %142 {offsets = [0, 16], sizes = [8, 8], strides = [1, 1]} : vector<8x24xf32> to vector<8x8xf32>
    %162 = arith.addf %161, %15 : vector<8x8xf32>
    %163 = arith.mulf %151, %162 : vector<8x8xf32>
    %164 = arith.addf %160, %163 : vector<8x8xf32>
    %165 = math.tanh %164 : vector<8x8xf32>
    %cst_48 = arith.constant 1.000000e+00 : f32
    %166 = vector.broadcast %cst_48 : f32 to vector<8x8xf32>
    %167 = arith.subf %166, %159 : vector<8x8xf32>
    %168 = arith.mulf %167, %165 : vector<8x8xf32>
    %169 = arith.mulf %159, %110 : vector<8x8xf32>
    %170 = arith.addf %168, %169 : vector<8x8xf32>
    %171 = vector.extract_strided_slice %141 {offsets = [0, 24], sizes = [8, 8], strides = [1, 1]} : vector<8x48xf32> to vector<8x8xf32>
    %172 = vector.extract_strided_slice %143 {offsets = [0, 0], sizes = [8, 8], strides = [1, 1]} : vector<8x24xf32> to vector<8x8xf32>
    %173 = arith.addf %171, %172 : vector<8x8xf32>
    %174 = arith.negf %173 : vector<8x8xf32>
    %175 = math.exp %174 : vector<8x8xf32>
    %cst_49 = arith.constant 1.000000e+00 : f32
    %176 = vector.broadcast %cst_49 : f32 to vector<8x8xf32>
    %177 = arith.addf %176, %175 : vector<8x8xf32>
    %178 = arith.divf %176, %177 : vector<8x8xf32>
    %179 = vector.extract_strided_slice %141 {offsets = [0, 32], sizes = [8, 8], strides = [1, 1]} : vector<8x48xf32> to vector<8x8xf32>
    %180 = vector.extract_strided_slice %143 {offsets = [0, 8], sizes = [8, 8], strides = [1, 1]} : vector<8x24xf32> to vector<8x8xf32>
    %181 = arith.addf %179, %180 : vector<8x8xf32>
    %182 = arith.negf %181 : vector<8x8xf32>
    %183 = math.exp %182 : vector<8x8xf32>
    %cst_50 = arith.constant 1.000000e+00 : f32
    %184 = vector.broadcast %cst_50 : f32 to vector<8x8xf32>
    %185 = arith.addf %184, %183 : vector<8x8xf32>
    %186 = arith.divf %184, %185 : vector<8x8xf32>
    %187 = vector.extract_strided_slice %141 {offsets = [0, 40], sizes = [8, 8], strides = [1, 1]} : vector<8x48xf32> to vector<8x8xf32>
    %188 = vector.extract_strided_slice %143 {offsets = [0, 16], sizes = [8, 8], strides = [1, 1]} : vector<8x24xf32> to vector<8x8xf32>
    %189 = arith.addf %188, %17 : vector<8x8xf32>
    %190 = arith.mulf %178, %189 : vector<8x8xf32>
    %191 = arith.addf %187, %190 : vector<8x8xf32>
    %192 = math.tanh %191 : vector<8x8xf32>
    %cst_51 = arith.constant 1.000000e+00 : f32
    %193 = vector.broadcast %cst_51 : f32 to vector<8x8xf32>
    %194 = arith.subf %193, %186 : vector<8x8xf32>
    %195 = arith.mulf %194, %192 : vector<8x8xf32>
    %196 = arith.mulf %186, %137 : vector<8x8xf32>
    %197 = arith.addf %195, %196 : vector<8x8xf32>
    %c16 = arith.constant 16 : index
    %c0_52 = arith.constant 0 : index
    %198 = vector.load %arg26[%c16, %c0_52] : memref<64x8xf32, #tpu.memory_space<vmem>>, vector<8x8xf32>
    tpu.vector_store %arg26[%c16, %c0_52], %170 {strides = array<i32>} : memref<64x8xf32, #tpu.memory_space<vmem>>, vector<8x8xf32>,
    %c40 = arith.constant 40 : index
    %c0_53 = arith.constant 0 : index
    %199 = vector.load %arg27[%c40, %c0_53] : memref<64x8xf32, #tpu.memory_space<vmem>>, vector<8x8xf32>
    tpu.vector_store %arg27[%c40, %c0_53], %197 {strides = array<i32>} : memref<64x8xf32, #tpu.memory_space<vmem>>, vector<8x8xf32>,
    %200 = vector.extract_strided_slice %5 {offsets = [24, 0], sizes = [8, 48], strides = [1, 1]} : vector<64x48xf32> to vector<8x48xf32>
    %201 = vector.extract_strided_slice %5 {offsets = [32, 0], sizes = [8, 48], strides = [1, 1]} : vector<64x48xf32> to vector<8x48xf32>
    %cst_54 = arith.constant dense<0.000000e+00> : vector<8x24xf32>
    %202 = tpu.matmul %170, %6, %cst_54 {dimension_numbers = #tpu.dot_dimension_numbers<[1], [0], [0], [1], [0, 0, 1, 1], [], []>} : vector<8x8xf32>, vector<8x24xf32>, vector<8x24xf32> -> vector<8x24xf32>
    %cst_55 = arith.constant dense<0.000000e+00> : vector<8x24xf32>
    %203 = tpu.matmul %197, %7, %cst_55 {dimension_numbers = #tpu.dot_dimension_numbers<[1], [0], [0], [1], [0, 0, 1, 1], [], []>} : vector<8x8xf32>, vector<8x24xf32>, vector<8x24xf32> -> vector<8x24xf32>
    %204 = vector.extract_strided_slice %200 {offsets = [0, 0], sizes = [8, 8], strides = [1, 1]} : vector<8x48xf32> to vector<8x8xf32>
    %205 = vector.extract_strided_slice %202 {offsets = [0, 0], sizes = [8, 8], strides = [1, 1]} : vector<8x24xf32> to vector<8x8xf32>
    %206 = arith.addf %204, %205 : vector<8x8xf32>
    %207 = arith.negf %206 : vector<8x8xf32>
    %208 = math.exp %207 : vector<8x8xf32>
    %cst_56 = arith.constant 1.000000e+00 : f32
    %209 = vector.broadcast %cst_56 : f32 to vector<8x8xf32>
    %210 = arith.addf %209, %208 : vector<8x8xf32>
    %211 = arith.divf %209, %210 : vector<8x8xf32>
    %212 = vector.extract_strided_slice %200 {offsets = [0, 8], sizes = [8, 8], strides = [1, 1]} : vector<8x48xf32> to vector<8x8xf32>
    %213 = vector.extract_strided_slice %202 {offsets = [0, 8], sizes = [8, 8], strides = [1, 1]} : vector<8x24xf32> to vector<8x8xf32>
    %214 = arith.addf %212, %213 : vector<8x8xf32>
    %215 = arith.negf %214 : vector<8x8xf32>
    %216 = math.exp %215 : vector<8x8xf32>
    %cst_57 = arith.constant 1.000000e+00 : f32
    %217 = vector.broadcast %cst_57 : f32 to vector<8x8xf32>
    %218 = arith.addf %217, %216 : vector<8x8xf32>
    %219 = arith.divf %217, %218 : vector<8x8xf32>
    %220 = vector.extract_strided_slice %200 {offsets = [0, 16], sizes = [8, 8], strides = [1, 1]} : vector<8x48xf32> to vector<8x8xf32>
    %221 = vector.extract_strided_slice %202 {offsets = [0, 16], sizes = [8, 8], strides = [1, 1]} : vector<8x24xf32> to vector<8x8xf32>
    %222 = arith.addf %221, %15 : vector<8x8xf32>
    %223 = arith.mulf %211, %222 : vector<8x8xf32>
    %224 = arith.addf %220, %223 : vector<8x8xf32>
    %225 = math.tanh %224 : vector<8x8xf32>
    %cst_58 = arith.constant 1.000000e+00 : f32
    %226 = vector.broadcast %cst_58 : f32 to vector<8x8xf32>
    %227 = arith.subf %226, %219 : vector<8x8xf32>
    %228 = arith.mulf %227, %225 : vector<8x8xf32>
    %229 = arith.mulf %219, %170 : vector<8x8xf32>
    %230 = arith.addf %228, %229 : vector<8x8xf32>
    %231 = vector.extract_strided_slice %201 {offsets = [0, 24], sizes = [8, 8], strides = [1, 1]} : vector<8x48xf32> to vector<8x8xf32>
    %232 = vector.extract_strided_slice %203 {offsets = [0, 0], sizes = [8, 8], strides = [1, 1]} : vector<8x24xf32> to vector<8x8xf32>
    %233 = arith.addf %231, %232 : vector<8x8xf32>
    %234 = arith.negf %233 : vector<8x8xf32>
    %235 = math.exp %234 : vector<8x8xf32>
    %cst_59 = arith.constant 1.000000e+00 : f32
    %236 = vector.broadcast %cst_59 : f32 to vector<8x8xf32>
    %237 = arith.addf %236, %235 : vector<8x8xf32>
    %238 = arith.divf %236, %237 : vector<8x8xf32>
    %239 = vector.extract_strided_slice %201 {offsets = [0, 32], sizes = [8, 8], strides = [1, 1]} : vector<8x48xf32> to vector<8x8xf32>
    %240 = vector.extract_strided_slice %203 {offsets = [0, 8], sizes = [8, 8], strides = [1, 1]} : vector<8x24xf32> to vector<8x8xf32>
    %241 = arith.addf %239, %240 : vector<8x8xf32>
    %242 = arith.negf %241 : vector<8x8xf32>
    %243 = math.exp %242 : vector<8x8xf32>
    %cst_60 = arith.constant 1.000000e+00 : f32
    %244 = vector.broadcast %cst_60 : f32 to vector<8x8xf32>
    %245 = arith.addf %244, %243 : vector<8x8xf32>
    %246 = arith.divf %244, %245 : vector<8x8xf32>
    %247 = vector.extract_strided_slice %201 {offsets = [0, 40], sizes = [8, 8], strides = [1, 1]} : vector<8x48xf32> to vector<8x8xf32>
    %248 = vector.extract_strided_slice %203 {offsets = [0, 16], sizes = [8, 8], strides = [1, 1]} : vector<8x24xf32> to vector<8x8xf32>
    %249 = arith.addf %248, %17 : vector<8x8xf32>
    %250 = arith.mulf %238, %249 : vector<8x8xf32>
    %251 = arith.addf %247, %250 : vector<8x8xf32>
    %252 = math.tanh %251 : vector<8x8xf32>
    %cst_61 = arith.constant 1.000000e+00 : f32
    %253 = vector.broadcast %cst_61 : f32 to vector<8x8xf32>
    %254 = arith.subf %253, %246 : vector<8x8xf32>
    %255 = arith.mulf %254, %252 : vector<8x8xf32>
    %256 = arith.mulf %246, %197 : vector<8x8xf32>
    %257 = arith.addf %255, %256 : vector<8x8xf32>
    %c24 = arith.constant 24 : index
    %c0_62 = arith.constant 0 : index
    %258 = vector.load %arg26[%c24, %c0_62] : memref<64x8xf32, #tpu.memory_space<vmem>>, vector<8x8xf32>
    tpu.vector_store %arg26[%c24, %c0_62], %230 {strides = array<i32>} : memref<64x8xf32, #tpu.memory_space<vmem>>, vector<8x8xf32>,
    %c32 = arith.constant 32 : index
    %c0_63 = arith.constant 0 : index
    %259 = vector.load %arg27[%c32, %c0_63] : memref<64x8xf32, #tpu.memory_space<vmem>>, vector<8x8xf32>
    tpu.vector_store %arg27[%c32, %c0_63], %257 {strides = array<i32>} : memref<64x8xf32, #tpu.memory_space<vmem>>, vector<8x8xf32>,
    %260 = vector.extract_strided_slice %5 {offsets = [32, 0], sizes = [8, 48], strides = [1, 1]} : vector<64x48xf32> to vector<8x48xf32>
    %261 = vector.extract_strided_slice %5 {offsets = [24, 0], sizes = [8, 48], strides = [1, 1]} : vector<64x48xf32> to vector<8x48xf32>
    %cst_64 = arith.constant dense<0.000000e+00> : vector<8x24xf32>
    %262 = tpu.matmul %230, %6, %cst_64 {dimension_numbers = #tpu.dot_dimension_numbers<[1], [0], [0], [1], [0, 0, 1, 1], [], []>} : vector<8x8xf32>, vector<8x24xf32>, vector<8x24xf32> -> vector<8x24xf32>
    %cst_65 = arith.constant dense<0.000000e+00> : vector<8x24xf32>
    %263 = tpu.matmul %257, %7, %cst_65 {dimension_numbers = #tpu.dot_dimension_numbers<[1], [0], [0], [1], [0, 0, 1, 1], [], []>} : vector<8x8xf32>, vector<8x24xf32>, vector<8x24xf32> -> vector<8x24xf32>
    %264 = vector.extract_strided_slice %260 {offsets = [0, 0], sizes = [8, 8], strides = [1, 1]} : vector<8x48xf32> to vector<8x8xf32>
    %265 = vector.extract_strided_slice %262 {offsets = [0, 0], sizes = [8, 8], strides = [1, 1]} : vector<8x24xf32> to vector<8x8xf32>
    %266 = arith.addf %264, %265 : vector<8x8xf32>
    %267 = arith.negf %266 : vector<8x8xf32>
    %268 = math.exp %267 : vector<8x8xf32>
    %cst_66 = arith.constant 1.000000e+00 : f32
    %269 = vector.broadcast %cst_66 : f32 to vector<8x8xf32>
    %270 = arith.addf %269, %268 : vector<8x8xf32>
    %271 = arith.divf %269, %270 : vector<8x8xf32>
    %272 = vector.extract_strided_slice %260 {offsets = [0, 8], sizes = [8, 8], strides = [1, 1]} : vector<8x48xf32> to vector<8x8xf32>
    %273 = vector.extract_strided_slice %262 {offsets = [0, 8], sizes = [8, 8], strides = [1, 1]} : vector<8x24xf32> to vector<8x8xf32>
    %274 = arith.addf %272, %273 : vector<8x8xf32>
    %275 = arith.negf %274 : vector<8x8xf32>
    %276 = math.exp %275 : vector<8x8xf32>
    %cst_67 = arith.constant 1.000000e+00 : f32
    %277 = vector.broadcast %cst_67 : f32 to vector<8x8xf32>
    %278 = arith.addf %277, %276 : vector<8x8xf32>
    %279 = arith.divf %277, %278 : vector<8x8xf32>
    %280 = vector.extract_strided_slice %260 {offsets = [0, 16], sizes = [8, 8], strides = [1, 1]} : vector<8x48xf32> to vector<8x8xf32>
    %281 = vector.extract_strided_slice %262 {offsets = [0, 16], sizes = [8, 8], strides = [1, 1]} : vector<8x24xf32> to vector<8x8xf32>
    %282 = arith.addf %281, %15 : vector<8x8xf32>
    %283 = arith.mulf %271, %282 : vector<8x8xf32>
    %284 = arith.addf %280, %283 : vector<8x8xf32>
    %285 = math.tanh %284 : vector<8x8xf32>
    %cst_68 = arith.constant 1.000000e+00 : f32
    %286 = vector.broadcast %cst_68 : f32 to vector<8x8xf32>
    %287 = arith.subf %286, %279 : vector<8x8xf32>
    %288 = arith.mulf %287, %285 : vector<8x8xf32>
    %289 = arith.mulf %279, %230 : vector<8x8xf32>
    %290 = arith.addf %288, %289 : vector<8x8xf32>
    %291 = vector.extract_strided_slice %261 {offsets = [0, 24], sizes = [8, 8], strides = [1, 1]} : vector<8x48xf32> to vector<8x8xf32>
    %292 = vector.extract_strided_slice %263 {offsets = [0, 0], sizes = [8, 8], strides = [1, 1]} : vector<8x24xf32> to vector<8x8xf32>
    %293 = arith.addf %291, %292 : vector<8x8xf32>
    %294 = arith.negf %293 : vector<8x8xf32>
    %295 = math.exp %294 : vector<8x8xf32>
    %cst_69 = arith.constant 1.000000e+00 : f32
    %296 = vector.broadcast %cst_69 : f32 to vector<8x8xf32>
    %297 = arith.addf %296, %295 : vector<8x8xf32>
    %298 = arith.divf %296, %297 : vector<8x8xf32>
    %299 = vector.extract_strided_slice %261 {offsets = [0, 32], sizes = [8, 8], strides = [1, 1]} : vector<8x48xf32> to vector<8x8xf32>
    %300 = vector.extract_strided_slice %263 {offsets = [0, 8], sizes = [8, 8], strides = [1, 1]} : vector<8x24xf32> to vector<8x8xf32>
    %301 = arith.addf %299, %300 : vector<8x8xf32>
    %302 = arith.negf %301 : vector<8x8xf32>
    %303 = math.exp %302 : vector<8x8xf32>
    %cst_70 = arith.constant 1.000000e+00 : f32
    %304 = vector.broadcast %cst_70 : f32 to vector<8x8xf32>
    %305 = arith.addf %304, %303 : vector<8x8xf32>
    %306 = arith.divf %304, %305 : vector<8x8xf32>
    %307 = vector.extract_strided_slice %261 {offsets = [0, 40], sizes = [8, 8], strides = [1, 1]} : vector<8x48xf32> to vector<8x8xf32>
    %308 = vector.extract_strided_slice %263 {offsets = [0, 16], sizes = [8, 8], strides = [1, 1]} : vector<8x24xf32> to vector<8x8xf32>
    %309 = arith.addf %308, %17 : vector<8x8xf32>
    %310 = arith.mulf %298, %309 : vector<8x8xf32>
    %311 = arith.addf %307, %310 : vector<8x8xf32>
    %312 = math.tanh %311 : vector<8x8xf32>
    %cst_71 = arith.constant 1.000000e+00 : f32
    %313 = vector.broadcast %cst_71 : f32 to vector<8x8xf32>
    %314 = arith.subf %313, %306 : vector<8x8xf32>
    %315 = arith.mulf %314, %312 : vector<8x8xf32>
    %316 = arith.mulf %306, %257 : vector<8x8xf32>
    %317 = arith.addf %315, %316 : vector<8x8xf32>
    %c32_72 = arith.constant 32 : index
    %c0_73 = arith.constant 0 : index
    %318 = vector.load %arg26[%c32_72, %c0_73] : memref<64x8xf32, #tpu.memory_space<vmem>>, vector<8x8xf32>
    tpu.vector_store %arg26[%c32_72, %c0_73], %290 {strides = array<i32>} : memref<64x8xf32, #tpu.memory_space<vmem>>, vector<8x8xf32>,
    %c24_74 = arith.constant 24 : index
    %c0_75 = arith.constant 0 : index
    %319 = vector.load %arg27[%c24_74, %c0_75] : memref<64x8xf32, #tpu.memory_space<vmem>>, vector<8x8xf32>
    tpu.vector_store %arg27[%c24_74, %c0_75], %317 {strides = array<i32>} : memref<64x8xf32, #tpu.memory_space<vmem>>, vector<8x8xf32>,
    %320 = vector.extract_strided_slice %5 {offsets = [40, 0], sizes = [8, 48], strides = [1, 1]} : vector<64x48xf32> to vector<8x48xf32>
    %321 = vector.extract_strided_slice %5 {offsets = [16, 0], sizes = [8, 48], strides = [1, 1]} : vector<64x48xf32> to vector<8x48xf32>
    %cst_76 = arith.constant dense<0.000000e+00> : vector<8x24xf32>
    %322 = tpu.matmul %290, %6, %cst_76 {dimension_numbers = #tpu.dot_dimension_numbers<[1], [0], [0], [1], [0, 0, 1, 1], [], []>} : vector<8x8xf32>, vector<8x24xf32>, vector<8x24xf32> -> vector<8x24xf32>
    %cst_77 = arith.constant dense<0.000000e+00> : vector<8x24xf32>
    %323 = tpu.matmul %317, %7, %cst_77 {dimension_numbers = #tpu.dot_dimension_numbers<[1], [0], [0], [1], [0, 0, 1, 1], [], []>} : vector<8x8xf32>, vector<8x24xf32>, vector<8x24xf32> -> vector<8x24xf32>
    %324 = vector.extract_strided_slice %320 {offsets = [0, 0], sizes = [8, 8], strides = [1, 1]} : vector<8x48xf32> to vector<8x8xf32>
    %325 = vector.extract_strided_slice %322 {offsets = [0, 0], sizes = [8, 8], strides = [1, 1]} : vector<8x24xf32> to vector<8x8xf32>
    %326 = arith.addf %324, %325 : vector<8x8xf32>
    %327 = arith.negf %326 : vector<8x8xf32>
    %328 = math.exp %327 : vector<8x8xf32>
    %cst_78 = arith.constant 1.000000e+00 : f32
    %329 = vector.broadcast %cst_78 : f32 to vector<8x8xf32>
    %330 = arith.addf %329, %328 : vector<8x8xf32>
    %331 = arith.divf %329, %330 : vector<8x8xf32>
    %332 = vector.extract_strided_slice %320 {offsets = [0, 8], sizes = [8, 8], strides = [1, 1]} : vector<8x48xf32> to vector<8x8xf32>
    %333 = vector.extract_strided_slice %322 {offsets = [0, 8], sizes = [8, 8], strides = [1, 1]} : vector<8x24xf32> to vector<8x8xf32>
    %334 = arith.addf %332, %333 : vector<8x8xf32>
    %335 = arith.negf %334 : vector<8x8xf32>
    %336 = math.exp %335 : vector<8x8xf32>
    %cst_79 = arith.constant 1.000000e+00 : f32
    %337 = vector.broadcast %cst_79 : f32 to vector<8x8xf32>
    %338 = arith.addf %337, %336 : vector<8x8xf32>
    %339 = arith.divf %337, %338 : vector<8x8xf32>
    %340 = vector.extract_strided_slice %320 {offsets = [0, 16], sizes = [8, 8], strides = [1, 1]} : vector<8x48xf32> to vector<8x8xf32>
    %341 = vector.extract_strided_slice %322 {offsets = [0, 16], sizes = [8, 8], strides = [1, 1]} : vector<8x24xf32> to vector<8x8xf32>
    %342 = arith.addf %341, %15 : vector<8x8xf32>
    %343 = arith.mulf %331, %342 : vector<8x8xf32>
    %344 = arith.addf %340, %343 : vector<8x8xf32>
    %345 = math.tanh %344 : vector<8x8xf32>
    %cst_80 = arith.constant 1.000000e+00 : f32
    %346 = vector.broadcast %cst_80 : f32 to vector<8x8xf32>
    %347 = arith.subf %346, %339 : vector<8x8xf32>
    %348 = arith.mulf %347, %345 : vector<8x8xf32>
    %349 = arith.mulf %339, %290 : vector<8x8xf32>
    %350 = arith.addf %348, %349 : vector<8x8xf32>
    %351 = vector.extract_strided_slice %321 {offsets = [0, 24], sizes = [8, 8], strides = [1, 1]} : vector<8x48xf32> to vector<8x8xf32>
    %352 = vector.extract_strided_slice %323 {offsets = [0, 0], sizes = [8, 8], strides = [1, 1]} : vector<8x24xf32> to vector<8x8xf32>
    %353 = arith.addf %351, %352 : vector<8x8xf32>
    %354 = arith.negf %353 : vector<8x8xf32>
    %355 = math.exp %354 : vector<8x8xf32>
    %cst_81 = arith.constant 1.000000e+00 : f32
    %356 = vector.broadcast %cst_81 : f32 to vector<8x8xf32>
    %357 = arith.addf %356, %355 : vector<8x8xf32>
    %358 = arith.divf %356, %357 : vector<8x8xf32>
    %359 = vector.extract_strided_slice %321 {offsets = [0, 32], sizes = [8, 8], strides = [1, 1]} : vector<8x48xf32> to vector<8x8xf32>
    %360 = vector.extract_strided_slice %323 {offsets = [0, 8], sizes = [8, 8], strides = [1, 1]} : vector<8x24xf32> to vector<8x8xf32>
    %361 = arith.addf %359, %360 : vector<8x8xf32>
    %362 = arith.negf %361 : vector<8x8xf32>
    %363 = math.exp %362 : vector<8x8xf32>
    %cst_82 = arith.constant 1.000000e+00 : f32
    %364 = vector.broadcast %cst_82 : f32 to vector<8x8xf32>
    %365 = arith.addf %364, %363 : vector<8x8xf32>
    %366 = arith.divf %364, %365 : vector<8x8xf32>
    %367 = vector.extract_strided_slice %321 {offsets = [0, 40], sizes = [8, 8], strides = [1, 1]} : vector<8x48xf32> to vector<8x8xf32>
    %368 = vector.extract_strided_slice %323 {offsets = [0, 16], sizes = [8, 8], strides = [1, 1]} : vector<8x24xf32> to vector<8x8xf32>
    %369 = arith.addf %368, %17 : vector<8x8xf32>
    %370 = arith.mulf %358, %369 : vector<8x8xf32>
    %371 = arith.addf %367, %370 : vector<8x8xf32>
    %372 = math.tanh %371 : vector<8x8xf32>
    %cst_83 = arith.constant 1.000000e+00 : f32
    %373 = vector.broadcast %cst_83 : f32 to vector<8x8xf32>
    %374 = arith.subf %373, %366 : vector<8x8xf32>
    %375 = arith.mulf %374, %372 : vector<8x8xf32>
    %376 = arith.mulf %366, %317 : vector<8x8xf32>
    %377 = arith.addf %375, %376 : vector<8x8xf32>
    %c40_84 = arith.constant 40 : index
    %c0_85 = arith.constant 0 : index
    %378 = vector.load %arg26[%c40_84, %c0_85] : memref<64x8xf32, #tpu.memory_space<vmem>>, vector<8x8xf32>
    tpu.vector_store %arg26[%c40_84, %c0_85], %350 {strides = array<i32>} : memref<64x8xf32, #tpu.memory_space<vmem>>, vector<8x8xf32>,
    %c16_86 = arith.constant 16 : index
    %c0_87 = arith.constant 0 : index
    %379 = vector.load %arg27[%c16_86, %c0_87] : memref<64x8xf32, #tpu.memory_space<vmem>>, vector<8x8xf32>
    tpu.vector_store %arg27[%c16_86, %c0_87], %377 {strides = array<i32>} : memref<64x8xf32, #tpu.memory_space<vmem>>, vector<8x8xf32>,
    %380 = vector.extract_strided_slice %5 {offsets = [48, 0], sizes = [8, 48], strides = [1, 1]} : vector<64x48xf32> to vector<8x48xf32>
    %381 = vector.extract_strided_slice %5 {offsets = [8, 0], sizes = [8, 48], strides = [1, 1]} : vector<64x48xf32> to vector<8x48xf32>
    %cst_88 = arith.constant dense<0.000000e+00> : vector<8x24xf32>
    %382 = tpu.matmul %350, %6, %cst_88 {dimension_numbers = #tpu.dot_dimension_numbers<[1], [0], [0], [1], [0, 0, 1, 1], [], []>} : vector<8x8xf32>, vector<8x24xf32>, vector<8x24xf32> -> vector<8x24xf32>
    %cst_89 = arith.constant dense<0.000000e+00> : vector<8x24xf32>
    %383 = tpu.matmul %377, %7, %cst_89 {dimension_numbers = #tpu.dot_dimension_numbers<[1], [0], [0], [1], [0, 0, 1, 1], [], []>} : vector<8x8xf32>, vector<8x24xf32>, vector<8x24xf32> -> vector<8x24xf32>
    %384 = vector.extract_strided_slice %380 {offsets = [0, 0], sizes = [8, 8], strides = [1, 1]} : vector<8x48xf32> to vector<8x8xf32>
    %385 = vector.extract_strided_slice %382 {offsets = [0, 0], sizes = [8, 8], strides = [1, 1]} : vector<8x24xf32> to vector<8x8xf32>
    %386 = arith.addf %384, %385 : vector<8x8xf32>
    %387 = arith.negf %386 : vector<8x8xf32>
    %388 = math.exp %387 : vector<8x8xf32>
    %cst_90 = arith.constant 1.000000e+00 : f32
    %389 = vector.broadcast %cst_90 : f32 to vector<8x8xf32>
    %390 = arith.addf %389, %388 : vector<8x8xf32>
    %391 = arith.divf %389, %390 : vector<8x8xf32>
    %392 = vector.extract_strided_slice %380 {offsets = [0, 8], sizes = [8, 8], strides = [1, 1]} : vector<8x48xf32> to vector<8x8xf32>
    %393 = vector.extract_strided_slice %382 {offsets = [0, 8], sizes = [8, 8], strides = [1, 1]} : vector<8x24xf32> to vector<8x8xf32>
    %394 = arith.addf %392, %393 : vector<8x8xf32>
    %395 = arith.negf %394 : vector<8x8xf32>
    %396 = math.exp %395 : vector<8x8xf32>
    %cst_91 = arith.constant 1.000000e+00 : f32
    %397 = vector.broadcast %cst_91 : f32 to vector<8x8xf32>
    %398 = arith.addf %397, %396 : vector<8x8xf32>
    %399 = arith.divf %397, %398 : vector<8x8xf32>
    %400 = vector.extract_strided_slice %380 {offsets = [0, 16], sizes = [8, 8], strides = [1, 1]} : vector<8x48xf32> to vector<8x8xf32>
    %401 = vector.extract_strided_slice %382 {offsets = [0, 16], sizes = [8, 8], strides = [1, 1]} : vector<8x24xf32> to vector<8x8xf32>
    %402 = arith.addf %401, %15 : vector<8x8xf32>
    %403 = arith.mulf %391, %402 : vector<8x8xf32>
    %404 = arith.addf %400, %403 : vector<8x8xf32>
    %405 = math.tanh %404 : vector<8x8xf32>
    %cst_92 = arith.constant 1.000000e+00 : f32
    %406 = vector.broadcast %cst_92 : f32 to vector<8x8xf32>
    %407 = arith.subf %406, %399 : vector<8x8xf32>
    %408 = arith.mulf %407, %405 : vector<8x8xf32>
    %409 = arith.mulf %399, %350 : vector<8x8xf32>
    %410 = arith.addf %408, %409 : vector<8x8xf32>
    %411 = vector.extract_strided_slice %381 {offsets = [0, 24], sizes = [8, 8], strides = [1, 1]} : vector<8x48xf32> to vector<8x8xf32>
    %412 = vector.extract_strided_slice %383 {offsets = [0, 0], sizes = [8, 8], strides = [1, 1]} : vector<8x24xf32> to vector<8x8xf32>
    %413 = arith.addf %411, %412 : vector<8x8xf32>
    %414 = arith.negf %413 : vector<8x8xf32>
    %415 = math.exp %414 : vector<8x8xf32>
    %cst_93 = arith.constant 1.000000e+00 : f32
    %416 = vector.broadcast %cst_93 : f32 to vector<8x8xf32>
    %417 = arith.addf %416, %415 : vector<8x8xf32>
    %418 = arith.divf %416, %417 : vector<8x8xf32>
    %419 = vector.extract_strided_slice %381 {offsets = [0, 32], sizes = [8, 8], strides = [1, 1]} : vector<8x48xf32> to vector<8x8xf32>
    %420 = vector.extract_strided_slice %383 {offsets = [0, 8], sizes = [8, 8], strides = [1, 1]} : vector<8x24xf32> to vector<8x8xf32>
    %421 = arith.addf %419, %420 : vector<8x8xf32>
    %422 = arith.negf %421 : vector<8x8xf32>
    %423 = math.exp %422 : vector<8x8xf32>
    %cst_94 = arith.constant 1.000000e+00 : f32
    %424 = vector.broadcast %cst_94 : f32 to vector<8x8xf32>
    %425 = arith.addf %424, %423 : vector<8x8xf32>
    %426 = arith.divf %424, %425 : vector<8x8xf32>
    %427 = vector.extract_strided_slice %381 {offsets = [0, 40], sizes = [8, 8], strides = [1, 1]} : vector<8x48xf32> to vector<8x8xf32>
    %428 = vector.extract_strided_slice %383 {offsets = [0, 16], sizes = [8, 8], strides = [1, 1]} : vector<8x24xf32> to vector<8x8xf32>
    %429 = arith.addf %428, %17 : vector<8x8xf32>
    %430 = arith.mulf %418, %429 : vector<8x8xf32>
    %431 = arith.addf %427, %430 : vector<8x8xf32>
    %432 = math.tanh %431 : vector<8x8xf32>
    %cst_95 = arith.constant 1.000000e+00 : f32
    %433 = vector.broadcast %cst_95 : f32 to vector<8x8xf32>
    %434 = arith.subf %433, %426 : vector<8x8xf32>
    %435 = arith.mulf %434, %432 : vector<8x8xf32>
    %436 = arith.mulf %426, %377 : vector<8x8xf32>
    %437 = arith.addf %435, %436 : vector<8x8xf32>
    %c48_96 = arith.constant 48 : index
    %c0_97 = arith.constant 0 : index
    %438 = vector.load %arg26[%c48_96, %c0_97] : memref<64x8xf32, #tpu.memory_space<vmem>>, vector<8x8xf32>
    tpu.vector_store %arg26[%c48_96, %c0_97], %410 {strides = array<i32>} : memref<64x8xf32, #tpu.memory_space<vmem>>, vector<8x8xf32>,
    %c8_98 = arith.constant 8 : index
    %c0_99 = arith.constant 0 : index
    %439 = vector.load %arg27[%c8_98, %c0_99] : memref<64x8xf32, #tpu.memory_space<vmem>>, vector<8x8xf32>
    tpu.vector_store %arg27[%c8_98, %c0_99], %437 {strides = array<i32>} : memref<64x8xf32, #tpu.memory_space<vmem>>, vector<8x8xf32>,
    %440 = vector.extract_strided_slice %5 {offsets = [56, 0], sizes = [8, 48], strides = [1, 1]} : vector<64x48xf32> to vector<8x48xf32>
    %441 = vector.extract_strided_slice %5 {offsets = [0, 0], sizes = [8, 48], strides = [1, 1]} : vector<64x48xf32> to vector<8x48xf32>
    %cst_100 = arith.constant dense<0.000000e+00> : vector<8x24xf32>
    %442 = tpu.matmul %410, %6, %cst_100 {dimension_numbers = #tpu.dot_dimension_numbers<[1], [0], [0], [1], [0, 0, 1, 1], [], []>} : vector<8x8xf32>, vector<8x24xf32>, vector<8x24xf32> -> vector<8x24xf32>
    %cst_101 = arith.constant dense<0.000000e+00> : vector<8x24xf32>
    %443 = tpu.matmul %437, %7, %cst_101 {dimension_numbers = #tpu.dot_dimension_numbers<[1], [0], [0], [1], [0, 0, 1, 1], [], []>} : vector<8x8xf32>, vector<8x24xf32>, vector<8x24xf32> -> vector<8x24xf32>
    %444 = vector.extract_strided_slice %440 {offsets = [0, 0], sizes = [8, 8], strides = [1, 1]} : vector<8x48xf32> to vector<8x8xf32>
    %445 = vector.extract_strided_slice %442 {offsets = [0, 0], sizes = [8, 8], strides = [1, 1]} : vector<8x24xf32> to vector<8x8xf32>
    %446 = arith.addf %444, %445 : vector<8x8xf32>
    %447 = arith.negf %446 : vector<8x8xf32>
    %448 = math.exp %447 : vector<8x8xf32>
    %cst_102 = arith.constant 1.000000e+00 : f32
    %449 = vector.broadcast %cst_102 : f32 to vector<8x8xf32>
    %450 = arith.addf %449, %448 : vector<8x8xf32>
    %451 = arith.divf %449, %450 : vector<8x8xf32>
    %452 = vector.extract_strided_slice %440 {offsets = [0, 8], sizes = [8, 8], strides = [1, 1]} : vector<8x48xf32> to vector<8x8xf32>
    %453 = vector.extract_strided_slice %442 {offsets = [0, 8], sizes = [8, 8], strides = [1, 1]} : vector<8x24xf32> to vector<8x8xf32>
    %454 = arith.addf %452, %453 : vector<8x8xf32>
    %455 = arith.negf %454 : vector<8x8xf32>
    %456 = math.exp %455 : vector<8x8xf32>
    %cst_103 = arith.constant 1.000000e+00 : f32
    %457 = vector.broadcast %cst_103 : f32 to vector<8x8xf32>
    %458 = arith.addf %457, %456 : vector<8x8xf32>
    %459 = arith.divf %457, %458 : vector<8x8xf32>
    %460 = vector.extract_strided_slice %440 {offsets = [0, 16], sizes = [8, 8], strides = [1, 1]} : vector<8x48xf32> to vector<8x8xf32>
    %461 = vector.extract_strided_slice %442 {offsets = [0, 16], sizes = [8, 8], strides = [1, 1]} : vector<8x24xf32> to vector<8x8xf32>
    %462 = arith.addf %461, %15 : vector<8x8xf32>
    %463 = arith.mulf %451, %462 : vector<8x8xf32>
    %464 = arith.addf %460, %463 : vector<8x8xf32>
    %465 = math.tanh %464 : vector<8x8xf32>
    %cst_104 = arith.constant 1.000000e+00 : f32
    %466 = vector.broadcast %cst_104 : f32 to vector<8x8xf32>
    %467 = arith.subf %466, %459 : vector<8x8xf32>
    %468 = arith.mulf %467, %465 : vector<8x8xf32>
    %469 = arith.mulf %459, %410 : vector<8x8xf32>
    %470 = arith.addf %468, %469 : vector<8x8xf32>
    %471 = vector.extract_strided_slice %441 {offsets = [0, 24], sizes = [8, 8], strides = [1, 1]} : vector<8x48xf32> to vector<8x8xf32>
    %472 = vector.extract_strided_slice %443 {offsets = [0, 0], sizes = [8, 8], strides = [1, 1]} : vector<8x24xf32> to vector<8x8xf32>
    %473 = arith.addf %471, %472 : vector<8x8xf32>
    %474 = arith.negf %473 : vector<8x8xf32>
    %475 = math.exp %474 : vector<8x8xf32>
    %cst_105 = arith.constant 1.000000e+00 : f32
    %476 = vector.broadcast %cst_105 : f32 to vector<8x8xf32>
    %477 = arith.addf %476, %475 : vector<8x8xf32>
    %478 = arith.divf %476, %477 : vector<8x8xf32>
    %479 = vector.extract_strided_slice %441 {offsets = [0, 32], sizes = [8, 8], strides = [1, 1]} : vector<8x48xf32> to vector<8x8xf32>
    %480 = vector.extract_strided_slice %443 {offsets = [0, 8], sizes = [8, 8], strides = [1, 1]} : vector<8x24xf32> to vector<8x8xf32>
    %481 = arith.addf %479, %480 : vector<8x8xf32>
    %482 = arith.negf %481 : vector<8x8xf32>
    %483 = math.exp %482 : vector<8x8xf32>
    %cst_106 = arith.constant 1.000000e+00 : f32
    %484 = vector.broadcast %cst_106 : f32 to vector<8x8xf32>
    %485 = arith.addf %484, %483 : vector<8x8xf32>
    %486 = arith.divf %484, %485 : vector<8x8xf32>
    %487 = vector.extract_strided_slice %441 {offsets = [0, 40], sizes = [8, 8], strides = [1, 1]} : vector<8x48xf32> to vector<8x8xf32>
    %488 = vector.extract_strided_slice %443 {offsets = [0, 16], sizes = [8, 8], strides = [1, 1]} : vector<8x24xf32> to vector<8x8xf32>
    %489 = arith.addf %488, %17 : vector<8x8xf32>
    %490 = arith.mulf %478, %489 : vector<8x8xf32>
    %491 = arith.addf %487, %490 : vector<8x8xf32>
    %492 = math.tanh %491 : vector<8x8xf32>
    %cst_107 = arith.constant 1.000000e+00 : f32
    %493 = vector.broadcast %cst_107 : f32 to vector<8x8xf32>
    %494 = arith.subf %493, %486 : vector<8x8xf32>
    %495 = arith.mulf %494, %492 : vector<8x8xf32>
    %496 = arith.mulf %486, %437 : vector<8x8xf32>
    %497 = arith.addf %495, %496 : vector<8x8xf32>
    %c56_108 = arith.constant 56 : index
    %c0_109 = arith.constant 0 : index
    %498 = vector.load %arg26[%c56_108, %c0_109] : memref<64x8xf32, #tpu.memory_space<vmem>>, vector<8x8xf32>
    tpu.vector_store %arg26[%c56_108, %c0_109], %470 {strides = array<i32>} : memref<64x8xf32, #tpu.memory_space<vmem>>, vector<8x8xf32>,
    %c0_110 = arith.constant 0 : index
    %c0_111 = arith.constant 0 : index
    %499 = vector.load %arg27[%c0_110, %c0_111] : memref<64x8xf32, #tpu.memory_space<vmem>>, vector<8x8xf32>
    tpu.vector_store %arg27[%c0_110, %c0_111], %497 {strides = array<i32>} : memref<64x8xf32, #tpu.memory_space<vmem>>, vector<8x8xf32>,
    %c0_112 = arith.constant 0 : index
    %c0_113 = arith.constant 0 : index
    %500 = vector.load %arg26[%c0_112, %c0_113] : memref<64x8xf32, #tpu.memory_space<vmem>>, vector<64x8xf32>
    %c0_114 = arith.constant 0 : index
    %c0_115 = arith.constant 0 : index
    %501 = vector.load %arg27[%c0_114, %c0_115] : memref<64x8xf32, #tpu.memory_space<vmem>>, vector<64x8xf32>
    %cst_116 = arith.constant dense<0.000000e+00> : vector<64x16xf32>
    %502 = tpu.matmul %500, %10, %cst_116 {dimension_numbers = #tpu.dot_dimension_numbers<[1], [0], [0], [1], [0, 0, 1, 1], [], []>} : vector<64x8xf32>, vector<8x16xf32>, vector<64x16xf32> -> vector<64x16xf32>
    %cst_117 = arith.constant dense<0.000000e+00> : vector<64x16xf32>
    %503 = tpu.matmul %501, %11, %cst_117 {dimension_numbers = #tpu.dot_dimension_numbers<[1], [0], [0], [1], [0, 0, 1, 1], [], []>} : vector<64x8xf32>, vector<8x16xf32>, vector<64x16xf32> -> vector<64x16xf32>
    %504 = arith.addf %502, %503 : vector<64x16xf32>
    %505 = vector.broadcast %12 : vector<1x16xf32> to vector<64x16xf32>
    %506 = arith.addf %504, %505 : vector<64x16xf32>
    %507 = math.tanh %506 : vector<64x16xf32>
    %508 = vector.extract_strided_slice %507 {offsets = [0, 0], sizes = [8, 16], strides = [1, 1]} : vector<64x16xf32> to vector<8x16xf32>
    %509 = vector.broadcast %13 : vector<1x16xf32> to vector<8x16xf32>
    %510 = arith.mulf %508, %509 : vector<8x16xf32>
    %cst_118 = arith.constant dense<0.000000e+00> : vector<8xf32>
    %511 = vector.multi_reduction <add>, %510, %cst_118 [1] : vector<8x16xf32> to vector<8xf32>
    %512 = vector.shape_cast %511 : vector<8xf32> to vector<8x1xf32>
    %513 = vector.extract_strided_slice %507 {offsets = [8, 0], sizes = [8, 16], strides = [1, 1]} : vector<64x16xf32> to vector<8x16xf32>
    %514 = vector.broadcast %13 : vector<1x16xf32> to vector<8x16xf32>
    %515 = arith.mulf %513, %514 : vector<8x16xf32>
    %cst_119 = arith.constant dense<0.000000e+00> : vector<8xf32>
    %516 = vector.multi_reduction <add>, %515, %cst_119 [1] : vector<8x16xf32> to vector<8xf32>
    %517 = vector.shape_cast %516 : vector<8xf32> to vector<8x1xf32>
    %518 = vector.extract_strided_slice %507 {offsets = [16, 0], sizes = [8, 16], strides = [1, 1]} : vector<64x16xf32> to vector<8x16xf32>
    %519 = vector.broadcast %13 : vector<1x16xf32> to vector<8x16xf32>
    %520 = arith.mulf %518, %519 : vector<8x16xf32>
    %cst_120 = arith.constant dense<0.000000e+00> : vector<8xf32>
    %521 = vector.multi_reduction <add>, %520, %cst_120 [1] : vector<8x16xf32> to vector<8xf32>
    %522 = vector.shape_cast %521 : vector<8xf32> to vector<8x1xf32>
    %523 = vector.extract_strided_slice %507 {offsets = [24, 0], sizes = [8, 16], strides = [1, 1]} : vector<64x16xf32> to vector<8x16xf32>
    %524 = vector.broadcast %13 : vector<1x16xf32> to vector<8x16xf32>
    %525 = arith.mulf %523, %524 : vector<8x16xf32>
    %cst_121 = arith.constant dense<0.000000e+00> : vector<8xf32>
    %526 = vector.multi_reduction <add>, %525, %cst_121 [1] : vector<8x16xf32> to vector<8xf32>
    %527 = vector.shape_cast %526 : vector<8xf32> to vector<8x1xf32>
    %528 = vector.extract_strided_slice %507 {offsets = [32, 0], sizes = [8, 16], strides = [1, 1]} : vector<64x16xf32> to vector<8x16xf32>
    %529 = vector.broadcast %13 : vector<1x16xf32> to vector<8x16xf32>
    %530 = arith.mulf %528, %529 : vector<8x16xf32>
    %cst_122 = arith.constant dense<0.000000e+00> : vector<8xf32>
    %531 = vector.multi_reduction <add>, %530, %cst_122 [1] : vector<8x16xf32> to vector<8xf32>
    %532 = vector.shape_cast %531 : vector<8xf32> to vector<8x1xf32>
    %533 = vector.extract_strided_slice %507 {offsets = [40, 0], sizes = [8, 16], strides = [1, 1]} : vector<64x16xf32> to vector<8x16xf32>
    %534 = vector.broadcast %13 : vector<1x16xf32> to vector<8x16xf32>
    %535 = arith.mulf %533, %534 : vector<8x16xf32>
    %cst_123 = arith.constant dense<0.000000e+00> : vector<8xf32>
    %536 = vector.multi_reduction <add>, %535, %cst_123 [1] : vector<8x16xf32> to vector<8xf32>
    %537 = vector.shape_cast %536 : vector<8xf32> to vector<8x1xf32>
    %538 = vector.extract_strided_slice %507 {offsets = [48, 0], sizes = [8, 16], strides = [1, 1]} : vector<64x16xf32> to vector<8x16xf32>
    %539 = vector.broadcast %13 : vector<1x16xf32> to vector<8x16xf32>
    %540 = arith.mulf %538, %539 : vector<8x16xf32>
    %cst_124 = arith.constant dense<0.000000e+00> : vector<8xf32>
    %541 = vector.multi_reduction <add>, %540, %cst_124 [1] : vector<8x16xf32> to vector<8xf32>
    %542 = vector.shape_cast %541 : vector<8xf32> to vector<8x1xf32>
    %543 = vector.extract_strided_slice %507 {offsets = [56, 0], sizes = [8, 16], strides = [1, 1]} : vector<64x16xf32> to vector<8x16xf32>
    %544 = vector.broadcast %13 : vector<1x16xf32> to vector<8x16xf32>
    %545 = arith.mulf %543, %544 : vector<8x16xf32>
    %cst_125 = arith.constant dense<0.000000e+00> : vector<8xf32>
    %546 = vector.multi_reduction <add>, %545, %cst_125 [1] : vector<8x16xf32> to vector<8xf32>
    %547 = vector.shape_cast %546 : vector<8xf32> to vector<8x1xf32>
    %548 = arith.maximumf %512, %517 : vector<8x1xf32>
    %549 = arith.maximumf %548, %522 : vector<8x1xf32>
    %550 = arith.maximumf %549, %527 : vector<8x1xf32>
    %551 = arith.maximumf %550, %532 : vector<8x1xf32>
    %552 = arith.maximumf %551, %537 : vector<8x1xf32>
    %553 = arith.maximumf %552, %542 : vector<8x1xf32>
    %554 = arith.maximumf %553, %547 : vector<8x1xf32>
    %555 = arith.subf %512, %554 : vector<8x1xf32>
    %556 = math.exp %555 : vector<8x1xf32>
    %557 = arith.subf %517, %554 : vector<8x1xf32>
    %558 = math.exp %557 : vector<8x1xf32>
    %559 = arith.subf %522, %554 : vector<8x1xf32>
    %560 = math.exp %559 : vector<8x1xf32>
    %561 = arith.subf %527, %554 : vector<8x1xf32>
    %562 = math.exp %561 : vector<8x1xf32>
    %563 = arith.subf %532, %554 : vector<8x1xf32>
    %564 = math.exp %563 : vector<8x1xf32>
    %565 = arith.subf %537, %554 : vector<8x1xf32>
    %566 = math.exp %565 : vector<8x1xf32>
    %567 = arith.subf %542, %554 : vector<8x1xf32>
    %568 = math.exp %567 : vector<8x1xf32>
    %569 = arith.subf %547, %554 : vector<8x1xf32>
    %570 = math.exp %569 : vector<8x1xf32>
    %571 = arith.addf %556, %558 : vector<8x1xf32>
    %572 = arith.addf %571, %560 : vector<8x1xf32>
    %573 = arith.addf %572, %562 : vector<8x1xf32>
    %574 = arith.addf %573, %564 : vector<8x1xf32>
    %575 = arith.addf %574, %566 : vector<8x1xf32>
    %576 = arith.addf %575, %568 : vector<8x1xf32>
    %577 = arith.addf %576, %570 : vector<8x1xf32>
    %cst_126 = arith.constant 1.000000e+00 : f32
    %578 = vector.broadcast %cst_126 : f32 to vector<8x1xf32>
    %579 = arith.divf %578, %577 : vector<8x1xf32>
    %cst_127 = arith.constant 0.000000e+00 : f32
    %580 = vector.broadcast %cst_127 : f32 to vector<8x8xf32>
    %cst_128 = arith.constant 0.000000e+00 : f32
    %581 = vector.broadcast %cst_128 : f32 to vector<8x8xf32>
    %582 = arith.mulf %556, %579 : vector<8x1xf32>
    %583 = vector.extract_strided_slice %500 {offsets = [0, 0], sizes = [8, 8], strides = [1, 1]} : vector<64x8xf32> to vector<8x8xf32>
    %584 = vector.broadcast %582 : vector<8x1xf32> to vector<8x8xf32>
    %585 = arith.mulf %584, %583 : vector<8x8xf32>
    %586 = arith.addf %580, %585 : vector<8x8xf32>
    %587 = vector.extract_strided_slice %501 {offsets = [0, 0], sizes = [8, 8], strides = [1, 1]} : vector<64x8xf32> to vector<8x8xf32>
    %588 = vector.broadcast %582 : vector<8x1xf32> to vector<8x8xf32>
    %589 = arith.mulf %588, %587 : vector<8x8xf32>
    %590 = arith.addf %581, %589 : vector<8x8xf32>
    %591 = arith.mulf %558, %579 : vector<8x1xf32>
    %592 = vector.extract_strided_slice %500 {offsets = [8, 0], sizes = [8, 8], strides = [1, 1]} : vector<64x8xf32> to vector<8x8xf32>
    %593 = vector.broadcast %591 : vector<8x1xf32> to vector<8x8xf32>
    %594 = arith.mulf %593, %592 : vector<8x8xf32>
    %595 = arith.addf %586, %594 : vector<8x8xf32>
    %596 = vector.extract_strided_slice %501 {offsets = [8, 0], sizes = [8, 8], strides = [1, 1]} : vector<64x8xf32> to vector<8x8xf32>
    %597 = vector.broadcast %591 : vector<8x1xf32> to vector<8x8xf32>
    %598 = arith.mulf %597, %596 : vector<8x8xf32>
    %599 = arith.addf %590, %598 : vector<8x8xf32>
    %600 = arith.mulf %560, %579 : vector<8x1xf32>
    %601 = vector.extract_strided_slice %500 {offsets = [16, 0], sizes = [8, 8], strides = [1, 1]} : vector<64x8xf32> to vector<8x8xf32>
    %602 = vector.broadcast %600 : vector<8x1xf32> to vector<8x8xf32>
    %603 = arith.mulf %602, %601 : vector<8x8xf32>
    %604 = arith.addf %595, %603 : vector<8x8xf32>
    %605 = vector.extract_strided_slice %501 {offsets = [16, 0], sizes = [8, 8], strides = [1, 1]} : vector<64x8xf32> to vector<8x8xf32>
    %606 = vector.broadcast %600 : vector<8x1xf32> to vector<8x8xf32>
    %607 = arith.mulf %606, %605 : vector<8x8xf32>
    %608 = arith.addf %599, %607 : vector<8x8xf32>
    %609 = arith.mulf %562, %579 : vector<8x1xf32>
    %610 = vector.extract_strided_slice %500 {offsets = [24, 0], sizes = [8, 8], strides = [1, 1]} : vector<64x8xf32> to vector<8x8xf32>
    %611 = vector.broadcast %609 : vector<8x1xf32> to vector<8x8xf32>
    %612 = arith.mulf %611, %610 : vector<8x8xf32>
    %613 = arith.addf %604, %612 : vector<8x8xf32>
    %614 = vector.extract_strided_slice %501 {offsets = [24, 0], sizes = [8, 8], strides = [1, 1]} : vector<64x8xf32> to vector<8x8xf32>
    %615 = vector.broadcast %609 : vector<8x1xf32> to vector<8x8xf32>
    %616 = arith.mulf %615, %614 : vector<8x8xf32>
    %617 = arith.addf %608, %616 : vector<8x8xf32>
    %618 = arith.mulf %564, %579 : vector<8x1xf32>
    %619 = vector.extract_strided_slice %500 {offsets = [32, 0], sizes = [8, 8], strides = [1, 1]} : vector<64x8xf32> to vector<8x8xf32>
    %620 = vector.broadcast %618 : vector<8x1xf32> to vector<8x8xf32>
    %621 = arith.mulf %620, %619 : vector<8x8xf32>
    %622 = arith.addf %613, %621 : vector<8x8xf32>
    %623 = vector.extract_strided_slice %501 {offsets = [32, 0], sizes = [8, 8], strides = [1, 1]} : vector<64x8xf32> to vector<8x8xf32>
    %624 = vector.broadcast %618 : vector<8x1xf32> to vector<8x8xf32>
    %625 = arith.mulf %624, %623 : vector<8x8xf32>
    %626 = arith.addf %617, %625 : vector<8x8xf32>
    %627 = arith.mulf %566, %579 : vector<8x1xf32>
    %628 = vector.extract_strided_slice %500 {offsets = [40, 0], sizes = [8, 8], strides = [1, 1]} : vector<64x8xf32> to vector<8x8xf32>
    %629 = vector.broadcast %627 : vector<8x1xf32> to vector<8x8xf32>
    %630 = arith.mulf %629, %628 : vector<8x8xf32>
    %631 = arith.addf %622, %630 : vector<8x8xf32>
    %632 = vector.extract_strided_slice %501 {offsets = [40, 0], sizes = [8, 8], strides = [1, 1]} : vector<64x8xf32> to vector<8x8xf32>
    %633 = vector.broadcast %627 : vector<8x1xf32> to vector<8x8xf32>
    %634 = arith.mulf %633, %632 : vector<8x8xf32>
    %635 = arith.addf %626, %634 : vector<8x8xf32>
    %636 = arith.mulf %568, %579 : vector<8x1xf32>
    %637 = vector.extract_strided_slice %500 {offsets = [48, 0], sizes = [8, 8], strides = [1, 1]} : vector<64x8xf32> to vector<8x8xf32>
    %638 = vector.broadcast %636 : vector<8x1xf32> to vector<8x8xf32>
    %639 = arith.mulf %638, %637 : vector<8x8xf32>
    %640 = arith.addf %631, %639 : vector<8x8xf32>
    %641 = vector.extract_strided_slice %501 {offsets = [48, 0], sizes = [8, 8], strides = [1, 1]} : vector<64x8xf32> to vector<8x8xf32>
    %642 = vector.broadcast %636 : vector<8x1xf32> to vector<8x8xf32>
    %643 = arith.mulf %642, %641 : vector<8x8xf32>
    %644 = arith.addf %635, %643 : vector<8x8xf32>
    %645 = arith.mulf %570, %579 : vector<8x1xf32>
    %646 = vector.extract_strided_slice %500 {offsets = [56, 0], sizes = [8, 8], strides = [1, 1]} : vector<64x8xf32> to vector<8x8xf32>
    %647 = vector.broadcast %645 : vector<8x1xf32> to vector<8x8xf32>
    %648 = arith.mulf %647, %646 : vector<8x8xf32>
    %649 = arith.addf %640, %648 : vector<8x8xf32>
    %650 = vector.extract_strided_slice %501 {offsets = [56, 0], sizes = [8, 8], strides = [1, 1]} : vector<64x8xf32> to vector<8x8xf32>
    %651 = vector.broadcast %645 : vector<8x1xf32> to vector<8x8xf32>
    %652 = arith.mulf %651, %650 : vector<8x8xf32>
    %653 = arith.addf %644, %652 : vector<8x8xf32>
    %c0_129 = arith.constant 0 : index
    %c0_130 = arith.constant 0 : index
    %654 = vector.load %arg11[%c0_129, %c0_130] : memref<8x48xf32, #tpu.memory_space<vmem>>, vector<8x48xf32>
    %cst_131 = arith.constant dense<0.000000e+00> : vector<8x48xf32>
    %655 = tpu.matmul %649, %654, %cst_131 {dimension_numbers = #tpu.dot_dimension_numbers<[1], [0], [0], [1], [0, 0, 1, 1], [], []>} : vector<8x8xf32>, vector<8x48xf32>, vector<8x48xf32> -> vector<8x48xf32>
    %c0_132 = arith.constant 0 : index
    %c0_133 = arith.constant 0 : index
    %656 = vector.load %arg12[%c0_132, %c0_133] : memref<8x48xf32, #tpu.memory_space<vmem>>, vector<8x48xf32>
    %cst_134 = arith.constant dense<0.000000e+00> : vector<8x48xf32>
    %657 = tpu.matmul %653, %656, %cst_134 {dimension_numbers = #tpu.dot_dimension_numbers<[1], [0], [0], [1], [0, 0, 1, 1], [], []>} : vector<8x8xf32>, vector<8x48xf32>, vector<8x48xf32> -> vector<8x48xf32>
    %658 = arith.addf %655, %657 : vector<8x48xf32>
    %c0_135 = arith.constant 0 : index
    %c0_136 = arith.constant 0 : index
    %659 = vector.load %arg15[%c0_135, %c0_136] : memref<1x48xf32, #tpu.memory_space<vmem>>, vector<1x48xf32>
    %660 = vector.broadcast %659 : vector<1x48xf32> to vector<8x48xf32>
    %661 = arith.addf %658, %660 : vector<8x48xf32>
    %c0_137 = arith.constant 0 : index
    %c0_138 = arith.constant 0 : index
    %662 = vector.load %arg13[%c0_137, %c0_138] : memref<8x24xf32, #tpu.memory_space<vmem>>, vector<8x24xf32>
    %c0_139 = arith.constant 0 : index
    %c0_140 = arith.constant 0 : index
    %663 = vector.load %arg14[%c0_139, %c0_140] : memref<8x24xf32, #tpu.memory_space<vmem>>, vector<8x24xf32>
    %c0_141 = arith.constant 0 : index
    %c0_142 = arith.constant 0 : index
    %664 = vector.load %arg16[%c0_141, %c0_142] : memref<1x8xf32, #tpu.memory_space<vmem>>, vector<1x8xf32>
    %c0_143 = arith.constant 0 : index
    %c0_144 = arith.constant 0 : index
    %665 = vector.load %arg17[%c0_143, %c0_144] : memref<1x8xf32, #tpu.memory_space<vmem>>, vector<1x8xf32>
    %c0_145 = arith.constant 0 : index
    %c0_146 = arith.constant 0 : index
    %666 = vector.load %arg18[%c0_145, %c0_146] : memref<8x16xf32, #tpu.memory_space<vmem>>, vector<8x16xf32>
    %c0_147 = arith.constant 0 : index
    %c0_148 = arith.constant 0 : index
    %667 = vector.load %arg19[%c0_147, %c0_148] : memref<8x16xf32, #tpu.memory_space<vmem>>, vector<8x16xf32>
    %c0_149 = arith.constant 0 : index
    %c0_150 = arith.constant 0 : index
    %668 = vector.load %arg20[%c0_149, %c0_150] : memref<1x16xf32, #tpu.memory_space<vmem>>, vector<1x16xf32>
    %c0_151 = arith.constant 0 : index
    %c0_152 = arith.constant 0 : index
    %669 = vector.load %arg21[%c0_151, %c0_152] : memref<1x16xf32, #tpu.memory_space<vmem>>, vector<1x16xf32>
    %670 = vector.shape_cast %664 : vector<1x8xf32> to vector<1x8xf32>
    %671 = vector.broadcast %670 : vector<1x8xf32> to vector<2x8xf32>
    %672 = vector.shape_cast %665 : vector<1x8xf32> to vector<1x8xf32>
    %673 = vector.broadcast %672 : vector<1x8xf32> to vector<2x8xf32>
    %cst_153 = arith.constant 0.000000e+00 : f32
    %674 = vector.broadcast %cst_153 : f32 to vector<2x8xf32>
    %cst_154 = arith.constant 0.000000e+00 : f32
    %675 = vector.broadcast %cst_154 : f32 to vector<2x8xf32>
    %676 = vector.extract_strided_slice %661 {offsets = [0, 0], sizes = [2, 48], strides = [1, 1]} : vector<8x48xf32> to vector<2x48xf32>
    %677 = vector.extract_strided_slice %661 {offsets = [6, 0], sizes = [2, 48], strides = [1, 1]} : vector<8x48xf32> to vector<2x48xf32>
    %cst_155 = arith.constant dense<0.000000e+00> : vector<2x24xf32>
    %678 = tpu.matmul %674, %662, %cst_155 {dimension_numbers = #tpu.dot_dimension_numbers<[1], [0], [0], [1], [0, 0, 1, 1], [], []>} : vector<2x8xf32>, vector<8x24xf32>, vector<2x24xf32> -> vector<2x24xf32>
    %cst_156 = arith.constant dense<0.000000e+00> : vector<2x24xf32>
    %679 = tpu.matmul %675, %663, %cst_156 {dimension_numbers = #tpu.dot_dimension_numbers<[1], [0], [0], [1], [0, 0, 1, 1], [], []>} : vector<2x8xf32>, vector<8x24xf32>, vector<2x24xf32> -> vector<2x24xf32>
    %680 = vector.extract_strided_slice %676 {offsets = [0, 0], sizes = [2, 8], strides = [1, 1]} : vector<2x48xf32> to vector<2x8xf32>
    %681 = vector.extract_strided_slice %678 {offsets = [0, 0], sizes = [2, 8], strides = [1, 1]} : vector<2x24xf32> to vector<2x8xf32>
    %682 = arith.addf %680, %681 : vector<2x8xf32>
    %683 = arith.negf %682 : vector<2x8xf32>
    %684 = math.exp %683 : vector<2x8xf32>
    %cst_157 = arith.constant 1.000000e+00 : f32
    %685 = vector.broadcast %cst_157 : f32 to vector<2x8xf32>
    %686 = arith.addf %685, %684 : vector<2x8xf32>
    %687 = arith.divf %685, %686 : vector<2x8xf32>
    %688 = vector.extract_strided_slice %676 {offsets = [0, 8], sizes = [2, 8], strides = [1, 1]} : vector<2x48xf32> to vector<2x8xf32>
    %689 = vector.extract_strided_slice %678 {offsets = [0, 8], sizes = [2, 8], strides = [1, 1]} : vector<2x24xf32> to vector<2x8xf32>
    %690 = arith.addf %688, %689 : vector<2x8xf32>
    %691 = arith.negf %690 : vector<2x8xf32>
    %692 = math.exp %691 : vector<2x8xf32>
    %cst_158 = arith.constant 1.000000e+00 : f32
    %693 = vector.broadcast %cst_158 : f32 to vector<2x8xf32>
    %694 = arith.addf %693, %692 : vector<2x8xf32>
    %695 = arith.divf %693, %694 : vector<2x8xf32>
    %696 = vector.extract_strided_slice %676 {offsets = [0, 16], sizes = [2, 8], strides = [1, 1]} : vector<2x48xf32> to vector<2x8xf32>
    %697 = vector.extract_strided_slice %678 {offsets = [0, 16], sizes = [2, 8], strides = [1, 1]} : vector<2x24xf32> to vector<2x8xf32>
    %698 = arith.addf %697, %671 : vector<2x8xf32>
    %699 = arith.mulf %687, %698 : vector<2x8xf32>
    %700 = arith.addf %696, %699 : vector<2x8xf32>
    %701 = math.tanh %700 : vector<2x8xf32>
    %cst_159 = arith.constant 1.000000e+00 : f32
    %702 = vector.broadcast %cst_159 : f32 to vector<2x8xf32>
    %703 = arith.subf %702, %695 : vector<2x8xf32>
    %704 = arith.mulf %703, %701 : vector<2x8xf32>
    %705 = arith.mulf %695, %674 : vector<2x8xf32>
    %706 = arith.addf %704, %705 : vector<2x8xf32>
    %707 = vector.extract_strided_slice %677 {offsets = [0, 24], sizes = [2, 8], strides = [1, 1]} : vector<2x48xf32> to vector<2x8xf32>
    %708 = vector.extract_strided_slice %679 {offsets = [0, 0], sizes = [2, 8], strides = [1, 1]} : vector<2x24xf32> to vector<2x8xf32>
    %709 = arith.addf %707, %708 : vector<2x8xf32>
    %710 = arith.negf %709 : vector<2x8xf32>
    %711 = math.exp %710 : vector<2x8xf32>
    %cst_160 = arith.constant 1.000000e+00 : f32
    %712 = vector.broadcast %cst_160 : f32 to vector<2x8xf32>
    %713 = arith.addf %712, %711 : vector<2x8xf32>
    %714 = arith.divf %712, %713 : vector<2x8xf32>
    %715 = vector.extract_strided_slice %677 {offsets = [0, 32], sizes = [2, 8], strides = [1, 1]} : vector<2x48xf32> to vector<2x8xf32>
    %716 = vector.extract_strided_slice %679 {offsets = [0, 8], sizes = [2, 8], strides = [1, 1]} : vector<2x24xf32> to vector<2x8xf32>
    %717 = arith.addf %715, %716 : vector<2x8xf32>
    %718 = arith.negf %717 : vector<2x8xf32>
    %719 = math.exp %718 : vector<2x8xf32>
    %cst_161 = arith.constant 1.000000e+00 : f32
    %720 = vector.broadcast %cst_161 : f32 to vector<2x8xf32>
    %721 = arith.addf %720, %719 : vector<2x8xf32>
    %722 = arith.divf %720, %721 : vector<2x8xf32>
    %723 = vector.extract_strided_slice %677 {offsets = [0, 40], sizes = [2, 8], strides = [1, 1]} : vector<2x48xf32> to vector<2x8xf32>
    %724 = vector.extract_strided_slice %679 {offsets = [0, 16], sizes = [2, 8], strides = [1, 1]} : vector<2x24xf32> to vector<2x8xf32>
    %725 = arith.addf %724, %673 : vector<2x8xf32>
    %726 = arith.mulf %714, %725 : vector<2x8xf32>
    %727 = arith.addf %723, %726 : vector<2x8xf32>
    %728 = math.tanh %727 : vector<2x8xf32>
    %cst_162 = arith.constant 1.000000e+00 : f32
    %729 = vector.broadcast %cst_162 : f32 to vector<2x8xf32>
    %730 = arith.subf %729, %722 : vector<2x8xf32>
    %731 = arith.mulf %730, %728 : vector<2x8xf32>
    %732 = arith.mulf %722, %675 : vector<2x8xf32>
    %733 = arith.addf %731, %732 : vector<2x8xf32>
    %c0_163 = arith.constant 0 : index
    %c0_164 = arith.constant 0 : index
    %734 = vector.load %arg28[%c0_163, %c0_164] : memref<8x8xf32, #tpu.memory_space<vmem>>, vector<2x8xf32>
    tpu.vector_store %arg28[%c0_163, %c0_164], %706 {strides = array<i32>} : memref<8x8xf32, #tpu.memory_space<vmem>>, vector<2x8xf32>,
    %c6 = arith.constant 6 : index
    %c0_165 = arith.constant 0 : index
    %735 = vector.load %arg29[%c6, %c0_165] : memref<8x8xf32, #tpu.memory_space<vmem>>, vector<2x8xf32>
    tpu.vector_store %arg29[%c6, %c0_165], %733 {strides = array<i32>} : memref<8x8xf32, #tpu.memory_space<vmem>>, vector<2x8xf32>,
    %736 = vector.extract_strided_slice %661 {offsets = [2, 0], sizes = [2, 48], strides = [1, 1]} : vector<8x48xf32> to vector<2x48xf32>
    %737 = vector.extract_strided_slice %661 {offsets = [4, 0], sizes = [2, 48], strides = [1, 1]} : vector<8x48xf32> to vector<2x48xf32>
    %cst_166 = arith.constant dense<0.000000e+00> : vector<2x24xf32>
    %738 = tpu.matmul %706, %662, %cst_166 {dimension_numbers = #tpu.dot_dimension_numbers<[1], [0], [0], [1], [0, 0, 1, 1], [], []>} : vector<2x8xf32>, vector<8x24xf32>, vector<2x24xf32> -> vector<2x24xf32>
    %cst_167 = arith.constant dense<0.000000e+00> : vector<2x24xf32>
    %739 = tpu.matmul %733, %663, %cst_167 {dimension_numbers = #tpu.dot_dimension_numbers<[1], [0], [0], [1], [0, 0, 1, 1], [], []>} : vector<2x8xf32>, vector<8x24xf32>, vector<2x24xf32> -> vector<2x24xf32>
    %740 = vector.extract_strided_slice %736 {offsets = [0, 0], sizes = [2, 8], strides = [1, 1]} : vector<2x48xf32> to vector<2x8xf32>
    %741 = vector.extract_strided_slice %738 {offsets = [0, 0], sizes = [2, 8], strides = [1, 1]} : vector<2x24xf32> to vector<2x8xf32>
    %742 = arith.addf %740, %741 : vector<2x8xf32>
    %743 = arith.negf %742 : vector<2x8xf32>
    %744 = math.exp %743 : vector<2x8xf32>
    %cst_168 = arith.constant 1.000000e+00 : f32
    %745 = vector.broadcast %cst_168 : f32 to vector<2x8xf32>
    %746 = arith.addf %745, %744 : vector<2x8xf32>
    %747 = arith.divf %745, %746 : vector<2x8xf32>
    %748 = vector.extract_strided_slice %736 {offsets = [0, 8], sizes = [2, 8], strides = [1, 1]} : vector<2x48xf32> to vector<2x8xf32>
    %749 = vector.extract_strided_slice %738 {offsets = [0, 8], sizes = [2, 8], strides = [1, 1]} : vector<2x24xf32> to vector<2x8xf32>
    %750 = arith.addf %748, %749 : vector<2x8xf32>
    %751 = arith.negf %750 : vector<2x8xf32>
    %752 = math.exp %751 : vector<2x8xf32>
    %cst_169 = arith.constant 1.000000e+00 : f32
    %753 = vector.broadcast %cst_169 : f32 to vector<2x8xf32>
    %754 = arith.addf %753, %752 : vector<2x8xf32>
    %755 = arith.divf %753, %754 : vector<2x8xf32>
    %756 = vector.extract_strided_slice %736 {offsets = [0, 16], sizes = [2, 8], strides = [1, 1]} : vector<2x48xf32> to vector<2x8xf32>
    %757 = vector.extract_strided_slice %738 {offsets = [0, 16], sizes = [2, 8], strides = [1, 1]} : vector<2x24xf32> to vector<2x8xf32>
    %758 = arith.addf %757, %671 : vector<2x8xf32>
    %759 = arith.mulf %747, %758 : vector<2x8xf32>
    %760 = arith.addf %756, %759 : vector<2x8xf32>
    %761 = math.tanh %760 : vector<2x8xf32>
    %cst_170 = arith.constant 1.000000e+00 : f32
    %762 = vector.broadcast %cst_170 : f32 to vector<2x8xf32>
    %763 = arith.subf %762, %755 : vector<2x8xf32>
    %764 = arith.mulf %763, %761 : vector<2x8xf32>
    %765 = arith.mulf %755, %706 : vector<2x8xf32>
    %766 = arith.addf %764, %765 : vector<2x8xf32>
    %767 = vector.extract_strided_slice %737 {offsets = [0, 24], sizes = [2, 8], strides = [1, 1]} : vector<2x48xf32> to vector<2x8xf32>
    %768 = vector.extract_strided_slice %739 {offsets = [0, 0], sizes = [2, 8], strides = [1, 1]} : vector<2x24xf32> to vector<2x8xf32>
    %769 = arith.addf %767, %768 : vector<2x8xf32>
    %770 = arith.negf %769 : vector<2x8xf32>
    %771 = math.exp %770 : vector<2x8xf32>
    %cst_171 = arith.constant 1.000000e+00 : f32
    %772 = vector.broadcast %cst_171 : f32 to vector<2x8xf32>
    %773 = arith.addf %772, %771 : vector<2x8xf32>
    %774 = arith.divf %772, %773 : vector<2x8xf32>
    %775 = vector.extract_strided_slice %737 {offsets = [0, 32], sizes = [2, 8], strides = [1, 1]} : vector<2x48xf32> to vector<2x8xf32>
    %776 = vector.extract_strided_slice %739 {offsets = [0, 8], sizes = [2, 8], strides = [1, 1]} : vector<2x24xf32> to vector<2x8xf32>
    %777 = arith.addf %775, %776 : vector<2x8xf32>
    %778 = arith.negf %777 : vector<2x8xf32>
    %779 = math.exp %778 : vector<2x8xf32>
    %cst_172 = arith.constant 1.000000e+00 : f32
    %780 = vector.broadcast %cst_172 : f32 to vector<2x8xf32>
    %781 = arith.addf %780, %779 : vector<2x8xf32>
    %782 = arith.divf %780, %781 : vector<2x8xf32>
    %783 = vector.extract_strided_slice %737 {offsets = [0, 40], sizes = [2, 8], strides = [1, 1]} : vector<2x48xf32> to vector<2x8xf32>
    %784 = vector.extract_strided_slice %739 {offsets = [0, 16], sizes = [2, 8], strides = [1, 1]} : vector<2x24xf32> to vector<2x8xf32>
    %785 = arith.addf %784, %673 : vector<2x8xf32>
    %786 = arith.mulf %774, %785 : vector<2x8xf32>
    %787 = arith.addf %783, %786 : vector<2x8xf32>
    %788 = math.tanh %787 : vector<2x8xf32>
    %cst_173 = arith.constant 1.000000e+00 : f32
    %789 = vector.broadcast %cst_173 : f32 to vector<2x8xf32>
    %790 = arith.subf %789, %782 : vector<2x8xf32>
    %791 = arith.mulf %790, %788 : vector<2x8xf32>
    %792 = arith.mulf %782, %733 : vector<2x8xf32>
    %793 = arith.addf %791, %792 : vector<2x8xf32>
    %c2 = arith.constant 2 : index
    %c0_174 = arith.constant 0 : index
    %794 = vector.load %arg28[%c2, %c0_174] : memref<8x8xf32, #tpu.memory_space<vmem>>, vector<2x8xf32>
    tpu.vector_store %arg28[%c2, %c0_174], %766 {strides = array<i32>} : memref<8x8xf32, #tpu.memory_space<vmem>>, vector<2x8xf32>,
    %c4 = arith.constant 4 : index
    %c0_175 = arith.constant 0 : index
    %795 = vector.load %arg29[%c4, %c0_175] : memref<8x8xf32, #tpu.memory_space<vmem>>, vector<2x8xf32>
    tpu.vector_store %arg29[%c4, %c0_175], %793 {strides = array<i32>} : memref<8x8xf32, #tpu.memory_space<vmem>>, vector<2x8xf32>,
    %796 = vector.extract_strided_slice %661 {offsets = [4, 0], sizes = [2, 48], strides = [1, 1]} : vector<8x48xf32> to vector<2x48xf32>
    %797 = vector.extract_strided_slice %661 {offsets = [2, 0], sizes = [2, 48], strides = [1, 1]} : vector<8x48xf32> to vector<2x48xf32>
    %cst_176 = arith.constant dense<0.000000e+00> : vector<2x24xf32>
    %798 = tpu.matmul %766, %662, %cst_176 {dimension_numbers = #tpu.dot_dimension_numbers<[1], [0], [0], [1], [0, 0, 1, 1], [], []>} : vector<2x8xf32>, vector<8x24xf32>, vector<2x24xf32> -> vector<2x24xf32>
    %cst_177 = arith.constant dense<0.000000e+00> : vector<2x24xf32>
    %799 = tpu.matmul %793, %663, %cst_177 {dimension_numbers = #tpu.dot_dimension_numbers<[1], [0], [0], [1], [0, 0, 1, 1], [], []>} : vector<2x8xf32>, vector<8x24xf32>, vector<2x24xf32> -> vector<2x24xf32>
    %800 = vector.extract_strided_slice %796 {offsets = [0, 0], sizes = [2, 8], strides = [1, 1]} : vector<2x48xf32> to vector<2x8xf32>
    %801 = vector.extract_strided_slice %798 {offsets = [0, 0], sizes = [2, 8], strides = [1, 1]} : vector<2x24xf32> to vector<2x8xf32>
    %802 = arith.addf %800, %801 : vector<2x8xf32>
    %803 = arith.negf %802 : vector<2x8xf32>
    %804 = math.exp %803 : vector<2x8xf32>
    %cst_178 = arith.constant 1.000000e+00 : f32
    %805 = vector.broadcast %cst_178 : f32 to vector<2x8xf32>
    %806 = arith.addf %805, %804 : vector<2x8xf32>
    %807 = arith.divf %805, %806 : vector<2x8xf32>
    %808 = vector.extract_strided_slice %796 {offsets = [0, 8], sizes = [2, 8], strides = [1, 1]} : vector<2x48xf32> to vector<2x8xf32>
    %809 = vector.extract_strided_slice %798 {offsets = [0, 8], sizes = [2, 8], strides = [1, 1]} : vector<2x24xf32> to vector<2x8xf32>
    %810 = arith.addf %808, %809 : vector<2x8xf32>
    %811 = arith.negf %810 : vector<2x8xf32>
    %812 = math.exp %811 : vector<2x8xf32>
    %cst_179 = arith.constant 1.000000e+00 : f32
    %813 = vector.broadcast %cst_179 : f32 to vector<2x8xf32>
    %814 = arith.addf %813, %812 : vector<2x8xf32>
    %815 = arith.divf %813, %814 : vector<2x8xf32>
    %816 = vector.extract_strided_slice %796 {offsets = [0, 16], sizes = [2, 8], strides = [1, 1]} : vector<2x48xf32> to vector<2x8xf32>
    %817 = vector.extract_strided_slice %798 {offsets = [0, 16], sizes = [2, 8], strides = [1, 1]} : vector<2x24xf32> to vector<2x8xf32>
    %818 = arith.addf %817, %671 : vector<2x8xf32>
    %819 = arith.mulf %807, %818 : vector<2x8xf32>
    %820 = arith.addf %816, %819 : vector<2x8xf32>
    %821 = math.tanh %820 : vector<2x8xf32>
    %cst_180 = arith.constant 1.000000e+00 : f32
    %822 = vector.broadcast %cst_180 : f32 to vector<2x8xf32>
    %823 = arith.subf %822, %815 : vector<2x8xf32>
    %824 = arith.mulf %823, %821 : vector<2x8xf32>
    %825 = arith.mulf %815, %766 : vector<2x8xf32>
    %826 = arith.addf %824, %825 : vector<2x8xf32>
    %827 = vector.extract_strided_slice %797 {offsets = [0, 24], sizes = [2, 8], strides = [1, 1]} : vector<2x48xf32> to vector<2x8xf32>
    %828 = vector.extract_strided_slice %799 {offsets = [0, 0], sizes = [2, 8], strides = [1, 1]} : vector<2x24xf32> to vector<2x8xf32>
    %829 = arith.addf %827, %828 : vector<2x8xf32>
    %830 = arith.negf %829 : vector<2x8xf32>
    %831 = math.exp %830 : vector<2x8xf32>
    %cst_181 = arith.constant 1.000000e+00 : f32
    %832 = vector.broadcast %cst_181 : f32 to vector<2x8xf32>
    %833 = arith.addf %832, %831 : vector<2x8xf32>
    %834 = arith.divf %832, %833 : vector<2x8xf32>
    %835 = vector.extract_strided_slice %797 {offsets = [0, 32], sizes = [2, 8], strides = [1, 1]} : vector<2x48xf32> to vector<2x8xf32>
    %836 = vector.extract_strided_slice %799 {offsets = [0, 8], sizes = [2, 8], strides = [1, 1]} : vector<2x24xf32> to vector<2x8xf32>
    %837 = arith.addf %835, %836 : vector<2x8xf32>
    %838 = arith.negf %837 : vector<2x8xf32>
    %839 = math.exp %838 : vector<2x8xf32>
    %cst_182 = arith.constant 1.000000e+00 : f32
    %840 = vector.broadcast %cst_182 : f32 to vector<2x8xf32>
    %841 = arith.addf %840, %839 : vector<2x8xf32>
    %842 = arith.divf %840, %841 : vector<2x8xf32>
    %843 = vector.extract_strided_slice %797 {offsets = [0, 40], sizes = [2, 8], strides = [1, 1]} : vector<2x48xf32> to vector<2x8xf32>
    %844 = vector.extract_strided_slice %799 {offsets = [0, 16], sizes = [2, 8], strides = [1, 1]} : vector<2x24xf32> to vector<2x8xf32>
    %845 = arith.addf %844, %673 : vector<2x8xf32>
    %846 = arith.mulf %834, %845 : vector<2x8xf32>
    %847 = arith.addf %843, %846 : vector<2x8xf32>
    %848 = math.tanh %847 : vector<2x8xf32>
    %cst_183 = arith.constant 1.000000e+00 : f32
    %849 = vector.broadcast %cst_183 : f32 to vector<2x8xf32>
    %850 = arith.subf %849, %842 : vector<2x8xf32>
    %851 = arith.mulf %850, %848 : vector<2x8xf32>
    %852 = arith.mulf %842, %793 : vector<2x8xf32>
    %853 = arith.addf %851, %852 : vector<2x8xf32>
    %c4_184 = arith.constant 4 : index
    %c0_185 = arith.constant 0 : index
    %854 = vector.load %arg28[%c4_184, %c0_185] : memref<8x8xf32, #tpu.memory_space<vmem>>, vector<2x8xf32>
    tpu.vector_store %arg28[%c4_184, %c0_185], %826 {strides = array<i32>} : memref<8x8xf32, #tpu.memory_space<vmem>>, vector<2x8xf32>,
    %c2_186 = arith.constant 2 : index
    %c0_187 = arith.constant 0 : index
    %855 = vector.load %arg29[%c2_186, %c0_187] : memref<8x8xf32, #tpu.memory_space<vmem>>, vector<2x8xf32>
    tpu.vector_store %arg29[%c2_186, %c0_187], %853 {strides = array<i32>} : memref<8x8xf32, #tpu.memory_space<vmem>>, vector<2x8xf32>,
    %856 = vector.extract_strided_slice %661 {offsets = [6, 0], sizes = [2, 48], strides = [1, 1]} : vector<8x48xf32> to vector<2x48xf32>
    %857 = vector.extract_strided_slice %661 {offsets = [0, 0], sizes = [2, 48], strides = [1, 1]} : vector<8x48xf32> to vector<2x48xf32>
    %cst_188 = arith.constant dense<0.000000e+00> : vector<2x24xf32>
    %858 = tpu.matmul %826, %662, %cst_188 {dimension_numbers = #tpu.dot_dimension_numbers<[1], [0], [0], [1], [0, 0, 1, 1], [], []>} : vector<2x8xf32>, vector<8x24xf32>, vector<2x24xf32> -> vector<2x24xf32>
    %cst_189 = arith.constant dense<0.000000e+00> : vector<2x24xf32>
    %859 = tpu.matmul %853, %663, %cst_189 {dimension_numbers = #tpu.dot_dimension_numbers<[1], [0], [0], [1], [0, 0, 1, 1], [], []>} : vector<2x8xf32>, vector<8x24xf32>, vector<2x24xf32> -> vector<2x24xf32>
    %860 = vector.extract_strided_slice %856 {offsets = [0, 0], sizes = [2, 8], strides = [1, 1]} : vector<2x48xf32> to vector<2x8xf32>
    %861 = vector.extract_strided_slice %858 {offsets = [0, 0], sizes = [2, 8], strides = [1, 1]} : vector<2x24xf32> to vector<2x8xf32>
    %862 = arith.addf %860, %861 : vector<2x8xf32>
    %863 = arith.negf %862 : vector<2x8xf32>
    %864 = math.exp %863 : vector<2x8xf32>
    %cst_190 = arith.constant 1.000000e+00 : f32
    %865 = vector.broadcast %cst_190 : f32 to vector<2x8xf32>
    %866 = arith.addf %865, %864 : vector<2x8xf32>
    %867 = arith.divf %865, %866 : vector<2x8xf32>
    %868 = vector.extract_strided_slice %856 {offsets = [0, 8], sizes = [2, 8], strides = [1, 1]} : vector<2x48xf32> to vector<2x8xf32>
    %869 = vector.extract_strided_slice %858 {offsets = [0, 8], sizes = [2, 8], strides = [1, 1]} : vector<2x24xf32> to vector<2x8xf32>
    %870 = arith.addf %868, %869 : vector<2x8xf32>
    %871 = arith.negf %870 : vector<2x8xf32>
    %872 = math.exp %871 : vector<2x8xf32>
    %cst_191 = arith.constant 1.000000e+00 : f32
    %873 = vector.broadcast %cst_191 : f32 to vector<2x8xf32>
    %874 = arith.addf %873, %872 : vector<2x8xf32>
    %875 = arith.divf %873, %874 : vector<2x8xf32>
    %876 = vector.extract_strided_slice %856 {offsets = [0, 16], sizes = [2, 8], strides = [1, 1]} : vector<2x48xf32> to vector<2x8xf32>
    %877 = vector.extract_strided_slice %858 {offsets = [0, 16], sizes = [2, 8], strides = [1, 1]} : vector<2x24xf32> to vector<2x8xf32>
    %878 = arith.addf %877, %671 : vector<2x8xf32>
    %879 = arith.mulf %867, %878 : vector<2x8xf32>
    %880 = arith.addf %876, %879 : vector<2x8xf32>
    %881 = math.tanh %880 : vector<2x8xf32>
    %cst_192 = arith.constant 1.000000e+00 : f32
    %882 = vector.broadcast %cst_192 : f32 to vector<2x8xf32>
    %883 = arith.subf %882, %875 : vector<2x8xf32>
    %884 = arith.mulf %883, %881 : vector<2x8xf32>
    %885 = arith.mulf %875, %826 : vector<2x8xf32>
    %886 = arith.addf %884, %885 : vector<2x8xf32>
    %887 = vector.extract_strided_slice %857 {offsets = [0, 24], sizes = [2, 8], strides = [1, 1]} : vector<2x48xf32> to vector<2x8xf32>
    %888 = vector.extract_strided_slice %859 {offsets = [0, 0], sizes = [2, 8], strides = [1, 1]} : vector<2x24xf32> to vector<2x8xf32>
    %889 = arith.addf %887, %888 : vector<2x8xf32>
    %890 = arith.negf %889 : vector<2x8xf32>
    %891 = math.exp %890 : vector<2x8xf32>
    %cst_193 = arith.constant 1.000000e+00 : f32
    %892 = vector.broadcast %cst_193 : f32 to vector<2x8xf32>
    %893 = arith.addf %892, %891 : vector<2x8xf32>
    %894 = arith.divf %892, %893 : vector<2x8xf32>
    %895 = vector.extract_strided_slice %857 {offsets = [0, 32], sizes = [2, 8], strides = [1, 1]} : vector<2x48xf32> to vector<2x8xf32>
    %896 = vector.extract_strided_slice %859 {offsets = [0, 8], sizes = [2, 8], strides = [1, 1]} : vector<2x24xf32> to vector<2x8xf32>
    %897 = arith.addf %895, %896 : vector<2x8xf32>
    %898 = arith.negf %897 : vector<2x8xf32>
    %899 = math.exp %898 : vector<2x8xf32>
    %cst_194 = arith.constant 1.000000e+00 : f32
    %900 = vector.broadcast %cst_194 : f32 to vector<2x8xf32>
    %901 = arith.addf %900, %899 : vector<2x8xf32>
    %902 = arith.divf %900, %901 : vector<2x8xf32>
    %903 = vector.extract_strided_slice %857 {offsets = [0, 40], sizes = [2, 8], strides = [1, 1]} : vector<2x48xf32> to vector<2x8xf32>
    %904 = vector.extract_strided_slice %859 {offsets = [0, 16], sizes = [2, 8], strides = [1, 1]} : vector<2x24xf32> to vector<2x8xf32>
    %905 = arith.addf %904, %673 : vector<2x8xf32>
    %906 = arith.mulf %894, %905 : vector<2x8xf32>
    %907 = arith.addf %903, %906 : vector<2x8xf32>
    %908 = math.tanh %907 : vector<2x8xf32>
    %cst_195 = arith.constant 1.000000e+00 : f32
    %909 = vector.broadcast %cst_195 : f32 to vector<2x8xf32>
    %910 = arith.subf %909, %902 : vector<2x8xf32>
    %911 = arith.mulf %910, %908 : vector<2x8xf32>
    %912 = arith.mulf %902, %853 : vector<2x8xf32>
    %913 = arith.addf %911, %912 : vector<2x8xf32>
    %c6_196 = arith.constant 6 : index
    %c0_197 = arith.constant 0 : index
    %914 = vector.load %arg28[%c6_196, %c0_197] : memref<8x8xf32, #tpu.memory_space<vmem>>, vector<2x8xf32>
    tpu.vector_store %arg28[%c6_196, %c0_197], %886 {strides = array<i32>} : memref<8x8xf32, #tpu.memory_space<vmem>>, vector<2x8xf32>,
    %c0_198 = arith.constant 0 : index
    %c0_199 = arith.constant 0 : index
    %915 = vector.load %arg29[%c0_198, %c0_199] : memref<8x8xf32, #tpu.memory_space<vmem>>, vector<2x8xf32>
    tpu.vector_store %arg29[%c0_198, %c0_199], %913 {strides = array<i32>} : memref<8x8xf32, #tpu.memory_space<vmem>>, vector<2x8xf32>,
    %c0_200 = arith.constant 0 : index
    %c0_201 = arith.constant 0 : index
    %916 = vector.load %arg28[%c0_200, %c0_201] : memref<8x8xf32, #tpu.memory_space<vmem>>, vector<8x8xf32>
    %c0_202 = arith.constant 0 : index
    %c0_203 = arith.constant 0 : index
    %917 = vector.load %arg29[%c0_202, %c0_203] : memref<8x8xf32, #tpu.memory_space<vmem>>, vector<8x8xf32>
    %cst_204 = arith.constant dense<0.000000e+00> : vector<8x16xf32>
    %918 = tpu.matmul %916, %666, %cst_204 {dimension_numbers = #tpu.dot_dimension_numbers<[1], [0], [0], [1], [0, 0, 1, 1], [], []>} : vector<8x8xf32>, vector<8x16xf32>, vector<8x16xf32> -> vector<8x16xf32>
    %cst_205 = arith.constant dense<0.000000e+00> : vector<8x16xf32>
    %919 = tpu.matmul %917, %667, %cst_205 {dimension_numbers = #tpu.dot_dimension_numbers<[1], [0], [0], [1], [0, 0, 1, 1], [], []>} : vector<8x8xf32>, vector<8x16xf32>, vector<8x16xf32> -> vector<8x16xf32>
    %920 = arith.addf %918, %919 : vector<8x16xf32>
    %921 = vector.broadcast %668 : vector<1x16xf32> to vector<8x16xf32>
    %922 = arith.addf %920, %921 : vector<8x16xf32>
    %923 = math.tanh %922 : vector<8x16xf32>
    %924 = vector.extract_strided_slice %923 {offsets = [0, 0], sizes = [2, 16], strides = [1, 1]} : vector<8x16xf32> to vector<2x16xf32>
    %925 = vector.broadcast %669 : vector<1x16xf32> to vector<2x16xf32>
    %926 = arith.mulf %924, %925 : vector<2x16xf32>
    %cst_206 = arith.constant dense<0.000000e+00> : vector<2xf32>
    %927 = vector.multi_reduction <add>, %926, %cst_206 [1] : vector<2x16xf32> to vector<2xf32>
    %928 = vector.shape_cast %927 : vector<2xf32> to vector<2x1xf32>
    %929 = vector.extract_strided_slice %923 {offsets = [2, 0], sizes = [2, 16], strides = [1, 1]} : vector<8x16xf32> to vector<2x16xf32>
    %930 = vector.broadcast %669 : vector<1x16xf32> to vector<2x16xf32>
    %931 = arith.mulf %929, %930 : vector<2x16xf32>
    %cst_207 = arith.constant dense<0.000000e+00> : vector<2xf32>
    %932 = vector.multi_reduction <add>, %931, %cst_207 [1] : vector<2x16xf32> to vector<2xf32>
    %933 = vector.shape_cast %932 : vector<2xf32> to vector<2x1xf32>
    %934 = vector.extract_strided_slice %923 {offsets = [4, 0], sizes = [2, 16], strides = [1, 1]} : vector<8x16xf32> to vector<2x16xf32>
    %935 = vector.broadcast %669 : vector<1x16xf32> to vector<2x16xf32>
    %936 = arith.mulf %934, %935 : vector<2x16xf32>
    %cst_208 = arith.constant dense<0.000000e+00> : vector<2xf32>
    %937 = vector.multi_reduction <add>, %936, %cst_208 [1] : vector<2x16xf32> to vector<2xf32>
    %938 = vector.shape_cast %937 : vector<2xf32> to vector<2x1xf32>
    %939 = vector.extract_strided_slice %923 {offsets = [6, 0], sizes = [2, 16], strides = [1, 1]} : vector<8x16xf32> to vector<2x16xf32>
    %940 = vector.broadcast %669 : vector<1x16xf32> to vector<2x16xf32>
    %941 = arith.mulf %939, %940 : vector<2x16xf32>
    %cst_209 = arith.constant dense<0.000000e+00> : vector<2xf32>
    %942 = vector.multi_reduction <add>, %941, %cst_209 [1] : vector<2x16xf32> to vector<2xf32>
    %943 = vector.shape_cast %942 : vector<2xf32> to vector<2x1xf32>
    %944 = arith.maximumf %928, %933 : vector<2x1xf32>
    %945 = arith.maximumf %944, %938 : vector<2x1xf32>
    %946 = arith.maximumf %945, %943 : vector<2x1xf32>
    %947 = arith.subf %928, %946 : vector<2x1xf32>
    %948 = math.exp %947 : vector<2x1xf32>
    %949 = arith.subf %933, %946 : vector<2x1xf32>
    %950 = math.exp %949 : vector<2x1xf32>
    %951 = arith.subf %938, %946 : vector<2x1xf32>
    %952 = math.exp %951 : vector<2x1xf32>
    %953 = arith.subf %943, %946 : vector<2x1xf32>
    %954 = math.exp %953 : vector<2x1xf32>
    %955 = arith.addf %948, %950 : vector<2x1xf32>
    %956 = arith.addf %955, %952 : vector<2x1xf32>
    %957 = arith.addf %956, %954 : vector<2x1xf32>
    %cst_210 = arith.constant 1.000000e+00 : f32
    %958 = vector.broadcast %cst_210 : f32 to vector<2x1xf32>
    %959 = arith.divf %958, %957 : vector<2x1xf32>
    %cst_211 = arith.constant 0.000000e+00 : f32
    %960 = vector.broadcast %cst_211 : f32 to vector<2x8xf32>
    %cst_212 = arith.constant 0.000000e+00 : f32
    %961 = vector.broadcast %cst_212 : f32 to vector<2x8xf32>
    %962 = arith.mulf %948, %959 : vector<2x1xf32>
    %963 = vector.extract_strided_slice %916 {offsets = [0, 0], sizes = [2, 8], strides = [1, 1]} : vector<8x8xf32> to vector<2x8xf32>
    %964 = vector.broadcast %962 : vector<2x1xf32> to vector<2x8xf32>
    %965 = arith.mulf %964, %963 : vector<2x8xf32>
    %966 = arith.addf %960, %965 : vector<2x8xf32>
    %967 = vector.extract_strided_slice %917 {offsets = [0, 0], sizes = [2, 8], strides = [1, 1]} : vector<8x8xf32> to vector<2x8xf32>
    %968 = vector.broadcast %962 : vector<2x1xf32> to vector<2x8xf32>
    %969 = arith.mulf %968, %967 : vector<2x8xf32>
    %970 = arith.addf %961, %969 : vector<2x8xf32>
    %971 = arith.mulf %950, %959 : vector<2x1xf32>
    %972 = vector.extract_strided_slice %916 {offsets = [2, 0], sizes = [2, 8], strides = [1, 1]} : vector<8x8xf32> to vector<2x8xf32>
    %973 = vector.broadcast %971 : vector<2x1xf32> to vector<2x8xf32>
    %974 = arith.mulf %973, %972 : vector<2x8xf32>
    %975 = arith.addf %966, %974 : vector<2x8xf32>
    %976 = vector.extract_strided_slice %917 {offsets = [2, 0], sizes = [2, 8], strides = [1, 1]} : vector<8x8xf32> to vector<2x8xf32>
    %977 = vector.broadcast %971 : vector<2x1xf32> to vector<2x8xf32>
    %978 = arith.mulf %977, %976 : vector<2x8xf32>
    %979 = arith.addf %970, %978 : vector<2x8xf32>
    %980 = arith.mulf %952, %959 : vector<2x1xf32>
    %981 = vector.extract_strided_slice %916 {offsets = [4, 0], sizes = [2, 8], strides = [1, 1]} : vector<8x8xf32> to vector<2x8xf32>
    %982 = vector.broadcast %980 : vector<2x1xf32> to vector<2x8xf32>
    %983 = arith.mulf %982, %981 : vector<2x8xf32>
    %984 = arith.addf %975, %983 : vector<2x8xf32>
    %985 = vector.extract_strided_slice %917 {offsets = [4, 0], sizes = [2, 8], strides = [1, 1]} : vector<8x8xf32> to vector<2x8xf32>
    %986 = vector.broadcast %980 : vector<2x1xf32> to vector<2x8xf32>
    %987 = arith.mulf %986, %985 : vector<2x8xf32>
    %988 = arith.addf %979, %987 : vector<2x8xf32>
    %989 = arith.mulf %954, %959 : vector<2x1xf32>
    %990 = vector.extract_strided_slice %916 {offsets = [6, 0], sizes = [2, 8], strides = [1, 1]} : vector<8x8xf32> to vector<2x8xf32>
    %991 = vector.broadcast %989 : vector<2x1xf32> to vector<2x8xf32>
    %992 = arith.mulf %991, %990 : vector<2x8xf32>
    %993 = arith.addf %984, %992 : vector<2x8xf32>
    %994 = vector.extract_strided_slice %917 {offsets = [6, 0], sizes = [2, 8], strides = [1, 1]} : vector<8x8xf32> to vector<2x8xf32>
    %995 = vector.broadcast %989 : vector<2x1xf32> to vector<2x8xf32>
    %996 = arith.mulf %995, %994 : vector<2x8xf32>
    %997 = arith.addf %988, %996 : vector<2x8xf32>
    %c0_213 = arith.constant 0 : index
    %c0_214 = arith.constant 0 : index
    %998 = vector.load %arg22[%c0_213, %c0_214] : memref<8x1xf32, #tpu.memory_space<vmem>>, vector<8x1xf32>
    %cst_215 = arith.constant dense<0.000000e+00> : vector<2x1xf32>
    %999 = tpu.matmul %993, %998, %cst_215 {dimension_numbers = #tpu.dot_dimension_numbers<[1], [0], [0], [1], [0, 0, 1, 1], [], []>} : vector<2x8xf32>, vector<8x1xf32>, vector<2x1xf32> -> vector<2x1xf32>
    %c0_216 = arith.constant 0 : index
    %c0_217 = arith.constant 0 : index
    %1000 = vector.load %arg23[%c0_216, %c0_217] : memref<8x1xf32, #tpu.memory_space<vmem>>, vector<8x1xf32>
    %cst_218 = arith.constant dense<0.000000e+00> : vector<2x1xf32>
    %1001 = tpu.matmul %997, %1000, %cst_218 {dimension_numbers = #tpu.dot_dimension_numbers<[1], [0], [0], [1], [0, 0, 1, 1], [], []>} : vector<2x8xf32>, vector<8x1xf32>, vector<2x1xf32> -> vector<2x1xf32>
    %1002 = arith.addf %999, %1001 : vector<2x1xf32>
    %c0_219 = arith.constant 0 : index
    %c0_220 = arith.constant 0 : index
    %1003 = vector.load %arg24[%c0_219, %c0_220] : memref<1x1xf32, #tpu.memory_space<vmem>>, vector<1x1xf32>
    %1004 = vector.broadcast %1003 : vector<1x1xf32> to vector<2x1xf32>
    %1005 = arith.addf %1002, %1004 : vector<2x1xf32>
    %1006 = arith.negf %1005 : vector<2x1xf32>
    %1007 = math.exp %1006 : vector<2x1xf32>
    %cst_221 = arith.constant 1.000000e+00 : f32
    %1008 = vector.broadcast %cst_221 : f32 to vector<2x1xf32>
    %1009 = arith.addf %1008, %1007 : vector<2x1xf32>
    %1010 = arith.divf %1008, %1009 : vector<2x1xf32>
    %c0_222 = arith.constant 0 : index
    %c0_223 = arith.constant 0 : index
    %1011 = vector.load %arg25[%c0_222, %c0_223] : memref<2x1xf32, #tpu.memory_space<vmem>>, vector<2x1xf32>
    tpu.vector_store %arg25[%c0_222, %c0_223], %1010 {strides = array<i32>} : memref<2x1xf32, #tpu.memory_space<vmem>>, vector<2x1xf32>,
    return
  }
}

</mosaic_0001>

<llo_original>
// kernel: tpu_custom_call.1
$region0: #{tpu_custom_call.1}
  #allocation0 [shape = 'u32[]', space=smem, size = 0x4, offset = 0x4, fixed_abs, tag = 'smem constant byte address 0x4 - core index']
  #allocation1 [shape = 'u32[144,128]{1,0:T(1,128)}', space=vmem, size = 0x12000, scoped, tag = 'internal scratch']
  #allocation2 [shape = 'f32[64,8]{1,0:T(8,128)}', space=vmem, size = 0x8000, scoped, tag = 'scratch operand']
  #allocation3 [shape = 'f32[64,8]{1,0:T(8,128)}', space=vmem, size = 0x8000, scoped, tag = 'scratch operand']
  #allocation4 [shape = 'f32[8,8]{1,0:T(8,128)}', space=vmem, size = 0x1000, scoped, tag = 'scratch operand']
  #allocation5 [shape = 'f32[8,8]{1,0:T(8,128)}', space=vmem, size = 0x1000, scoped, tag = 'scratch operand']
  #allocation6 [shape = 'f32[1,1]{1,0:T(1,128)S(1)}', space=vmem, size = 0x200, scoped, tag = 'scoped memory for tpu_custom_call.1']
  %s0 = inlined_call_operand.vmem [shape: f32[64,16], index: 0, kind: input, shape index: {}]
  %s1 = inlined_call_operand.vmem [shape: f32[16,48], index: 1, kind: input, shape index: {}]
  %s2 = inlined_call_operand.vmem [shape: f32[8,24], index: 2, kind: input, shape index: {}]
  %s3 = inlined_call_operand.vmem [shape: f32[8,24], index: 3, kind: input, shape index: {}]
  %s4 = inlined_call_operand.vmem [shape: f32[1,48], index: 4, kind: input, shape index: {}]
  %s5 = inlined_call_operand.vmem [shape: f32[1,8], index: 5, kind: input, shape index: {}]
  %s6 = inlined_call_operand.vmem [shape: f32[1,8], index: 6, kind: input, shape index: {}]
  %s7 = inlined_call_operand.vmem [shape: f32[8,16], index: 7, kind: input, shape index: {}]
  %s8 = inlined_call_operand.vmem [shape: f32[8,16], index: 8, kind: input, shape index: {}]
  %s9 = inlined_call_operand.vmem [shape: f32[1,16], index: 9, kind: input, shape index: {}]
  %s10 = inlined_call_operand.vmem [shape: f32[1,16], index: 10, kind: input, shape index: {}]
  %s11 = inlined_call_operand.vmem [shape: f32[8,48], index: 11, kind: input, shape index: {}]
  %s12 = inlined_call_operand.vmem [shape: f32[8,48], index: 12, kind: input, shape index: {}]
  %s13 = inlined_call_operand.vmem [shape: f32[8,24], index: 13, kind: input, shape index: {}]
  %s14 = inlined_call_operand.vmem [shape: f32[8,24], index: 14, kind: input, shape index: {}]
  %s15 = inlined_call_operand.vmem [shape: f32[1,48], index: 15, kind: input, shape index: {}]
  %s16 = inlined_call_operand.vmem [shape: f32[1,8], index: 16, kind: input, shape index: {}]
  %s17 = inlined_call_operand.vmem [shape: f32[1,8], index: 17, kind: input, shape index: {}]
  %s18 = inlined_call_operand.vmem [shape: f32[8,16], index: 18, kind: input, shape index: {}]
  %s19 = inlined_call_operand.vmem [shape: f32[8,16], index: 19, kind: input, shape index: {}]
  %s20 = inlined_call_operand.vmem [shape: f32[1,16], index: 20, kind: input, shape index: {}]
  %s21 = inlined_call_operand.vmem [shape: f32[1,16], index: 21, kind: input, shape index: {}]
  %s22 = inlined_call_operand.vmem [shape: f32[8,1], index: 22, kind: input, shape index: {}]
  %s23 = inlined_call_operand.vmem [shape: f32[8,1], index: 23, kind: input, shape index: {}]
  %s24 = inlined_call_operand.<no memory space> [shape: f32[1,1], index: 24, kind: input, shape index: {}]
  %s25 = inlined_call_operand.vmem [shape: f32[2,1], index: 25, kind: output, shape index: {}]
  %s26 = sld [smem:[#allocation0]]
  $region110: #{tpu_custom_call.1} parent=0
    _
  %s28 = ssub.s32 1, %s26
  %s29 = scalar_select 0, %s28, %s26
  %v30 = vstv %s24
  %31 = vst [vmem:[#allocation6] sm:$0x1] %v30
  // Predicated region
  $region2: #{tpu_custom_call.1} parent=0 // pred_check
    _
  $region3: #{tpu_custom_call.1} parent=0 // pred_check_branch
    %33 = sbr.rel (0) target = $region5
  $region4: #{tpu_custom_call.1} parent=0 // pred_region
    _
  $region5: #{tpu_custom_call.1} parent=0 // pred_fallthru
    _
  // Predicated region
  $region6: #{tpu_custom_call.1} parent=0 // pred_check
    _
  $region7: #{tpu_custom_call.1} parent=0 // pred_check_branch
    %35 = sbr.rel (0) target = $region9
  $region8: #{tpu_custom_call.1} parent=0 // pred_region
    _
  $region9: #{tpu_custom_call.1} parent=0 // pred_fallthru
    _
  // Predicated region
  $region10: #{tpu_custom_call.1} parent=0 // pred_check
    _
  $region11: #{tpu_custom_call.1} parent=0 // pred_check_branch
    %37 = sbr.rel (0) target = $region13
  $region12: #{tpu_custom_call.1} parent=0 // pred_region
    _
  $region13: #{tpu_custom_call.1} parent=0 // pred_fallthru
    _
  // Predicated region
  $region14: #{tpu_custom_call.1} parent=0 // pred_check
    _
  $region15: #{tpu_custom_call.1} parent=0 // pred_check_branch
    %39 = sbr.rel (0) target = $region17
  $region16: #{tpu_custom_call.1} parent=0 // pred_region
    _
  $region17: #{tpu_custom_call.1} parent=0 // pred_fallthru
    _
  // Predicated region
  $region18: #{tpu_custom_call.1} parent=0 // pred_check
    _
  $region19: #{tpu_custom_call.1} parent=0 // pred_check_branch
    %41 = sbr.rel (0) target = $region21
  $region20: #{tpu_custom_call.1} parent=0 // pred_region
    _
  $region21: #{tpu_custom_call.1} parent=0 // pred_fallthru
    _
  // Predicated region
  $region22: #{tpu_custom_call.1} parent=0 // pred_check
    _
  $region23: #{tpu_custom_call.1} parent=0 // pred_check_branch
    %43 = sbr.rel (0) target = $region25
  $region24: #{tpu_custom_call.1} parent=0 // pred_region
    _
  $region25: #{tpu_custom_call.1} parent=0 // pred_fallthru
    _
  // Predicated region
  $region26: #{tpu_custom_call.1} parent=0 // pred_check
    _
  $region27: #{tpu_custom_call.1} parent=0 // pred_check_branch
    %45 = sbr.rel (0) target = $region29
  $region28: #{tpu_custom_call.1} parent=0 // pred_region
    _
  $region29: #{tpu_custom_call.1} parent=0 // pred_fallthru
    _
  // Predicated region
  $region30: #{tpu_custom_call.1} parent=0 // pred_check
    _
  $region31: #{tpu_custom_call.1} parent=0 // pred_check_branch
    %47 = sbr.rel (0) target = $region33
  $region32: #{tpu_custom_call.1} parent=0 // pred_region
    _
  $region33: #{tpu_custom_call.1} parent=0 // pred_fallthru
    _
  // Predicated region
  $region34: #{tpu_custom_call.1} parent=0 // pred_check
    _
  $region35: #{tpu_custom_call.1} parent=0 // pred_check_branch
    %49 = sbr.rel (0) target = $region37
  $region36: #{tpu_custom_call.1} parent=0 // pred_region
    _
  $region37: #{tpu_custom_call.1} parent=0 // pred_fallthru
    _
  // Predicated region
  $region38: #{tpu_custom_call.1} parent=0 // pred_check
    _
  $region39: #{tpu_custom_call.1} parent=0 // pred_check_branch
    %51 = sbr.rel (0) target = $region41
  $region40: #{tpu_custom_call.1} parent=0 // pred_region
    _
  $region41: #{tpu_custom_call.1} parent=0 // pred_fallthru
    _
  // Predicated region
  $region42: #{tpu_custom_call.1} parent=0 // pred_check
    _
  $region43: #{tpu_custom_call.1} parent=0 // pred_check_branch
    %53 = sbr.rel (0) target = $region45
  $region44: #{tpu_custom_call.1} parent=0 // pred_region
    _
  $region45: #{tpu_custom_call.1} parent=0 // pred_fallthru
    _
  // Predicated region
  $region46: #{tpu_custom_call.1} parent=0 // pred_check
    _
  $region47: #{tpu_custom_call.1} parent=0 // pred_check_branch
    %55 = sbr.rel (0) target = $region49
  $region48: #{tpu_custom_call.1} parent=0 // pred_region
    _
  $region49: #{tpu_custom_call.1} parent=0 // pred_fallthru
    _
  // Predicated region
  $region50: #{tpu_custom_call.1} parent=0 // pred_check
    _
  $region51: #{tpu_custom_call.1} parent=0 // pred_check_branch
    %57 = sbr.rel (0) target = $region53
  $region52: #{tpu_custom_call.1} parent=0 // pred_region
    _
  $region53: #{tpu_custom_call.1} parent=0 // pred_fallthru
    _
  // Predicated region
  $region54: #{tpu_custom_call.1} parent=0 // pred_check
    _
  $region55: #{tpu_custom_call.1} parent=0 // pred_check_branch
    %59 = sbr.rel (0) target = $region57
  $region56: #{tpu_custom_call.1} parent=0 // pred_region
    _
  $region57: #{tpu_custom_call.1} parent=0 // pred_fallthru
    _
  // Predicated region
  $region58: #{tpu_custom_call.1} parent=0 // pred_check
    _
  $region59: #{tpu_custom_call.1} parent=0 // pred_check_branch
    %61 = sbr.rel (0) target = $region61
  $region60: #{tpu_custom_call.1} parent=0 // pred_region
    _
  $region61: #{tpu_custom_call.1} parent=0 // pred_fallthru
    _
  // Predicated region
  $region62: #{tpu_custom_call.1} parent=0 // pred_check
    _
  $region63: #{tpu_custom_call.1} parent=0 // pred_check_branch
    %63 = sbr.rel (0) target = $region65
  $region64: #{tpu_custom_call.1} parent=0 // pred_region
    _
  $region65: #{tpu_custom_call.1} parent=0 // pred_fallthru
    _
  // Predicated region
  $region66: #{tpu_custom_call.1} parent=0 // pred_check
    _
  $region67: #{tpu_custom_call.1} parent=0 // pred_check_branch
    %65 = sbr.rel (0) target = $region69
  $region68: #{tpu_custom_call.1} parent=0 // pred_region
    _
  $region69: #{tpu_custom_call.1} parent=0 // pred_fallthru
    _
  // Predicated region
  $region70: #{tpu_custom_call.1} parent=0 // pred_check
    _
  $region71: #{tpu_custom_call.1} parent=0 // pred_check_branch
    %67 = sbr.rel (0) target = $region73
  $region72: #{tpu_custom_call.1} parent=0 // pred_region
    _
  $region73: #{tpu_custom_call.1} parent=0 // pred_fallthru
    _
  // Predicated region
  $region74: #{tpu_custom_call.1} parent=0 // pred_check
    _
  $region75: #{tpu_custom_call.1} parent=0 // pred_check_branch
    %69 = sbr.rel (0) target = $region77
  $region76: #{tpu_custom_call.1} parent=0 // pred_region
    _
  $region77: #{tpu_custom_call.1} parent=0 // pred_fallthru
    _
  // Predicated region
  $region78: #{tpu_custom_call.1} parent=0 // pred_check
    _
  $region79: #{tpu_custom_call.1} parent=0 // pred_check_branch
    %71 = sbr.rel (0) target = $region81
  $region80: #{tpu_custom_call.1} parent=0 // pred_region
    _
  $region81: #{tpu_custom_call.1} parent=0 // pred_fallthru
    _
  // Predicated region
  $region82: #{tpu_custom_call.1} parent=0 // pred_check
    _
  $region83: #{tpu_custom_call.1} parent=0 // pred_check_branch
    %73 = sbr.rel (0) target = $region85
  $region84: #{tpu_custom_call.1} parent=0 // pred_region
    _
  $region85: #{tpu_custom_call.1} parent=0 // pred_fallthru
    _
  // Predicated region
  $region86: #{tpu_custom_call.1} parent=0 // pred_check
    _
  $region87: #{tpu_custom_call.1} parent=0 // pred_check_branch
    %75 = sbr.rel (0) target = $region89
  $region88: #{tpu_custom_call.1} parent=0 // pred_region
    _
  $region89: #{tpu_custom_call.1} parent=0 // pred_fallthru
    _
  // Predicated region
  $region90: #{tpu_custom_call.1} parent=0 // pred_check
    _
  $region91: #{tpu_custom_call.1} parent=0 // pred_check_branch
    %77 = sbr.rel (0) target = $region93
  $region92: #{tpu_custom_call.1} parent=0 // pred_region
    _
  $region93: #{tpu_custom_call.1} parent=0 // pred_fallthru
    _
  // Predicated region
  $region94: #{tpu_custom_call.1} parent=0 // pred_check
    _
  $region95: #{tpu_custom_call.1} parent=0 // pred_check_branch
    %79 = sbr.rel (0) target = $region97
  $region96: #{tpu_custom_call.1} parent=0 // pred_region
    _
  $region97: #{tpu_custom_call.1} parent=0 // pred_fallthru
    _
  // Predicated region
  $region98: #{tpu_custom_call.1} parent=0 // pred_check
    _
  $region99: #{tpu_custom_call.1} parent=0 // pred_check_branch
    %81 = sbr.rel (0) target = $region101
  $region100: #{tpu_custom_call.1} parent=0 // pred_region
    _
  $region101: #{tpu_custom_call.1} parent=0 // pred_fallthru
    _
  %v82 = vld [vmem:[%s0] sm:$0xff]
  %v83 = vld [vmem:[%s0 + $0x8] sm:$0xff]
  %v84 = vld [vmem:[%s0 + $0x10] sm:$0xff]
  %v85 = vld [vmem:[%s0 + $0x18] sm:$0xff]
  %v86 = vld [vmem:[%s0 + $0x20] sm:$0xff]
  %v87 = vld [vmem:[%s0 + $0x28] sm:$0xff]
  %v88 = vld [vmem:[%s0 + $0x30] sm:$0xff]
  %v89 = vld [vmem:[%s0 + $0x38] sm:$0xff]
  %v90 = vld [vmem:[%s1] sm:$0xff]
  %v91 = vld [vmem:[%s1 + $0x8] sm:$0xff]
  %v92 = vld [vmem:[%s4] sm:$0x1]
  %v94 = vlaneseq
  %v95 = vshrl.u32 %v94, 7
  %v96 = vsub.s32 0, %v95
  %v97 = vrot.slane %v92, %v96
  %vm99 = vcmask 130048
  %v101 = vsel %vm99, %v82, 0
  %v104 = vsel %vm99, %v83, 0
  %v107 = vsel %vm99, %v84, 0
  %v110 = vsel %vm99, %v85, 0
  %v113 = vsel %vm99, %v86, 0
  %v116 = vsel %vm99, %v87, 0
  %v119 = vsel %vm99, %v88, 0
  %v122 = vsel %vm99, %v89, 0
  %124 = vmatprep.subr.mxu0 0.0
  %125 = vmatpush1.msra.mxu0 %v90
  %126 = vmatprep.subr.mxu0 0.0
  %127 = vmatpush1.msra.mxu0 %v91
  %128 = vmatprep.subr.mxu0 0.0
  %129 = vmatpush1.msra.mxu0 0.0
  %130 = vmatprep.subr.mxu0 0.0
  %131 = vmatpush1.msra.mxu0 0.0
  %132 = vmatprep.subr.mxu0 0.0
  %133 = vmatpush1.msra.mxu0 0.0
  %134 = vmatprep.subr.mxu0 0.0
  %135 = vmatpush1.msra.mxu0 0.0
  %136 = vmatprep.subr.mxu0 0.0
  %137 = vmatpush1.msra.mxu0 0.0
  %138 = vmatprep.subr.mxu0 0.0
  %139 = vmatpush1.msra.mxu0 0.0
  %140 = vmatprep.subr.mxu0 0.0
  %141 = vmatpush1.msra.mxu0 0.0
  %142 = vmatprep.subr.mxu0 0.0
  %143 = vmatpush1.msra.mxu0 0.0
  %144 = vmatprep.subr.mxu0 0.0
  %145 = vmatpush1.msra.mxu0 0.0
  %146 = vmatprep.subr.mxu0 0.0
  %147 = vmatpush1.msra.mxu0 0.0
  %148 = vmatprep.subr.mxu0 0.0
  %149 = vmatpush1.msra.mxu0 0.0
  %150 = vmatprep.subr.mxu0 0.0
  %151 = vmatpush1.msra.mxu0 0.0
  %152 = vmatprep.subr.mxu0 0.0
  %153 = vmatpush1.msra.mxu0 0.0
  %154 = vmatprep.subr.mxu0 0.0
  %155 = vmatpush1.msra.mxu0 0.0
  %156 = vmatprep.subr.mxu0 0.0
  %157 = vmatpush1.msra.mxu0 0.0
  %158 = vmatprep.subr.mxu0 0.0
  %159 = vmatpush1.msra.mxu0 0.0
  %160 = vmatprep.subr.mxu0 0.0
  %161 = vmatpush1.msra.mxu0 0.0
  %162 = vmatprep.subr.mxu0 0.0
  %163 = vmatpush1.msra.mxu0 0.0
  %164 = vmatprep.subr.mxu0 0.0
  %165 = vmatpush1.msra.mxu0 0.0
  %166 = vmatprep.subr.mxu0 0.0
  %167 = vmatpush1.msra.mxu0 0.0
  %168 = vmatprep.subr.mxu0 0.0
  %169 = vmatpush1.msra.mxu0 0.0
  %170 = vmatprep.subr.mxu0 0.0
  %171 = vmatpush1.msra.mxu0 0.0
  %172 = vmatprep.subr.mxu0 0.0
  %173 = vmatpush1.msra.mxu0 0.0
  %174 = vmatprep.subr.mxu0 0.0
  %175 = vmatpush1.msra.mxu0 0.0
  %176 = vmatprep.subr.mxu0 0.0
  %177 = vmatpush1.msra.mxu0 0.0
  %178 = vmatprep.subr.mxu0 0.0
  %179 = vmatpush1.msra.mxu0 0.0
  %180 = vmatprep.subr.mxu0 0.0
  %181 = vmatpush1.msra.mxu0 0.0
  %182 = vmatprep.subr.mxu0 0.0
  %183 = vmatpush1.msra.mxu0 0.0
  %184 = vmatprep.subr.mxu0 0.0
  %185 = vmatpush1.msra.mxu0 0.0
  %186 = vmatprep.subr.mxu0 0.0
  %187 = vmatpush1.msra.mxu0 0.0
  %188 = vmatprep.mubr.f32.mxu0 0.0
  %189 = vmatmul.mubr.f32.gmra.mrb[0].mxu0 %v101
  %v190 = vpop.f32.mrb[0].mxu0
  %v191 = vadd.f32 %v97, %v190
  %v192 = vpop.f32.mrb[0].mxu0
  %193 = vmatprep.mubr.f32.mxu0 0.0
  %194 = vmatmul.mubr.f32.gmra.mrb[0].mxu0 %v104
  %v195 = vpop.f32.mrb[0].mxu0
  %v196 = vadd.f32 %v97, %v195
  %v197 = vpop.f32.mrb[0].mxu0
  %198 = vmatprep.mubr.f32.mxu0 0.0
  %199 = vmatmul.mubr.f32.gmra.mrb[0].mxu0 %v107
  %v200 = vpop.f32.mrb[0].mxu0
  %v201 = vadd.f32 %v97, %v200
  %v202 = vpop.f32.mrb[0].mxu0
  %203 = vmatprep.mubr.f32.mxu0 0.0
  %204 = vmatmul.mubr.f32.gmra.mrb[0].mxu0 %v110
  %v205 = vpop.f32.mrb[0].mxu0
  %v206 = vadd.f32 %v97, %v205
  %v207 = vpop.f32.mrb[0].mxu0
  %208 = vmatprep.mubr.f32.mxu0 0.0
  %209 = vmatmul.mubr.f32.gmra.mrb[0].mxu0 %v113
  %v210 = vpop.f32.mrb[0].mxu0
  %v211 = vadd.f32 %v97, %v210
  %v212 = vpop.f32.mrb[0].mxu0
  %213 = vmatprep.mubr.f32.mxu0 0.0
  %214 = vmatmul.mubr.f32.gmra.mrb[0].mxu0 %v116
  %v215 = vpop.f32.mrb[0].mxu0
  %v216 = vadd.f32 %v97, %v215
  %v217 = vpop.f32.mrb[0].mxu0
  %218 = vmatprep.mubr.f32.mxu0 0.0
  %219 = vmatmul.mubr.f32.gmra.mrb[0].mxu0 %v119
  %v220 = vpop.f32.mrb[0].mxu0
  %v221 = vadd.f32 %v97, %v220
  %v222 = vpop.f32.mrb[0].mxu0
  %223 = vmatprep.mubr.f32.mxu0 0.0
  %224 = vmatmul.mubr.f32.gmra.mrb[0].mxu0 %v122
  %v225 = vpop.f32.mrb[0].mxu0
  %v226 = vadd.f32 %v97, %v225
  %v227 = vpop.f32.mrb[0].mxu0
  %228 = vdwg.mxu0
  %v229 = vld [vmem:[%s2] sm:$0xff]
  %v230 = vld [vmem:[%s3] sm:$0xff]
  %v231 = vld [vmem:[%s5] sm:$0x1]
  %v232 = vld [vmem:[%s6] sm:$0x1]
  %v233 = vld [vmem:[%s7] sm:$0xff]
  %v234 = vld [vmem:[%s8] sm:$0xff]
  %v235 = vld [vmem:[%s9] sm:$0x1]
  %v236 = vld [vmem:[%s10] sm:$0x1]
  %v238 = vlaneseq
  %v239 = vshrl.u32 %v238, 7
  %v240 = vsub.s32 0, %v239
  %v241 = vrot.slane %v231, %v240
  %v243 = vlaneseq
  %v244 = vshrl.u32 %v243, 7
  %v245 = vsub.s32 0, %v244
  %v246 = vrot.slane %v232, %v245
  %vm247 = vcmask 64512
  %v249 = vsel %vm247, 0.0, 0
  %251 = vmatprep.subr.mxu0 0.0
  %252 = vmatpush1.msra.mxu0 %v229
  %253 = vmatprep.subr.mxu0 0.0
  %254 = vmatpush1.msra.mxu0 0.0
  %255 = vmatprep.subr.mxu0 0.0
  %256 = vmatpush1.msra.mxu0 0.0
  %257 = vmatprep.subr.mxu0 0.0
  %258 = vmatpush1.msra.mxu0 0.0
  %259 = vmatprep.subr.mxu0 0.0
  %260 = vmatpush1.msra.mxu0 0.0
  %261 = vmatprep.subr.mxu0 0.0
  %262 = vmatpush1.msra.mxu0 0.0
  %263 = vmatprep.subr.mxu0 0.0
  %264 = vmatpush1.msra.mxu0 0.0
  %265 = vmatprep.subr.mxu0 0.0
  %266 = vmatpush1.msra.mxu0 0.0
  %267 = vmatprep.subr.mxu0 0.0
  %268 = vmatpush1.msra.mxu0 0.0
  %269 = vmatprep.subr.mxu0 0.0
  %270 = vmatpush1.msra.mxu0 0.0
  %271 = vmatprep.subr.mxu0 0.0
  %272 = vmatpush1.msra.mxu0 0.0
  %273 = vmatprep.subr.mxu0 0.0
  %274 = vmatpush1.msra.mxu0 0.0
  %275 = vmatprep.subr.mxu0 0.0
  %276 = vmatpush1.msra.mxu0 0.0
  %277 = vmatprep.subr.mxu0 0.0
  %278 = vmatpush1.msra.mxu0 0.0
  %279 = vmatprep.subr.mxu0 0.0
  %280 = vmatpush1.msra.mxu0 0.0
  %281 = vmatprep.subr.mxu0 0.0
  %282 = vmatpush1.msra.mxu0 0.0
  %283 = vmatprep.subr.mxu0 0.0
  %284 = vmatpush1.msra.mxu0 0.0
  %285 = vmatprep.subr.mxu0 0.0
  %286 = vmatpush1.msra.mxu0 0.0
  %287 = vmatprep.subr.mxu0 0.0
  %288 = vmatpush1.msra.mxu0 0.0
  %289 = vmatprep.subr.mxu0 0.0
  %290 = vmatpush1.msra.mxu0 0.0
  %291 = vmatprep.subr.mxu0 0.0
  %292 = vmatpush1.msra.mxu0 0.0
  %293 = vmatprep.subr.mxu0 0.0
  %294 = vmatpush1.msra.mxu0 0.0
  %295 = vmatprep.subr.mxu0 0.0
  %296 = vmatpush1.msra.mxu0 0.0
  %297 = vmatprep.subr.mxu0 0.0
  %298 = vmatpush1.msra.mxu0 0.0
  %299 = vmatprep.subr.mxu0 0.0
  %300 = vmatpush1.msra.mxu0 0.0
  %301 = vmatprep.subr.mxu0 0.0
  %302 = vmatpush1.msra.mxu0 0.0
  %303 = vmatprep.subr.mxu0 0.0
  %304 = vmatpush1.msra.mxu0 0.0
  %305 = vmatprep.subr.mxu0 0.0
  %306 = vmatpush1.msra.mxu0 0.0
  %307 = vmatprep.subr.mxu0 0.0
  %308 = vmatpush1.msra.mxu0 0.0
  %309 = vmatprep.subr.mxu0 0.0
  %310 = vmatpush1.msra.mxu0 0.0
  %311 = vmatprep.subr.mxu0 0.0
  %312 = vmatpush1.msra.mxu0 0.0
  %313 = vmatprep.subr.mxu0 0.0
  %314 = vmatpush1.msra.mxu0 0.0
  %315 = vmatprep.mubr.f32.mxu0 0.0
  %316 = vmatmul.mubr.f32.gmra.mrb[0].mxu0 %v249
  %v317 = vpop.f32.mrb[0].mxu0
  %v318 = vadd.f32 0.0, %v317
  %v319 = vpop.f32.mrb[0].mxu0
  %320 = vdwg.mxu0
  %321 = vmatprep.subr.mxu0 0.0
  %322 = vmatpush1.msra.mxu0 %v230
  %323 = vmatprep.subr.mxu0 0.0
  %324 = vmatpush1.msra.mxu0 0.0
  %325 = vmatprep.subr.mxu0 0.0
  %326 = vmatpush1.msra.mxu0 0.0
  %327 = vmatprep.subr.mxu0 0.0
  %328 = vmatpush1.msra.mxu0 0.0
  %329 = vmatprep.subr.mxu0 0.0
  %330 = vmatpush1.msra.mxu0 0.0
  %331 = vmatprep.subr.mxu0 0.0
  %332 = vmatpush1.msra.mxu0 0.0
  %333 = vmatprep.subr.mxu0 0.0
  %334 = vmatpush1.msra.mxu0 0.0
  %335 = vmatprep.subr.mxu0 0.0
  %336 = vmatpush1.msra.mxu0 0.0
  %337 = vmatprep.subr.mxu0 0.0
  %338 = vmatpush1.msra.mxu0 0.0
  %339 = vmatprep.subr.mxu0 0.0
  %340 = vmatpush1.msra.mxu0 0.0
  %341 = vmatprep.subr.mxu0 0.0
  %342 = vmatpush1.msra.mxu0 0.0
  %343 = vmatprep.subr.mxu0 0.0
  %344 = vmatpush1.msra.mxu0 0.0
  %345 = vmatprep.subr.mxu0 0.0
  %346 = vmatpush1.msra.mxu0 0.0
  %347 = vmatprep.subr.mxu0 0.0
  %348 = vmatpush1.msra.mxu0 0.0
  %349 = vmatprep.subr.mxu0 0.0
  %350 = vmatpush1.msra.mxu0 0.0
  %351 = vmatprep.subr.mxu0 0.0
  %352 = vmatpush1.msra.mxu0 0.0
  %353 = vmatprep.subr.mxu0 0.0
  %354 = vmatpush1.msra.mxu0 0.0
  %355 = vmatprep.subr.mxu0 0.0
  %356 = vmatpush1.msra.mxu0 0.0
  %357 = vmatprep.subr.mxu0 0.0
  %358 = vmatpush1.msra.mxu0 0.0
  %359 = vmatprep.subr.mxu0 0.0
  %360 = vmatpush1.msra.mxu0 0.0
  %361 = vmatprep.subr.mxu0 0.0
  %362 = vmatpush1.msra.mxu0 0.0
  %363 = vmatprep.subr.mxu0 0.0
  %364 = vmatpush1.msra.mxu0 0.0
  %365 = vmatprep.subr.mxu0 0.0
  %366 = vmatpush1.msra.mxu0 0.0
  %367 = vmatprep.subr.mxu0 0.0
  %368 = vmatpush1.msra.mxu0 0.0
  %369 = vmatprep.subr.mxu0 0.0
  %370 = vmatpush1.msra.mxu0 0.0
  %371 = vmatprep.subr.mxu0 0.0
  %372 = vmatpush1.msra.mxu0 0.0
  %373 = vmatprep.subr.mxu0 0.0
  %374 = vmatpush1.msra.mxu0 0.0
  %375 = vmatprep.subr.mxu0 0.0
  %376 = vmatpush1.msra.mxu0 0.0
  %377 = vmatprep.subr.mxu0 0.0
  %378 = vmatpush1.msra.mxu0 0.0
  %379 = vmatprep.subr.mxu0 0.0
  %380 = vmatpush1.msra.mxu0 0.0
  %381 = vmatprep.subr.mxu0 0.0
  %382 = vmatpush1.msra.mxu0 0.0
  %383 = vmatprep.subr.mxu0 0.0
  %384 = vmatpush1.msra.mxu0 0.0
  %385 = vmatprep.mubr.f32.mxu0 0.0
  %386 = vmatmul.mubr.f32.gmra.mrb[0].mxu0 %v249
  %v387 = vpop.f32.mrb[0].mxu0
  %v388 = vadd.f32 0.0, %v387
  %v389 = vpop.f32.mrb[0].mxu0
  %390 = vdwg.mxu0
  %v391 = vadd.f32 %v191, %v318
  %v392 = vxor.u32 %v391, 2147483648
  %v393 = vmul.f32 %v392, 1.442695
  %v394 = vpow.pop %v393
  %v395 = vadd.f32 %v394, 1.0
  %v396 = vrcp.pop %v395
  %v397 = vmul.f32 1.0, %v396
  %398 = vrot.lane.b32.xlu0 %v241, 16
  %v399 = vpop.permute.xlu0 %398
  %v401 = vadd.f32 %v318, %v399
  %403 = vrot.lane.b32.xlu0 %v401, 112
  %v404 = vpop.permute.xlu0 %403
  %v406 = vmul.f32 %v397, %v404
  %408 = vrot.lane.b32.xlu0 %v406, 16
  %v409 = vpop.permute.xlu0 %408
  %v411 = vadd.f32 %v191, %v409
  %v412 = vtanh.pop %v411
  %v413 = vsub.f32 1.0, %v397
  %415 = vrot.lane.b32.xlu0 %v412, 120
  %v416 = vpop.permute.xlu0 %415
  %v418 = vmul.f32 %v413, %v416
  %v419 = vmul.f32 %v397, 0.0
  %v420 = vadd.f32 %v418, %v419
  %422 = vrot.lane.b32.xlu0 %v388, 24
  %v423 = vpop.permute.xlu0 %422
  %v425 = vadd.f32 %v226, %v423
  %v426 = vxor.u32 %v425, 2147483648
  %v427 = vmul.f32 %v426, 1.442695
  %v428 = vpow.pop %v427
  %v429 = vadd.f32 %v428, 1.0
  %v430 = vrcp.pop %v429
  %v431 = vmul.f32 1.0, %v430
  %432 = vrot.lane.b32.xlu0 %v246, 16
  %v433 = vpop.permute.xlu0 %432
  %v435 = vadd.f32 %v388, %v433
  %437 = vrot.lane.b32.xlu0 %v435, 8
  %v438 = vpop.permute.xlu0 %437
  %v440 = vmul.f32 %v431, %v438
  %442 = vrot.lane.b32.xlu0 %v440, 16
  %v443 = vpop.permute.xlu0 %442
  %v445 = vadd.f32 %v226, %v443
  %v446 = vtanh.pop %v445
  %v447 = vsub.f32 1.0, %v431
  %449 = vrot.lane.b32.xlu0 %v446, 120
  %v450 = vpop.permute.xlu0 %449
  %v452 = vmul.f32 %v447, %v450
  %v453 = vmul.f32 %v431, 0.0
  %v454 = vadd.f32 %v452, %v453
  %456 = vrot.lane.b32.xlu0 %v420, 120
  %v457 = vpop.permute.xlu0 %456
  %459 = vst.msk [vmem:[#allocation2] sm:$0xff] %vm247, %v457
  %461 = vrot.lane.b32.xlu0 %v454, 96
  %v462 = vpop.permute.xlu0 %461
  %464 = vst.msk [vmem:[#allocation3 + $0x38] sm:$0xff] %vm247, %v462
  %v465 = vsel %vm247, %v457, 0
  %467 = vmatprep.subr.mxu0 0.0
  %468 = vmatpush1.msra.mxu0 %v229
  %469 = vmatprep.subr.mxu0 0.0
  %470 = vmatpush1.msra.mxu0 0.0
  %471 = vmatprep.subr.mxu0 0.0
  %472 = vmatpush1.msra.mxu0 0.0
  %473 = vmatprep.subr.mxu0 0.0
  %474 = vmatpush1.msra.mxu0 0.0
  %475 = vmatprep.subr.mxu0 0.0
  %476 = vmatpush1.msra.mxu0 0.0
  %477 = vmatprep.subr.mxu0 0.0
  %478 = vmatpush1.msra.mxu0 0.0
  %479 = vmatprep.subr.mxu0 0.0
  %480 = vmatpush1.msra.mxu0 0.0
  %481 = vmatprep.subr.mxu0 0.0
  %482 = vmatpush1.msra.mxu0 0.0
  %483 = vmatprep.subr.mxu0 0.0
  %484 = vmatpush1.msra.mxu0 0.0
  %485 = vmatprep.subr.mxu0 0.0
  %486 = vmatpush1.msra.mxu0 0.0
  %487 = vmatprep.subr.mxu0 0.0
  %488 = vmatpush1.msra.mxu0 0.0
  %489 = vmatprep.subr.mxu0 0.0
  %490 = vmatpush1.msra.mxu0 0.0
  %491 = vmatprep.subr.mxu0 0.0
  %492 = vmatpush1.msra.mxu0 0.0
  %493 = vmatprep.subr.mxu0 0.0
  %494 = vmatpush1.msra.mxu0 0.0
  %495 = vmatprep.subr.mxu0 0.0
  %496 = vmatpush1.msra.mxu0 0.0
  %497 = vmatprep.subr.mxu0 0.0
  %498 = vmatpush1.msra.mxu0 0.0
  %499 = vmatprep.subr.mxu0 0.0
  %500 = vmatpush1.msra.mxu0 0.0
  %501 = vmatprep.subr.mxu0 0.0
  %502 = vmatpush1.msra.mxu0 0.0
  %503 = vmatprep.subr.mxu0 0.0
  %504 = vmatpush1.msra.mxu0 0.0
  %505 = vmatprep.subr.mxu0 0.0
  %506 = vmatpush1.msra.mxu0 0.0
  %507 = vmatprep.subr.mxu0 0.0
  %508 = vmatpush1.msra.mxu0 0.0
  %509 = vmatprep.subr.mxu0 0.0
  %510 = vmatpush1.msra.mxu0 0.0
  %511 = vmatprep.subr.mxu0 0.0
  %512 = vmatpush1.msra.mxu0 0.0
  %513 = vmatprep.subr.mxu0 0.0
  %514 = vmatpush1.msra.mxu0 0.0
  %515 = vmatprep.subr.mxu0 0.0
  %516 = vmatpush1.msra.mxu0 0.0
  %517 = vmatprep.subr.mxu0 0.0
  %518 = vmatpush1.msra.mxu0 0.0
  %519 = vmatprep.subr.mxu0 0.0
  %520 = vmatpush1.msra.mxu0 0.0
  %521 = vmatprep.subr.mxu0 0.0
  %522 = vmatpush1.msra.mxu0 0.0
  %523 = vmatprep.subr.mxu0 0.0
  %524 = vmatpush1.msra.mxu0 0.0
  %525 = vmatprep.subr.mxu0 0.0
  %526 = vmatpush1.msra.mxu0 0.0
  %527 = vmatprep.subr.mxu0 0.0
  %528 = vmatpush1.msra.mxu0 0.0
  %529 = vmatprep.subr.mxu0 0.0
  %530 = vmatpush1.msra.mxu0 0.0
  %531 = vmatprep.mubr.f32.mxu0 0.0
  %532 = vmatmul.mubr.f32.gmra.mrb[0].mxu0 %v465
  %v533 = vpop.f32.mrb[0].mxu0
  %v534 = vadd.f32 0.0, %v533
  %v535 = vpop.f32.mrb[0].mxu0
  %536 = vdwg.mxu0
  %v537 = vsel %vm247, %v462, 0
  %539 = vmatprep.subr.mxu0 0.0
  %540 = vmatpush1.msra.mxu0 %v230
  %541 = vmatprep.subr.mxu0 0.0
  %542 = vmatpush1.msra.mxu0 0.0
  %543 = vmatprep.subr.mxu0 0.0
  %544 = vmatpush1.msra.mxu0 0.0
  %545 = vmatprep.subr.mxu0 0.0
  %546 = vmatpush1.msra.mxu0 0.0
  %547 = vmatprep.subr.mxu0 0.0
  %548 = vmatpush1.msra.mxu0 0.0
  %549 = vmatprep.subr.mxu0 0.0
  %550 = vmatpush1.msra.mxu0 0.0
  %551 = vmatprep.subr.mxu0 0.0
  %552 = vmatpush1.msra.mxu0 0.0
  %553 = vmatprep.subr.mxu0 0.0
  %554 = vmatpush1.msra.mxu0 0.0
  %555 = vmatprep.subr.mxu0 0.0
  %556 = vmatpush1.msra.mxu0 0.0
  %557 = vmatprep.subr.mxu0 0.0
  %558 = vmatpush1.msra.mxu0 0.0
  %559 = vmatprep.subr.mxu0 0.0
  %560 = vmatpush1.msra.mxu0 0.0
  %561 = vmatprep.subr.mxu0 0.0
  %562 = vmatpush1.msra.mxu0 0.0
  %563 = vmatprep.subr.mxu0 0.0
  %564 = vmatpush1.msra.mxu0 0.0
  %565 = vmatprep.subr.mxu0 0.0
  %566 = vmatpush1.msra.mxu0 0.0
  %567 = vmatprep.subr.mxu0 0.0
  %568 = vmatpush1.msra.mxu0 0.0
  %569 = vmatprep.subr.mxu0 0.0
  %570 = vmatpush1.msra.mxu0 0.0
  %571 = vmatprep.subr.mxu0 0.0
  %572 = vmatpush1.msra.mxu0 0.0
  %573 = vmatprep.subr.mxu0 0.0
  %574 = vmatpush1.msra.mxu0 0.0
  %575 = vmatprep.subr.mxu0 0.0
  %576 = vmatpush1.msra.mxu0 0.0
  %577 = vmatprep.subr.mxu0 0.0
  %578 = vmatpush1.msra.mxu0 0.0
  %579 = vmatprep.subr.mxu0 0.0
  %580 = vmatpush1.msra.mxu0 0.0
  %581 = vmatprep.subr.mxu0 0.0
  %582 = vmatpush1.msra.mxu0 0.0
  %583 = vmatprep.subr.mxu0 0.0
  %584 = vmatpush1.msra.mxu0 0.0
  %585 = vmatprep.subr.mxu0 0.0
  %586 = vmatpush1.msra.mxu0 0.0
  %587 = vmatprep.subr.mxu0 0.0
  %588 = vmatpush1.msra.mxu0 0.0
  %589 = vmatprep.subr.mxu0 0.0
  %590 = vmatpush1.msra.mxu0 0.0
  %591 = vmatprep.subr.mxu0 0.0
  %592 = vmatpush1.msra.mxu0 0.0
  %593 = vmatprep.subr.mxu0 0.0
  %594 = vmatpush1.msra.mxu0 0.0
  %595 = vmatprep.subr.mxu0 0.0
  %596 = vmatpush1.msra.mxu0 0.0
  %597 = vmatprep.subr.mxu0 0.0
  %598 = vmatpush1.msra.mxu0 0.0
  %599 = vmatprep.subr.mxu0 0.0
  %600 = vmatpush1.msra.mxu0 0.0
  %601 = vmatprep.subr.mxu0 0.0
  %602 = vmatpush1.msra.mxu0 0.0
  %603 = vmatprep.mubr.f32.mxu0 0.0
  %604 = vmatmul.mubr.f32.gmra.mrb[0].mxu0 %v537
  %v605 = vpop.f32.mrb[0].mxu0
  %v606 = vadd.f32 0.0, %v605
  %v607 = vpop.f32.mrb[0].mxu0
  %608 = vdwg.mxu0
  %v609 = vadd.f32 %v196, %v534
  %v610 = vxor.u32 %v609, 2147483648
  %v611 = vmul.f32 %v610, 1.442695
  %v612 = vpow.pop %v611
  %v613 = vadd.f32 %v612, 1.0
  %v614 = vrcp.pop %v613
  %v615 = vmul.f32 1.0, %v614
  %v616 = vadd.f32 %v534, %v399
  %618 = vrot.lane.b32.xlu0 %v616, 112
  %v619 = vpop.permute.xlu0 %618
  %v621 = vmul.f32 %v615, %v619
  %623 = vrot.lane.b32.xlu0 %v621, 16
  %v624 = vpop.permute.xlu0 %623
  %v626 = vadd.f32 %v196, %v624
  %v627 = vtanh.pop %v626
  %v628 = vsub.f32 1.0, %v615
  %630 = vrot.lane.b32.xlu0 %v627, 120
  %v631 = vpop.permute.xlu0 %630
  %v633 = vmul.f32 %v628, %v631
  %v634 = vmul.f32 %v615, %v420
  %v635 = vadd.f32 %v633, %v634
  %637 = vrot.lane.b32.xlu0 %v606, 24
  %v638 = vpop.permute.xlu0 %637
  %v640 = vadd.f32 %v221, %v638
  %v641 = vxor.u32 %v640, 2147483648
  %v642 = vmul.f32 %v641, 1.442695
  %v643 = vpow.pop %v642
  %v644 = vadd.f32 %v643, 1.0
  %v645 = vrcp.pop %v644
  %v646 = vmul.f32 1.0, %v645
  %v647 = vadd.f32 %v606, %v433
  %649 = vrot.lane.b32.xlu0 %v647, 8
  %v650 = vpop.permute.xlu0 %649
  %v652 = vmul.f32 %v646, %v650
  %654 = vrot.lane.b32.xlu0 %v652, 16
  %v655 = vpop.permute.xlu0 %654
  %v657 = vadd.f32 %v221, %v655
  %v658 = vtanh.pop %v657
  %v659 = vsub.f32 1.0, %v646
  %661 = vrot.lane.b32.xlu0 %v658, 120
  %v662 = vpop.permute.xlu0 %661
  %v664 = vmul.f32 %v659, %v662
  %v665 = vmul.f32 %v646, %v454
  %v666 = vadd.f32 %v664, %v665
  %668 = vrot.lane.b32.xlu0 %v635, 120
  %v669 = vpop.permute.xlu0 %668
  %671 = vst.msk [vmem:[#allocation2 + $0x8] sm:$0xff] %vm247, %v669
  %673 = vrot.lane.b32.xlu0 %v666, 96
  %v674 = vpop.permute.xlu0 %673
  %676 = vst.msk [vmem:[#allocation3 + $0x30] sm:$0xff] %vm247, %v674
  %v677 = vsel %vm247, %v669, 0
  %679 = vmatprep.subr.mxu0 0.0
  %680 = vmatpush1.msra.mxu0 %v229
  %681 = vmatprep.subr.mxu0 0.0
  %682 = vmatpush1.msra.mxu0 0.0
  %683 = vmatprep.subr.mxu0 0.0
  %684 = vmatpush1.msra.mxu0 0.0
  %685 = vmatprep.subr.mxu0 0.0
  %686 = vmatpush1.msra.mxu0 0.0
  %687 = vmatprep.subr.mxu0 0.0
  %688 = vmatpush1.msra.mxu0 0.0
  %689 = vmatprep.subr.mxu0 0.0
  %690 = vmatpush1.msra.mxu0 0.0
  %691 = vmatprep.subr.mxu0 0.0
  %692 = vmatpush1.msra.mxu0 0.0
  %693 = vmatprep.subr.mxu0 0.0
  %694 = vmatpush1.msra.mxu0 0.0
  %695 = vmatprep.subr.mxu0 0.0
  %696 = vmatpush1.msra.mxu0 0.0
  %697 = vmatprep.subr.mxu0 0.0
  %698 = vmatpush1.msra.mxu0 0.0
  %699 = vmatprep.subr.mxu0 0.0
  %700 = vmatpush1.msra.mxu0 0.0
  %701 = vmatprep.subr.mxu0 0.0
  %702 = vmatpush1.msra.mxu0 0.0
  %703 = vmatprep.subr.mxu0 0.0
  %704 = vmatpush1.msra.mxu0 0.0
  %705 = vmatprep.subr.mxu0 0.0
  %706 = vmatpush1.msra.mxu0 0.0
  %707 = vmatprep.subr.mxu0 0.0
  %708 = vmatpush1.msra.mxu0 0.0
  %709 = vmatprep.subr.mxu0 0.0
  %710 = vmatpush1.msra.mxu0 0.0
  %711 = vmatprep.subr.mxu0 0.0
  %712 = vmatpush1.msra.mxu0 0.0
  %713 = vmatprep.subr.mxu0 0.0
  %714 = vmatpush1.msra.mxu0 0.0
  %715 = vmatprep.subr.mxu0 0.0
  %716 = vmatpush1.msra.mxu0 0.0
  %717 = vmatprep.subr.mxu0 0.0
  %718 = vmatpush1.msra.mxu0 0.0
  %719 = vmatprep.subr.mxu0 0.0
  %720 = vmatpush1.msra.mxu0 0.0
  %721 = vmatprep.subr.mxu0 0.0
  %722 = vmatpush1.msra.mxu0 0.0
  %723 = vmatprep.subr.mxu0 0.0
  %724 = vmatpush1.msra.mxu0 0.0
  %725 = vmatprep.subr.mxu0 0.0
  %726 = vmatpush1.msra.mxu0 0.0
  %727 = vmatprep.subr.mxu0 0.0
  %728 = vmatpush1.msra.mxu0 0.0
  %729 = vmatprep.subr.mxu0 0.0
  %730 = vmatpush1.msra.mxu0 0.0
  %731 = vmatprep.subr.mxu0 0.0
  %732 = vmatpush1.msra.mxu0 0.0
  %733 = vmatprep.subr.mxu0 0.0
  %734 = vmatpush1.msra.mxu0 0.0
  %735 = vmatprep.subr.mxu0 0.0
  %736 = vmatpush1.msra.mxu0 0.0
  %737 = vmatprep.subr.mxu0 0.0
  %738 = vmatpush1.msra.mxu0 0.0
  %739 = vmatprep.subr.mxu0 0.0
  %740 = vmatpush1.msra.mxu0 0.0
  %741 = vmatprep.subr.mxu0 0.0
  %742 = vmatpush1.msra.mxu0 0.0
  %743 = vmatprep.mubr.f32.mxu0 0.0
  %744 = vmatmul.mubr.f32.gmra.mrb[0].mxu0 %v677
  %v745 = vpop.f32.mrb[0].mxu0
  %v746 = vadd.f32 0.0, %v745
  %v747 = vpop.f32.mrb[0].mxu0
  %748 = vdwg.mxu0
  %v749 = vsel %vm247, %v674, 0
  %751 = vmatprep.subr.mxu0 0.0
  %752 = vmatpush1.msra.mxu0 %v230
  %753 = vmatprep.subr.mxu0 0.0
  %754 = vmatpush1.msra.mxu0 0.0
  %755 = vmatprep.subr.mxu0 0.0
  %756 = vmatpush1.msra.mxu0 0.0
  %757 = vmatprep.subr.mxu0 0.0
  %758 = vmatpush1.msra.mxu0 0.0
  %759 = vmatprep.subr.mxu0 0.0
  %760 = vmatpush1.msra.mxu0 0.0
  %761 = vmatprep.subr.mxu0 0.0
  %762 = vmatpush1.msra.mxu0 0.0
  %763 = vmatprep.subr.mxu0 0.0
  %764 = vmatpush1.msra.mxu0 0.0
  %765 = vmatprep.subr.mxu0 0.0
  %766 = vmatpush1.msra.mxu0 0.0
  %767 = vmatprep.subr.mxu0 0.0
  %768 = vmatpush1.msra.mxu0 0.0
  %769 = vmatprep.subr.mxu0 0.0
  %770 = vmatpush1.msra.mxu0 0.0
  %771 = vmatprep.subr.mxu0 0.0
  %772 = vmatpush1.msra.mxu0 0.0
  %773 = vmatprep.subr.mxu0 0.0
  %774 = vmatpush1.msra.mxu0 0.0
  %775 = vmatprep.subr.mxu0 0.0
  %776 = vmatpush1.msra.mxu0 0.0
  %777 = vmatprep.subr.mxu0 0.0
  %778 = vmatpush1.msra.mxu0 0.0
  %779 = vmatprep.subr.mxu0 0.0
  %780 = vmatpush1.msra.mxu0 0.0
  %781 = vmatprep.subr.mxu0 0.0
  %782 = vmatpush1.msra.mxu0 0.0
  %783 = vmatprep.subr.mxu0 0.0
  %784 = vmatpush1.msra.mxu0 0.0
  %785 = vmatprep.subr.mxu0 0.0
  %786 = vmatpush1.msra.mxu0 0.0
  %787 = vmatprep.subr.mxu0 0.0
  %788 = vmatpush1.msra.mxu0 0.0
  %789 = vmatprep.subr.mxu0 0.0
  %790 = vmatpush1.msra.mxu0 0.0
  %791 = vmatprep.subr.mxu0 0.0
  %792 = vmatpush1.msra.mxu0 0.0
  %793 = vmatprep.subr.mxu0 0.0
  %794 = vmatpush1.msra.mxu0 0.0
  %795 = vmatprep.subr.mxu0 0.0
  %796 = vmatpush1.msra.mxu0 0.0
  %797 = vmatprep.subr.mxu0 0.0
  %798 = vmatpush1.msra.mxu0 0.0
  %799 = vmatprep.subr.mxu0 0.0
  %800 = vmatpush1.msra.mxu0 0.0
  %801 = vmatprep.subr.mxu0 0.0
  %802 = vmatpush1.msra.mxu0 0.0
  %803 = vmatprep.subr.mxu0 0.0
  %804 = vmatpush1.msra.mxu0 0.0
  %805 = vmatprep.subr.mxu0 0.0
  %806 = vmatpush1.msra.mxu0 0.0
  %807 = vmatprep.subr.mxu0 0.0
  %808 = vmatpush1.msra.mxu0 0.0
  %809 = vmatprep.subr.mxu0 0.0
  %810 = vmatpush1.msra.mxu0 0.0
  %811 = vmatprep.subr.mxu0 0.0
  %812 = vmatpush1.msra.mxu0 0.0
  %813 = vmatprep.subr.mxu0 0.0
  %814 = vmatpush1.msra.mxu0 0.0
  %815 = vmatprep.mubr.f32.mxu0 0.0
  %816 = vmatmul.mubr.f32.gmra.mrb[0].mxu0 %v749
  %v817 = vpop.f32.mrb[0].mxu0
  %v818 = vadd.f32 0.0, %v817
  %v819 = vpop.f32.mrb[0].mxu0
  %820 = vdwg.mxu0
  %v821 = vadd.f32 %v201, %v746
  %v822 = vxor.u32 %v821, 2147483648
  %v823 = vmul.f32 %v822, 1.442695
  %v824 = vpow.pop %v823
  %v825 = vadd.f32 %v824, 1.0
  %v826 = vrcp.pop %v825
  %v827 = vmul.f32 1.0, %v826
  %v828 = vadd.f32 %v746, %v399
  %830 = vrot.lane.b32.xlu0 %v828, 112
  %v831 = vpop.permute.xlu0 %830
  %v833 = vmul.f32 %v827, %v831
  %835 = vrot.lane.b32.xlu0 %v833, 16
  %v836 = vpop.permute.xlu0 %835
  %v838 = vadd.f32 %v201, %v836
  %v839 = vtanh.pop %v838
  %v840 = vsub.f32 1.0, %v827
  %842 = vrot.lane.b32.xlu0 %v839, 120
  %v843 = vpop.permute.xlu0 %842
  %v845 = vmul.f32 %v840, %v843
  %v846 = vmul.f32 %v827, %v635
  %v847 = vadd.f32 %v845, %v846
  %849 = vrot.lane.b32.xlu0 %v818, 24
  %v850 = vpop.permute.xlu0 %849
  %v852 = vadd.f32 %v216, %v850
  %v853 = vxor.u32 %v852, 2147483648
  %v854 = vmul.f32 %v853, 1.442695
  %v855 = vpow.pop %v854
  %v856 = vadd.f32 %v855, 1.0
  %v857 = vrcp.pop %v856
  %v858 = vmul.f32 1.0, %v857
  %v859 = vadd.f32 %v818, %v433
  %861 = vrot.lane.b32.xlu0 %v859, 8
  %v862 = vpop.permute.xlu0 %861
  %v864 = vmul.f32 %v858, %v862
  %866 = vrot.lane.b32.xlu0 %v864, 16
  %v867 = vpop.permute.xlu0 %866
  %v869 = vadd.f32 %v216, %v867
  %v870 = vtanh.pop %v869
  %v871 = vsub.f32 1.0, %v858
  %873 = vrot.lane.b32.xlu0 %v870, 120
  %v874 = vpop.permute.xlu0 %873
  %v876 = vmul.f32 %v871, %v874
  %v877 = vmul.f32 %v858, %v666
  %v878 = vadd.f32 %v876, %v877
  %880 = vrot.lane.b32.xlu0 %v847, 120
  %v881 = vpop.permute.xlu0 %880
  %883 = vst.msk [vmem:[#allocation2 + $0x10] sm:$0xff] %vm247, %v881
  %885 = vrot.lane.b32.xlu0 %v878, 96
  %v886 = vpop.permute.xlu0 %885
  %888 = vst.msk [vmem:[#allocation3 + $0x28] sm:$0xff] %vm247, %v886
  %v889 = vsel %vm247, %v881, 0
  %891 = vmatprep.subr.mxu0 0.0
  %892 = vmatpush1.msra.mxu0 %v229
  %893 = vmatprep.subr.mxu0 0.0
  %894 = vmatpush1.msra.mxu0 0.0
  %895 = vmatprep.subr.mxu0 0.0
  %896 = vmatpush1.msra.mxu0 0.0
  %897 = vmatprep.subr.mxu0 0.0
  %898 = vmatpush1.msra.mxu0 0.0
  %899 = vmatprep.subr.mxu0 0.0
  %900 = vmatpush1.msra.mxu0 0.0
  %901 = vmatprep.subr.mxu0 0.0
  %902 = vmatpush1.msra.mxu0 0.0
  %903 = vmatprep.subr.mxu0 0.0
  %904 = vmatpush1.msra.mxu0 0.0
  %905 = vmatprep.subr.mxu0 0.0
  %906 = vmatpush1.msra.mxu0 0.0
  %907 = vmatprep.subr.mxu0 0.0
  %908 = vmatpush1.msra.mxu0 0.0
  %909 = vmatprep.subr.mxu0 0.0
  %910 = vmatpush1.msra.mxu0 0.0
  %911 = vmatprep.subr.mxu0 0.0
  %912 = vmatpush1.msra.mxu0 0.0
  %913 = vmatprep.subr.mxu0 0.0
  %914 = vmatpush1.msra.mxu0 0.0
  %915 = vmatprep.subr.mxu0 0.0
  %916 = vmatpush1.msra.mxu0 0.0
  %917 = vmatprep.subr.mxu0 0.0
  %918 = vmatpush1.msra.mxu0 0.0
  %919 = vmatprep.subr.mxu0 0.0
  %920 = vmatpush1.msra.mxu0 0.0
  %921 = vmatprep.subr.mxu0 0.0
  %922 = vmatpush1.msra.mxu0 0.0
  %923 = vmatprep.subr.mxu0 0.0
  %924 = vmatpush1.msra.mxu0 0.0
  %925 = vmatprep.subr.mxu0 0.0
  %926 = vmatpush1.msra.mxu0 0.0
  %927 = vmatprep.subr.mxu0 0.0
  %928 = vmatpush1.msra.mxu0 0.0
  %929 = vmatprep.subr.mxu0 0.0
  %930 = vmatpush1.msra.mxu0 0.0
  %931 = vmatprep.subr.mxu0 0.0
  %932 = vmatpush1.msra.mxu0 0.0
  %933 = vmatprep.subr.mxu0 0.0
  %934 = vmatpush1.msra.mxu0 0.0
  %935 = vmatprep.subr.mxu0 0.0
  %936 = vmatpush1.msra.mxu0 0.0
  %937 = vmatprep.subr.mxu0 0.0
  %938 = vmatpush1.msra.mxu0 0.0
  %939 = vmatprep.subr.mxu0 0.0
  %940 = vmatpush1.msra.mxu0 0.0
  %941 = vmatprep.subr.mxu0 0.0
  %942 = vmatpush1.msra.mxu0 0.0
  %943 = vmatprep.subr.mxu0 0.0
  %944 = vmatpush1.msra.mxu0 0.0
  %945 = vmatprep.subr.mxu0 0.0
  %946 = vmatpush1.msra.mxu0 0.0
  %947 = vmatprep.subr.mxu0 0.0
  %948 = vmatpush1.msra.mxu0 0.0
  %949 = vmatprep.subr.mxu0 0.0
  %950 = vmatpush1.msra.mxu0 0.0
  %951 = vmatprep.subr.mxu0 0.0
  %952 = vmatpush1.msra.mxu0 0.0
  %953 = vmatprep.subr.mxu0 0.0
  %954 = vmatpush1.msra.mxu0 0.0
  %955 = vmatprep.mubr.f32.mxu0 0.0
  %956 = vmatmul.mubr.f32.gmra.mrb[0].mxu0 %v889
  %v957 = vpop.f32.mrb[0].mxu0
  %v958 = vadd.f32 0.0, %v957
  %v959 = vpop.f32.mrb[0].mxu0
  %960 = vdwg.mxu0
  %v961 = vsel %vm247, %v886, 0
  %963 = vmatprep.subr.mxu0 0.0
  %964 = vmatpush1.msra.mxu0 %v230
  %965 = vmatprep.subr.mxu0 0.0
  %966 = vmatpush1.msra.mxu0 0.0
  %967 = vmatprep.subr.mxu0 0.0
  %968 = vmatpush1.msra.mxu0 0.0
  %969 = vmatprep.subr.mxu0 0.0
  %970 = vmatpush1.msra.mxu0 0.0
  %971 = vmatprep.subr.mxu0 0.0
  %972 = vmatpush1.msra.mxu0 0.0
  %973 = vmatprep.subr.mxu0 0.0
  %974 = vmatpush1.msra.mxu0 0.0
  %975 = vmatprep.subr.mxu0 0.0
  %976 = vmatpush1.msra.mxu0 0.0
  %977 = vmatprep.subr.mxu0 0.0
  %978 = vmatpush1.msra.mxu0 0.0
  %979 = vmatprep.subr.mxu0 0.0
  %980 = vmatpush1.msra.mxu0 0.0
  %981 = vmatprep.subr.mxu0 0.0
  %982 = vmatpush1.msra.mxu0 0.0
  %983 = vmatprep.subr.mxu0 0.0
  %984 = vmatpush1.msra.mxu0 0.0
  %985 = vmatprep.subr.mxu0 0.0
  %986 = vmatpush1.msra.mxu0 0.0
  %987 = vmatprep.subr.mxu0 0.0
  %988 = vmatpush1.msra.mxu0 0.0
  %989 = vmatprep.subr.mxu0 0.0
  %990 = vmatpush1.msra.mxu0 0.0
  %991 = vmatprep.subr.mxu0 0.0
  %992 = vmatpush1.msra.mxu0 0.0
  %993 = vmatprep.subr.mxu0 0.0
  %994 = vmatpush1.msra.mxu0 0.0
  %995 = vmatprep.subr.mxu0 0.0
  %996 = vmatpush1.msra.mxu0 0.0
  %997 = vmatprep.subr.mxu0 0.0
  %998 = vmatpush1.msra.mxu0 0.0
  %999 = vmatprep.subr.mxu0 0.0
  %1000 = vmatpush1.msra.mxu0 0.0
  %1001 = vmatprep.subr.mxu0 0.0
  %1002 = vmatpush1.msra.mxu0 0.0
  %1003 = vmatprep.subr.mxu0 0.0
  %1004 = vmatpush1.msra.mxu0 0.0
  %1005 = vmatprep.subr.mxu0 0.0
  %1006 = vmatpush1.msra.mxu0 0.0
  %1007 = vmatprep.subr.mxu0 0.0
  %1008 = vmatpush1.msra.mxu0 0.0
  %1009 = vmatprep.subr.mxu0 0.0
  %1010 = vmatpush1.msra.mxu0 0.0
  %1011 = vmatprep.subr.mxu0 0.0
  %1012 = vmatpush1.msra.mxu0 0.0
  %1013 = vmatprep.subr.mxu0 0.0
  %1014 = vmatpush1.msra.mxu0 0.0
  %1015 = vmatprep.subr.mxu0 0.0
  %1016 = vmatpush1.msra.mxu0 0.0
  %1017 = vmatprep.subr.mxu0 0.0
  %1018 = vmatpush1.msra.mxu0 0.0
  %1019 = vmatprep.subr.mxu0 0.0
  %1020 = vmatpush1.msra.mxu0 0.0
  %1021 = vmatprep.subr.mxu0 0.0
  %1022 = vmatpush1.msra.mxu0 0.0
  %1023 = vmatprep.subr.mxu0 0.0
  %1024 = vmatpush1.msra.mxu0 0.0
  %1025 = vmatprep.subr.mxu0 0.0
  %1026 = vmatpush1.msra.mxu0 0.0
  %1027 = vmatprep.mubr.f32.mxu0 0.0
  %1028 = vmatmul.mubr.f32.gmra.mrb[0].mxu0 %v961
  %v1029 = vpop.f32.mrb[0].mxu0
  %v1030 = vadd.f32 0.0, %v1029
  %v1031 = vpop.f32.mrb[0].mxu0
  %1032 = vdwg.mxu0
  %v1033 = vadd.f32 %v206, %v958
  %v1034 = vxor.u32 %v1033, 2147483648
  %v1035 = vmul.f32 %v1034, 1.442695
  %v1036 = vpow.pop %v1035
  %v1037 = vadd.f32 %v1036, 1.0
  %v1038 = vrcp.pop %v1037
  %v1039 = vmul.f32 1.0, %v1038
  %v1040 = vadd.f32 %v958, %v399
  %1042 = vrot.lane.b32.xlu0 %v1040, 112
  %v1043 = vpop.permute.xlu0 %1042
  %v1045 = vmul.f32 %v1039, %v1043
  %1047 = vrot.lane.b32.xlu0 %v1045, 16
  %v1048 = vpop.permute.xlu0 %1047
  %v1050 = vadd.f32 %v206, %v1048
  %v1051 = vtanh.pop %v1050
  %v1052 = vsub.f32 1.0, %v1039
  %1054 = vrot.lane.b32.xlu0 %v1051, 120
  %v1055 = vpop.permute.xlu0 %1054
  %v1057 = vmul.f32 %v1052, %v1055
  %v1058 = vmul.f32 %v1039, %v847
  %v1059 = vadd.f32 %v1057, %v1058
  %1061 = vrot.lane.b32.xlu0 %v1030, 24
  %v1062 = vpop.permute.xlu0 %1061
  %v1064 = vadd.f32 %v211, %v1062
  %v1065 = vxor.u32 %v1064, 2147483648
  %v1066 = vmul.f32 %v1065, 1.442695
  %v1067 = vpow.pop %v1066
  %v1068 = vadd.f32 %v1067, 1.0
  %v1069 = vrcp.pop %v1068
  %v1070 = vmul.f32 1.0, %v1069
  %v1071 = vadd.f32 %v1030, %v433
  %1073 = vrot.lane.b32.xlu0 %v1071, 8
  %v1074 = vpop.permute.xlu0 %1073
  %v1076 = vmul.f32 %v1070, %v1074
  %1078 = vrot.lane.b32.xlu0 %v1076, 16
  %v1079 = vpop.permute.xlu0 %1078
  %v1081 = vadd.f32 %v211, %v1079
  %v1082 = vtanh.pop %v1081
  %v1083 = vsub.f32 1.0, %v1070
  %1085 = vrot.lane.b32.xlu0 %v1082, 120
  %v1086 = vpop.permute.xlu0 %1085
  %v1088 = vmul.f32 %v1083, %v1086
  %v1089 = vmul.f32 %v1070, %v878
  %v1090 = vadd.f32 %v1088, %v1089
  %1092 = vrot.lane.b32.xlu0 %v1059, 120
  %v1093 = vpop.permute.xlu0 %1092
  %1095 = vst.msk [vmem:[#allocation2 + $0x18] sm:$0xff] %vm247, %v1093
  %1097 = vrot.lane.b32.xlu0 %v1090, 96
  %v1098 = vpop.permute.xlu0 %1097
  %1100 = vst.msk [vmem:[#allocation3 + $0x20] sm:$0xff] %vm247, %v1098
  %v1101 = vsel %vm247, %v1093, 0
  %1103 = vmatprep.subr.mxu0 0.0
  %1104 = vmatpush1.msra.mxu0 %v229
  %1105 = vmatprep.subr.mxu0 0.0
  %1106 = vmatpush1.msra.mxu0 0.0
  %1107 = vmatprep.subr.mxu0 0.0
  %1108 = vmatpush1.msra.mxu0 0.0
  %1109 = vmatprep.subr.mxu0 0.0
  %1110 = vmatpush1.msra.mxu0 0.0
  %1111 = vmatprep.subr.mxu0 0.0
  %1112 = vmatpush1.msra.mxu0 0.0
  %1113 = vmatprep.subr.mxu0 0.0
  %1114 = vmatpush1.msra.mxu0 0.0
  %1115 = vmatprep.subr.mxu0 0.0
  %1116 = vmatpush1.msra.mxu0 0.0
  %1117 = vmatprep.subr.mxu0 0.0
  %1118 = vmatpush1.msra.mxu0 0.0
  %1119 = vmatprep.subr.mxu0 0.0
  %1120 = vmatpush1.msra.mxu0 0.0
  %1121 = vmatprep.subr.mxu0 0.0
  %1122 = vmatpush1.msra.mxu0 0.0
  %1123 = vmatprep.subr.mxu0 0.0
  %1124 = vmatpush1.msra.mxu0 0.0
  %1125 = vmatprep.subr.mxu0 0.0
  %1126 = vmatpush1.msra.mxu0 0.0
  %1127 = vmatprep.subr.mxu0 0.0
  %1128 = vmatpush1.msra.mxu0 0.0
  %1129 = vmatprep.subr.mxu0 0.0
  %1130 = vmatpush1.msra.mxu0 0.0
  %1131 = vmatprep.subr.mxu0 0.0
  %1132 = vmatpush1.msra.mxu0 0.0
  %1133 = vmatprep.subr.mxu0 0.0
  %1134 = vmatpush1.msra.mxu0 0.0
  %1135 = vmatprep.subr.mxu0 0.0
  %1136 = vmatpush1.msra.mxu0 0.0
  %1137 = vmatprep.subr.mxu0 0.0
  %1138 = vmatpush1.msra.mxu0 0.0
  %1139 = vmatprep.subr.mxu0 0.0
  %1140 = vmatpush1.msra.mxu0 0.0
  %1141 = vmatprep.subr.mxu0 0.0
  %1142 = vmatpush1.msra.mxu0 0.0
  %1143 = vmatprep.subr.mxu0 0.0
  %1144 = vmatpush1.msra.mxu0 0.0
  %1145 = vmatprep.subr.mxu0 0.0
  %1146 = vmatpush1.msra.mxu0 0.0
  %1147 = vmatprep.subr.mxu0 0.0
  %1148 = vmatpush1.msra.mxu0 0.0
  %1149 = vmatprep.subr.mxu0 0.0
  %1150 = vmatpush1.msra.mxu0 0.0
  %1151 = vmatprep.subr.mxu0 0.0
  %1152 = vmatpush1.msra.mxu0 0.0
  %1153 = vmatprep.subr.mxu0 0.0
  %1154 = vmatpush1.msra.mxu0 0.0
  %1155 = vmatprep.subr.mxu0 0.0
  %1156 = vmatpush1.msra.mxu0 0.0
  %1157 = vmatprep.subr.mxu0 0.0
  %1158 = vmatpush1.msra.mxu0 0.0
  %1159 = vmatprep.subr.mxu0 0.0
  %1160 = vmatpush1.msra.mxu0 0.0
  %1161 = vmatprep.subr.mxu0 0.0
  %1162 = vmatpush1.msra.mxu0 0.0
  %1163 = vmatprep.subr.mxu0 0.0
  %1164 = vmatpush1.msra.mxu0 0.0
  %1165 = vmatprep.subr.mxu0 0.0
  %1166 = vmatpush1.msra.mxu0 0.0
  %1167 = vmatprep.mubr.f32.mxu0 0.0
  %1168 = vmatmul.mubr.f32.gmra.mrb[0].mxu0 %v1101
  %v1169 = vpop.f32.mrb[0].mxu0
  %v1170 = vadd.f32 0.0, %v1169
  %v1171 = vpop.f32.mrb[0].mxu0
  %1172 = vdwg.mxu0
  %v1173 = vsel %vm247, %v1098, 0
  %1175 = vmatprep.subr.mxu0 0.0
  %1176 = vmatpush1.msra.mxu0 %v230
  %1177 = vmatprep.subr.mxu0 0.0
  %1178 = vmatpush1.msra.mxu0 0.0
  %1179 = vmatprep.subr.mxu0 0.0
  %1180 = vmatpush1.msra.mxu0 0.0
  %1181 = vmatprep.subr.mxu0 0.0
  %1182 = vmatpush1.msra.mxu0 0.0
  %1183 = vmatprep.subr.mxu0 0.0
  %1184 = vmatpush1.msra.mxu0 0.0
  %1185 = vmatprep.subr.mxu0 0.0
  %1186 = vmatpush1.msra.mxu0 0.0
  %1187 = vmatprep.subr.mxu0 0.0
  %1188 = vmatpush1.msra.mxu0 0.0
  %1189 = vmatprep.subr.mxu0 0.0
  %1190 = vmatpush1.msra.mxu0 0.0
  %1191 = vmatprep.subr.mxu0 0.0
  %1192 = vmatpush1.msra.mxu0 0.0
  %1193 = vmatprep.subr.mxu0 0.0
  %1194 = vmatpush1.msra.mxu0 0.0
  %1195 = vmatprep.subr.mxu0 0.0
  %1196 = vmatpush1.msra.mxu0 0.0
  %1197 = vmatprep.subr.mxu0 0.0
  %1198 = vmatpush1.msra.mxu0 0.0
  %1199 = vmatprep.subr.mxu0 0.0
  %1200 = vmatpush1.msra.mxu0 0.0
  %1201 = vmatprep.subr.mxu0 0.0
  %1202 = vmatpush1.msra.mxu0 0.0
  %1203 = vmatprep.subr.mxu0 0.0
  %1204 = vmatpush1.msra.mxu0 0.0
  %1205 = vmatprep.subr.mxu0 0.0
  %1206 = vmatpush1.msra.mxu0 0.0
  %1207 = vmatprep.subr.mxu0 0.0
  %1208 = vmatpush1.msra.mxu0 0.0
  %1209 = vmatprep.subr.mxu0 0.0
  %1210 = vmatpush1.msra.mxu0 0.0
  %1211 = vmatprep.subr.mxu0 0.0
  %1212 = vmatpush1.msra.mxu0 0.0
  %1213 = vmatprep.subr.mxu0 0.0
  %1214 = vmatpush1.msra.mxu0 0.0
  %1215 = vmatprep.subr.mxu0 0.0
  %1216 = vmatpush1.msra.mxu0 0.0
  %1217 = vmatprep.subr.mxu0 0.0
  %1218 = vmatpush1.msra.mxu0 0.0
  %1219 = vmatprep.subr.mxu0 0.0
  %1220 = vmatpush1.msra.mxu0 0.0
  %1221 = vmatprep.subr.mxu0 0.0
  %1222 = vmatpush1.msra.mxu0 0.0
  %1223 = vmatprep.subr.mxu0 0.0
  %1224 = vmatpush1.msra.mxu0 0.0
  %1225 = vmatprep.subr.mxu0 0.0
  %1226 = vmatpush1.msra.mxu0 0.0
  %1227 = vmatprep.subr.mxu0 0.0
  %1228 = vmatpush1.msra.mxu0 0.0
  %1229 = vmatprep.subr.mxu0 0.0
  %1230 = vmatpush1.msra.mxu0 0.0
  %1231 = vmatprep.subr.mxu0 0.0
  %1232 = vmatpush1.msra.mxu0 0.0
  %1233 = vmatprep.subr.mxu0 0.0
  %1234 = vmatpush1.msra.mxu0 0.0
  %1235 = vmatprep.subr.mxu0 0.0
  %1236 = vmatpush1.msra.mxu0 0.0
  %1237 = vmatprep.subr.mxu0 0.0
  %1238 = vmatpush1.msra.mxu0 0.0
  %1239 = vmatprep.mubr.f32.mxu0 0.0
  %1240 = vmatmul.mubr.f32.gmra.mrb[0].mxu0 %v1173
  %v1241 = vpop.f32.mrb[0].mxu0
  %v1242 = vadd.f32 0.0, %v1241
  %v1243 = vpop.f32.mrb[0].mxu0
  %1244 = vdwg.mxu0
  %v1245 = vadd.f32 %v211, %v1170
  %v1246 = vxor.u32 %v1245, 2147483648
  %v1247 = vmul.f32 %v1246, 1.442695
  %v1248 = vpow.pop %v1247
  %v1249 = vadd.f32 %v1248, 1.0
  %v1250 = vrcp.pop %v1249
  %v1251 = vmul.f32 1.0, %v1250
  %v1252 = vadd.f32 %v1170, %v399
  %1254 = vrot.lane.b32.xlu0 %v1252, 112
  %v1255 = vpop.permute.xlu0 %1254
  %v1257 = vmul.f32 %v1251, %v1255
  %1259 = vrot.lane.b32.xlu0 %v1257, 16
  %v1260 = vpop.permute.xlu0 %1259
  %v1262 = vadd.f32 %v211, %v1260
  %v1263 = vtanh.pop %v1262
  %v1264 = vsub.f32 1.0, %v1251
  %1266 = vrot.lane.b32.xlu0 %v1263, 120
  %v1267 = vpop.permute.xlu0 %1266
  %v1269 = vmul.f32 %v1264, %v1267
  %v1270 = vmul.f32 %v1251, %v1059
  %v1271 = vadd.f32 %v1269, %v1270
  %1273 = vrot.lane.b32.xlu0 %v1242, 24
  %v1274 = vpop.permute.xlu0 %1273
  %v1276 = vadd.f32 %v206, %v1274
  %v1277 = vxor.u32 %v1276, 2147483648
  %v1278 = vmul.f32 %v1277, 1.442695
  %v1279 = vpow.pop %v1278
  %v1280 = vadd.f32 %v1279, 1.0
  %v1281 = vrcp.pop %v1280
  %v1282 = vmul.f32 1.0, %v1281
  %v1283 = vadd.f32 %v1242, %v433
  %1285 = vrot.lane.b32.xlu0 %v1283, 8
  %v1286 = vpop.permute.xlu0 %1285
  %v1288 = vmul.f32 %v1282, %v1286
  %1290 = vrot.lane.b32.xlu0 %v1288, 16
  %v1291 = vpop.permute.xlu0 %1290
  %v1293 = vadd.f32 %v206, %v1291
  %v1294 = vtanh.pop %v1293
  %v1295 = vsub.f32 1.0, %v1282
  %1297 = vrot.lane.b32.xlu0 %v1294, 120
  %v1298 = vpop.permute.xlu0 %1297
  %v1300 = vmul.f32 %v1295, %v1298
  %v1301 = vmul.f32 %v1282, %v1090
  %v1302 = vadd.f32 %v1300, %v1301
  %1304 = vrot.lane.b32.xlu0 %v1271, 120
  %v1305 = vpop.permute.xlu0 %1304
  %1307 = vst.msk [vmem:[#allocation2 + $0x20] sm:$0xff] %vm247, %v1305
  %1309 = vrot.lane.b32.xlu0 %v1302, 96
  %v1310 = vpop.permute.xlu0 %1309
  %1312 = vst.msk [vmem:[#allocation3 + $0x18] sm:$0xff] %vm247, %v1310
  %v1313 = vsel %vm247, %v1305, 0
  %1315 = vmatprep.subr.mxu0 0.0
  %1316 = vmatpush1.msra.mxu0 %v229
  %1317 = vmatprep.subr.mxu0 0.0
  %1318 = vmatpush1.msra.mxu0 0.0
  %1319 = vmatprep.subr.mxu0 0.0
  %1320 = vmatpush1.msra.mxu0 0.0
  %1321 = vmatprep.subr.mxu0 0.0
  %1322 = vmatpush1.msra.mxu0 0.0
  %1323 = vmatprep.subr.mxu0 0.0
  %1324 = vmatpush1.msra.mxu0 0.0
  %1325 = vmatprep.subr.mxu0 0.0
  %1326 = vmatpush1.msra.mxu0 0.0
  %1327 = vmatprep.subr.mxu0 0.0
  %1328 = vmatpush1.msra.mxu0 0.0
  %1329 = vmatprep.subr.mxu0 0.0
  %1330 = vmatpush1.msra.mxu0 0.0
  %1331 = vmatprep.subr.mxu0 0.0
  %1332 = vmatpush1.msra.mxu0 0.0
  %1333 = vmatprep.subr.mxu0 0.0
  %1334 = vmatpush1.msra.mxu0 0.0
  %1335 = vmatprep.subr.mxu0 0.0
  %1336 = vmatpush1.msra.mxu0 0.0
  %1337 = vmatprep.subr.mxu0 0.0
  %1338 = vmatpush1.msra.mxu0 0.0
  %1339 = vmatprep.subr.mxu0 0.0
  %1340 = vmatpush1.msra.mxu0 0.0
  %1341 = vmatprep.subr.mxu0 0.0
  %1342 = vmatpush1.msra.mxu0 0.0
  %1343 = vmatprep.subr.mxu0 0.0
  %1344 = vmatpush1.msra.mxu0 0.0
  %1345 = vmatprep.subr.mxu0 0.0
  %1346 = vmatpush1.msra.mxu0 0.0
  %1347 = vmatprep.subr.mxu0 0.0
  %1348 = vmatpush1.msra.mxu0 0.0
  %1349 = vmatprep.subr.mxu0 0.0
  %1350 = vmatpush1.msra.mxu0 0.0
  %1351 = vmatprep.subr.mxu0 0.0
  %1352 = vmatpush1.msra.mxu0 0.0
  %1353 = vmatprep.subr.mxu0 0.0
  %1354 = vmatpush1.msra.mxu0 0.0
  %1355 = vmatprep.subr.mxu0 0.0
  %1356 = vmatpush1.msra.mxu0 0.0
  %1357 = vmatprep.subr.mxu0 0.0
  %1358 = vmatpush1.msra.mxu0 0.0
  %1359 = vmatprep.subr.mxu0 0.0
  %1360 = vmatpush1.msra.mxu0 0.0
  %1361 = vmatprep.subr.mxu0 0.0
  %1362 = vmatpush1.msra.mxu0 0.0
  %1363 = vmatprep.subr.mxu0 0.0
  %1364 = vmatpush1.msra.mxu0 0.0
  %1365 = vmatprep.subr.mxu0 0.0
  %1366 = vmatpush1.msra.mxu0 0.0
  %1367 = vmatprep.subr.mxu0 0.0
  %1368 = vmatpush1.msra.mxu0 0.0
  %1369 = vmatprep.subr.mxu0 0.0
  %1370 = vmatpush1.msra.mxu0 0.0
  %1371 = vmatprep.subr.mxu0 0.0
  %1372 = vmatpush1.msra.mxu0 0.0
  %1373 = vmatprep.subr.mxu0 0.0
  %1374 = vmatpush1.msra.mxu0 0.0
  %1375 = vmatprep.subr.mxu0 0.0
  %1376 = vmatpush1.msra.mxu0 0.0
  %1377 = vmatprep.subr.mxu0 0.0
  %1378 = vmatpush1.msra.mxu0 0.0
  %1379 = vmatprep.mubr.f32.mxu0 0.0
  %1380 = vmatmul.mubr.f32.gmra.mrb[0].mxu0 %v1313
  %v1381 = vpop.f32.mrb[0].mxu0
  %v1382 = vadd.f32 0.0, %v1381
  %v1383 = vpop.f32.mrb[0].mxu0
  %1384 = vdwg.mxu0
  %v1385 = vsel %vm247, %v1310, 0
  %1387 = vmatprep.subr.mxu0 0.0
  %1388 = vmatpush1.msra.mxu0 %v230
  %1389 = vmatprep.subr.mxu0 0.0
  %1390 = vmatpush1.msra.mxu0 0.0
  %1391 = vmatprep.subr.mxu0 0.0
  %1392 = vmatpush1.msra.mxu0 0.0
  %1393 = vmatprep.subr.mxu0 0.0
  %1394 = vmatpush1.msra.mxu0 0.0
  %1395 = vmatprep.subr.mxu0 0.0
  %1396 = vmatpush1.msra.mxu0 0.0
  %1397 = vmatprep.subr.mxu0 0.0
  %1398 = vmatpush1.msra.mxu0 0.0
  %1399 = vmatprep.subr.mxu0 0.0
  %1400 = vmatpush1.msra.mxu0 0.0
  %1401 = vmatprep.subr.mxu0 0.0
  %1402 = vmatpush1.msra.mxu0 0.0
  %1403 = vmatprep.subr.mxu0 0.0
  %1404 = vmatpush1.msra.mxu0 0.0
  %1405 = vmatprep.subr.mxu0 0.0
  %1406 = vmatpush1.msra.mxu0 0.0
  %1407 = vmatprep.subr.mxu0 0.0
  %1408 = vmatpush1.msra.mxu0 0.0
  %1409 = vmatprep.subr.mxu0 0.0
  %1410 = vmatpush1.msra.mxu0 0.0
  %1411 = vmatprep.subr.mxu0 0.0
  %1412 = vmatpush1.msra.mxu0 0.0
  %1413 = vmatprep.subr.mxu0 0.0
  %1414 = vmatpush1.msra.mxu0 0.0
  %1415 = vmatprep.subr.mxu0 0.0
  %1416 = vmatpush1.msra.mxu0 0.0
  %1417 = vmatprep.subr.mxu0 0.0
  %1418 = vmatpush1.msra.mxu0 0.0
  %1419 = vmatprep.subr.mxu0 0.0
  %1420 = vmatpush1.msra.mxu0 0.0
  %1421 = vmatprep.subr.mxu0 0.0
  %1422 = vmatpush1.msra.mxu0 0.0
  %1423 = vmatprep.subr.mxu0 0.0
  %1424 = vmatpush1.msra.mxu0 0.0
  %1425 = vmatprep.subr.mxu0 0.0
  %1426 = vmatpush1.msra.mxu0 0.0
  %1427 = vmatprep.subr.mxu0 0.0
  %1428 = vmatpush1.msra.mxu0 0.0
  %1429 = vmatprep.subr.mxu0 0.0
  %1430 = vmatpush1.msra.mxu0 0.0
  %1431 = vmatprep.subr.mxu0 0.0
  %1432 = vmatpush1.msra.mxu0 0.0
  %1433 = vmatprep.subr.mxu0 0.0
  %1434 = vmatpush1.msra.mxu0 0.0
  %1435 = vmatprep.subr.mxu0 0.0
  %1436 = vmatpush1.msra.mxu0 0.0
  %1437 = vmatprep.subr.mxu0 0.0
  %1438 = vmatpush1.msra.mxu0 0.0
  %1439 = vmatprep.subr.mxu0 0.0
  %1440 = vmatpush1.msra.mxu0 0.0
  %1441 = vmatprep.subr.mxu0 0.0
  %1442 = vmatpush1.msra.mxu0 0.0
  %1443 = vmatprep.subr.mxu0 0.0
  %1444 = vmatpush1.msra.mxu0 0.0
  %1445 = vmatprep.subr.mxu0 0.0
  %1446 = vmatpush1.msra.mxu0 0.0
  %1447 = vmatprep.subr.mxu0 0.0
  %1448 = vmatpush1.msra.mxu0 0.0
  %1449 = vmatprep.subr.mxu0 0.0
  %1450 = vmatpush1.msra.mxu0 0.0
  %1451 = vmatprep.mubr.f32.mxu0 0.0
  %1452 = vmatmul.mubr.f32.gmra.mrb[0].mxu0 %v1385
  %v1453 = vpop.f32.mrb[0].mxu0
  %v1454 = vadd.f32 0.0, %v1453
  %v1455 = vpop.f32.mrb[0].mxu0
  %1456 = vdwg.mxu0
  %v1457 = vadd.f32 %v216, %v1382
  %v1458 = vxor.u32 %v1457, 2147483648
  %v1459 = vmul.f32 %v1458, 1.442695
  %v1460 = vpow.pop %v1459
  %v1461 = vadd.f32 %v1460, 1.0
  %v1462 = vrcp.pop %v1461
  %v1463 = vmul.f32 1.0, %v1462
  %v1464 = vadd.f32 %v1382, %v399
  %1466 = vrot.lane.b32.xlu0 %v1464, 112
  %v1467 = vpop.permute.xlu0 %1466
  %v1469 = vmul.f32 %v1463, %v1467
  %1471 = vrot.lane.b32.xlu0 %v1469, 16
  %v1472 = vpop.permute.xlu0 %1471
  %v1474 = vadd.f32 %v216, %v1472
  %v1475 = vtanh.pop %v1474
  %v1476 = vsub.f32 1.0, %v1463
  %1478 = vrot.lane.b32.xlu0 %v1475, 120
  %v1479 = vpop.permute.xlu0 %1478
  %v1481 = vmul.f32 %v1476, %v1479
  %v1482 = vmul.f32 %v1463, %v1271
  %v1483 = vadd.f32 %v1481, %v1482
  %1485 = vrot.lane.b32.xlu0 %v1454, 24
  %v1486 = vpop.permute.xlu0 %1485
  %v1488 = vadd.f32 %v201, %v1486
  %v1489 = vxor.u32 %v1488, 2147483648
  %v1490 = vmul.f32 %v1489, 1.442695
  %v1491 = vpow.pop %v1490
  %v1492 = vadd.f32 %v1491, 1.0
  %v1493 = vrcp.pop %v1492
  %v1494 = vmul.f32 1.0, %v1493
  %v1495 = vadd.f32 %v1454, %v433
  %1497 = vrot.lane.b32.xlu0 %v1495, 8
  %v1498 = vpop.permute.xlu0 %1497
  %v1500 = vmul.f32 %v1494, %v1498
  %1502 = vrot.lane.b32.xlu0 %v1500, 16
  %v1503 = vpop.permute.xlu0 %1502
  %v1505 = vadd.f32 %v201, %v1503
  %v1506 = vtanh.pop %v1505
  %v1507 = vsub.f32 1.0, %v1494
  %1509 = vrot.lane.b32.xlu0 %v1506, 120
  %v1510 = vpop.permute.xlu0 %1509
  %v1512 = vmul.f32 %v1507, %v1510
  %v1513 = vmul.f32 %v1494, %v1302
  %v1514 = vadd.f32 %v1512, %v1513
  %1516 = vrot.lane.b32.xlu0 %v1483, 120
  %v1517 = vpop.permute.xlu0 %1516
  %1519 = vst.msk [vmem:[#allocation2 + $0x28] sm:$0xff] %vm247, %v1517
  %1521 = vrot.lane.b32.xlu0 %v1514, 96
  %v1522 = vpop.permute.xlu0 %1521
  %1524 = vst.msk [vmem:[#allocation3 + $0x10] sm:$0xff] %vm247, %v1522
  %v1525 = vsel %vm247, %v1517, 0
  %1527 = vmatprep.subr.mxu0 0.0
  %1528 = vmatpush1.msra.mxu0 %v229
  %1529 = vmatprep.subr.mxu0 0.0
  %1530 = vmatpush1.msra.mxu0 0.0
  %1531 = vmatprep.subr.mxu0 0.0
  %1532 = vmatpush1.msra.mxu0 0.0
  %1533 = vmatprep.subr.mxu0 0.0
  %1534 = vmatpush1.msra.mxu0 0.0
  %1535 = vmatprep.subr.mxu0 0.0
  %1536 = vmatpush1.msra.mxu0 0.0
  %1537 = vmatprep.subr.mxu0 0.0
  %1538 = vmatpush1.msra.mxu0 0.0
  %1539 = vmatprep.subr.mxu0 0.0
  %1540 = vmatpush1.msra.mxu0 0.0
  %1541 = vmatprep.subr.mxu0 0.0
  %1542 = vmatpush1.msra.mxu0 0.0
  %1543 = vmatprep.subr.mxu0 0.0
  %1544 = vmatpush1.msra.mxu0 0.0
  %1545 = vmatprep.subr.mxu0 0.0
  %1546 = vmatpush1.msra.mxu0 0.0
  %1547 = vmatprep.subr.mxu0 0.0
  %1548 = vmatpush1.msra.mxu0 0.0
  %1549 = vmatprep.subr.mxu0 0.0
  %1550 = vmatpush1.msra.mxu0 0.0
  %1551 = vmatprep.subr.mxu0 0.0
  %1552 = vmatpush1.msra.mxu0 0.0
  %1553 = vmatprep.subr.mxu0 0.0
  %1554 = vmatpush1.msra.mxu0 0.0
  %1555 = vmatprep.subr.mxu0 0.0
  %1556 = vmatpush1.msra.mxu0 0.0
  %1557 = vmatprep.subr.mxu0 0.0
  %1558 = vmatpush1.msra.mxu0 0.0
  %1559 = vmatprep.subr.mxu0 0.0
  %1560 = vmatpush1.msra.mxu0 0.0
  %1561 = vmatprep.subr.mxu0 0.0
  %1562 = vmatpush1.msra.mxu0 0.0
  %1563 = vmatprep.subr.mxu0 0.0
  %1564 = vmatpush1.msra.mxu0 0.0
  %1565 = vmatprep.subr.mxu0 0.0
  %1566 = vmatpush1.msra.mxu0 0.0
  %1567 = vmatprep.subr.mxu0 0.0
  %1568 = vmatpush1.msra.mxu0 0.0
  %1569 = vmatprep.subr.mxu0 0.0
  %1570 = vmatpush1.msra.mxu0 0.0
  %1571 = vmatprep.subr.mxu0 0.0
  %1572 = vmatpush1.msra.mxu0 0.0
  %1573 = vmatprep.subr.mxu0 0.0
  %1574 = vmatpush1.msra.mxu0 0.0
  %1575 = vmatprep.subr.mxu0 0.0
  %1576 = vmatpush1.msra.mxu0 0.0
  %1577 = vmatprep.subr.mxu0 0.0
  %1578 = vmatpush1.msra.mxu0 0.0
  %1579 = vmatprep.subr.mxu0 0.0
  %1580 = vmatpush1.msra.mxu0 0.0
  %1581 = vmatprep.subr.mxu0 0.0
  %1582 = vmatpush1.msra.mxu0 0.0
  %1583 = vmatprep.subr.mxu0 0.0
  %1584 = vmatpush1.msra.mxu0 0.0
  %1585 = vmatprep.subr.mxu0 0.0
  %1586 = vmatpush1.msra.mxu0 0.0
  %1587 = vmatprep.subr.mxu0 0.0
  %1588 = vmatpush1.msra.mxu0 0.0
  %1589 = vmatprep.subr.mxu0 0.0
  %1590 = vmatpush1.msra.mxu0 0.0
  %1591 = vmatprep.mubr.f32.mxu0 0.0
  %1592 = vmatmul.mubr.f32.gmra.mrb[0].mxu0 %v1525
  %v1593 = vpop.f32.mrb[0].mxu0
  %v1594 = vadd.f32 0.0, %v1593
  %v1595 = vpop.f32.mrb[0].mxu0
  %1596 = vdwg.mxu0
  %v1597 = vsel %vm247, %v1522, 0
  %1599 = vmatprep.subr.mxu0 0.0
  %1600 = vmatpush1.msra.mxu0 %v230
  %1601 = vmatprep.subr.mxu0 0.0
  %1602 = vmatpush1.msra.mxu0 0.0
  %1603 = vmatprep.subr.mxu0 0.0
  %1604 = vmatpush1.msra.mxu0 0.0
  %1605 = vmatprep.subr.mxu0 0.0
  %1606 = vmatpush1.msra.mxu0 0.0
  %1607 = vmatprep.subr.mxu0 0.0
  %1608 = vmatpush1.msra.mxu0 0.0
  %1609 = vmatprep.subr.mxu0 0.0
  %1610 = vmatpush1.msra.mxu0 0.0
  %1611 = vmatprep.subr.mxu0 0.0
  %1612 = vmatpush1.msra.mxu0 0.0
  %1613 = vmatprep.subr.mxu0 0.0
  %1614 = vmatpush1.msra.mxu0 0.0
  %1615 = vmatprep.subr.mxu0 0.0
  %1616 = vmatpush1.msra.mxu0 0.0
  %1617 = vmatprep.subr.mxu0 0.0
  %1618 = vmatpush1.msra.mxu0 0.0
  %1619 = vmatprep.subr.mxu0 0.0
  %1620 = vmatpush1.msra.mxu0 0.0
  %1621 = vmatprep.subr.mxu0 0.0
  %1622 = vmatpush1.msra.mxu0 0.0
  %1623 = vmatprep.subr.mxu0 0.0
  %1624 = vmatpush1.msra.mxu0 0.0
  %1625 = vmatprep.subr.mxu0 0.0
  %1626 = vmatpush1.msra.mxu0 0.0
  %1627 = vmatprep.subr.mxu0 0.0
  %1628 = vmatpush1.msra.mxu0 0.0
  %1629 = vmatprep.subr.mxu0 0.0
  %1630 = vmatpush1.msra.mxu0 0.0
  %1631 = vmatprep.subr.mxu0 0.0
  %1632 = vmatpush1.msra.mxu0 0.0
  %1633 = vmatprep.subr.mxu0 0.0
  %1634 = vmatpush1.msra.mxu0 0.0
  %1635 = vmatprep.subr.mxu0 0.0
  %1636 = vmatpush1.msra.mxu0 0.0
  %1637 = vmatprep.subr.mxu0 0.0
  %1638 = vmatpush1.msra.mxu0 0.0
  %1639 = vmatprep.subr.mxu0 0.0
  %1640 = vmatpush1.msra.mxu0 0.0
  %1641 = vmatprep.subr.mxu0 0.0
  %1642 = vmatpush1.msra.mxu0 0.0
  %1643 = vmatprep.subr.mxu0 0.0
  %1644 = vmatpush1.msra.mxu0 0.0
  %1645 = vmatprep.subr.mxu0 0.0
  %1646 = vmatpush1.msra.mxu0 0.0
  %1647 = vmatprep.subr.mxu0 0.0
  %1648 = vmatpush1.msra.mxu0 0.0
  %1649 = vmatprep.subr.mxu0 0.0
  %1650 = vmatpush1.msra.mxu0 0.0
  %1651 = vmatprep.subr.mxu0 0.0
  %1652 = vmatpush1.msra.mxu0 0.0
  %1653 = vmatprep.subr.mxu0 0.0
  %1654 = vmatpush1.msra.mxu0 0.0
  %1655 = vmatprep.subr.mxu0 0.0
  %1656 = vmatpush1.msra.mxu0 0.0
  %1657 = vmatprep.subr.mxu0 0.0
  %1658 = vmatpush1.msra.mxu0 0.0
  %1659 = vmatprep.subr.mxu0 0.0
  %1660 = vmatpush1.msra.mxu0 0.0
  %1661 = vmatprep.subr.mxu0 0.0
  %1662 = vmatpush1.msra.mxu0 0.0
  %1663 = vmatprep.mubr.f32.mxu0 0.0
  %1664 = vmatmul.mubr.f32.gmra.mrb[0].mxu0 %v1597
  %v1665 = vpop.f32.mrb[0].mxu0
  %v1666 = vadd.f32 0.0, %v1665
  %v1667 = vpop.f32.mrb[0].mxu0
  %1668 = vdwg.mxu0
  %v1669 = vadd.f32 %v221, %v1594
  %v1670 = vxor.u32 %v1669, 2147483648
  %v1671 = vmul.f32 %v1670, 1.442695
  %v1672 = vpow.pop %v1671
  %v1673 = vadd.f32 %v1672, 1.0
  %v1674 = vrcp.pop %v1673
  %v1675 = vmul.f32 1.0, %v1674
  %v1676 = vadd.f32 %v1594, %v399
  %1678 = vrot.lane.b32.xlu0 %v1676, 112
  %v1679 = vpop.permute.xlu0 %1678
  %v1681 = vmul.f32 %v1675, %v1679
  %1683 = vrot.lane.b32.xlu0 %v1681, 16
  %v1684 = vpop.permute.xlu0 %1683
  %v1686 = vadd.f32 %v221, %v1684
  %v1687 = vtanh.pop %v1686
  %v1688 = vsub.f32 1.0, %v1675
  %1690 = vrot.lane.b32.xlu0 %v1687, 120
  %v1691 = vpop.permute.xlu0 %1690
  %v1693 = vmul.f32 %v1688, %v1691
  %v1694 = vmul.f32 %v1675, %v1483
  %v1695 = vadd.f32 %v1693, %v1694
  %1697 = vrot.lane.b32.xlu0 %v1666, 24
  %v1698 = vpop.permute.xlu0 %1697
  %v1700 = vadd.f32 %v196, %v1698
  %v1701 = vxor.u32 %v1700, 2147483648
  %v1702 = vmul.f32 %v1701, 1.442695
  %v1703 = vpow.pop %v1702
  %v1704 = vadd.f32 %v1703, 1.0
  %v1705 = vrcp.pop %v1704
  %v1706 = vmul.f32 1.0, %v1705
  %v1707 = vadd.f32 %v1666, %v433
  %1709 = vrot.lane.b32.xlu0 %v1707, 8
  %v1710 = vpop.permute.xlu0 %1709
  %v1712 = vmul.f32 %v1706, %v1710
  %1714 = vrot.lane.b32.xlu0 %v1712, 16
  %v1715 = vpop.permute.xlu0 %1714
  %v1717 = vadd.f32 %v196, %v1715
  %v1718 = vtanh.pop %v1717
  %v1719 = vsub.f32 1.0, %v1706
  %1721 = vrot.lane.b32.xlu0 %v1718, 120
  %v1722 = vpop.permute.xlu0 %1721
  %v1724 = vmul.f32 %v1719, %v1722
  %v1725 = vmul.f32 %v1706, %v1514
  %v1726 = vadd.f32 %v1724, %v1725
  %1728 = vrot.lane.b32.xlu0 %v1695, 120
  %v1729 = vpop.permute.xlu0 %1728
  %1731 = vst.msk [vmem:[#allocation2 + $0x30] sm:$0xff] %vm247, %v1729
  %1733 = vrot.lane.b32.xlu0 %v1726, 96
  %v1734 = vpop.permute.xlu0 %1733
  %1736 = vst.msk [vmem:[#allocation3 + $0x8] sm:$0xff] %vm247, %v1734
  %v1737 = vsel %vm247, %v1729, 0
  %1739 = vmatprep.subr.mxu0 0.0
  %1740 = vmatpush1.msra.mxu0 %v229
  %1741 = vmatprep.subr.mxu0 0.0
  %1742 = vmatpush1.msra.mxu0 0.0
  %1743 = vmatprep.subr.mxu0 0.0
  %1744 = vmatpush1.msra.mxu0 0.0
  %1745 = vmatprep.subr.mxu0 0.0
  %1746 = vmatpush1.msra.mxu0 0.0
  %1747 = vmatprep.subr.mxu0 0.0
  %1748 = vmatpush1.msra.mxu0 0.0
  %1749 = vmatprep.subr.mxu0 0.0
  %1750 = vmatpush1.msra.mxu0 0.0
  %1751 = vmatprep.subr.mxu0 0.0
  %1752 = vmatpush1.msra.mxu0 0.0
  %1753 = vmatprep.subr.mxu0 0.0
  %1754 = vmatpush1.msra.mxu0 0.0
  %1755 = vmatprep.subr.mxu0 0.0
  %1756 = vmatpush1.msra.mxu0 0.0
  %1757 = vmatprep.subr.mxu0 0.0
  %1758 = vmatpush1.msra.mxu0 0.0
  %1759 = vmatprep.subr.mxu0 0.0
  %1760 = vmatpush1.msra.mxu0 0.0
  %1761 = vmatprep.subr.mxu0 0.0
  %1762 = vmatpush1.msra.mxu0 0.0
  %1763 = vmatprep.subr.mxu0 0.0
  %1764 = vmatpush1.msra.mxu0 0.0
  %1765 = vmatprep.subr.mxu0 0.0
  %1766 = vmatpush1.msra.mxu0 0.0
  %1767 = vmatprep.subr.mxu0 0.0
  %1768 = vmatpush1.msra.mxu0 0.0
  %1769 = vmatprep.subr.mxu0 0.0
  %1770 = vmatpush1.msra.mxu0 0.0
  %1771 = vmatprep.subr.mxu0 0.0
  %1772 = vmatpush1.msra.mxu0 0.0
  %1773 = vmatprep.subr.mxu0 0.0
  %1774 = vmatpush1.msra.mxu0 0.0
  %1775 = vmatprep.subr.mxu0 0.0
  %1776 = vmatpush1.msra.mxu0 0.0
  %1777 = vmatprep.subr.mxu0 0.0
  %1778 = vmatpush1.msra.mxu0 0.0
  %1779 = vmatprep.subr.mxu0 0.0
  %1780 = vmatpush1.msra.mxu0 0.0
  %1781 = vmatprep.subr.mxu0 0.0
  %1782 = vmatpush1.msra.mxu0 0.0
  %1783 = vmatprep.subr.mxu0 0.0
  %1784 = vmatpush1.msra.mxu0 0.0
  %1785 = vmatprep.subr.mxu0 0.0
  %1786 = vmatpush1.msra.mxu0 0.0
  %1787 = vmatprep.subr.mxu0 0.0
  %1788 = vmatpush1.msra.mxu0 0.0
  %1789 = vmatprep.subr.mxu0 0.0
  %1790 = vmatpush1.msra.mxu0 0.0
  %1791 = vmatprep.subr.mxu0 0.0
  %1792 = vmatpush1.msra.mxu0 0.0
  %1793 = vmatprep.subr.mxu0 0.0
  %1794 = vmatpush1.msra.mxu0 0.0
  %1795 = vmatprep.subr.mxu0 0.0
  %1796 = vmatpush1.msra.mxu0 0.0
  %1797 = vmatprep.subr.mxu0 0.0
  %1798 = vmatpush1.msra.mxu0 0.0
  %1799 = vmatprep.subr.mxu0 0.0
  %1800 = vmatpush1.msra.mxu0 0.0
  %1801 = vmatprep.subr.mxu0 0.0
  %1802 = vmatpush1.msra.mxu0 0.0
  %1803 = vmatprep.mubr.f32.mxu0 0.0
  %1804 = vmatmul.mubr.f32.gmra.mrb[0].mxu0 %v1737
  %v1805 = vpop.f32.mrb[0].mxu0
  %v1806 = vadd.f32 0.0, %v1805
  %v1807 = vpop.f32.mrb[0].mxu0
  %1808 = vdwg.mxu0
  %v1809 = vsel %vm247, %v1734, 0
  %1811 = vmatprep.subr.mxu0 0.0
  %1812 = vmatpush1.msra.mxu0 %v230
  %1813 = vmatprep.subr.mxu0 0.0
  %1814 = vmatpush1.msra.mxu0 0.0
  %1815 = vmatprep.subr.mxu0 0.0
  %1816 = vmatpush1.msra.mxu0 0.0
  %1817 = vmatprep.subr.mxu0 0.0
  %1818 = vmatpush1.msra.mxu0 0.0
  %1819 = vmatprep.subr.mxu0 0.0
  %1820 = vmatpush1.msra.mxu0 0.0
  %1821 = vmatprep.subr.mxu0 0.0
  %1822 = vmatpush1.msra.mxu0 0.0
  %1823 = vmatprep.subr.mxu0 0.0
  %1824 = vmatpush1.msra.mxu0 0.0
  %1825 = vmatprep.subr.mxu0 0.0
  %1826 = vmatpush1.msra.mxu0 0.0
  %1827 = vmatprep.subr.mxu0 0.0
  %1828 = vmatpush1.msra.mxu0 0.0
  %1829 = vmatprep.subr.mxu0 0.0
  %1830 = vmatpush1.msra.mxu0 0.0
  %1831 = vmatprep.subr.mxu0 0.0
  %1832 = vmatpush1.msra.mxu0 0.0
  %1833 = vmatprep.subr.mxu0 0.0
  %1834 = vmatpush1.msra.mxu0 0.0
  %1835 = vmatprep.subr.mxu0 0.0
  %1836 = vmatpush1.msra.mxu0 0.0
  %1837 = vmatprep.subr.mxu0 0.0
  %1838 = vmatpush1.msra.mxu0 0.0
  %1839 = vmatprep.subr.mxu0 0.0
  %1840 = vmatpush1.msra.mxu0 0.0
  %1841 = vmatprep.subr.mxu0 0.0
  %1842 = vmatpush1.msra.mxu0 0.0
  %1843 = vmatprep.subr.mxu0 0.0
  %1844 = vmatpush1.msra.mxu0 0.0
  %1845 = vmatprep.subr.mxu0 0.0
  %1846 = vmatpush1.msra.mxu0 0.0
  %1847 = vmatprep.subr.mxu0 0.0
  %1848 = vmatpush1.msra.mxu0 0.0
  %1849 = vmatprep.subr.mxu0 0.0
  %1850 = vmatpush1.msra.mxu0 0.0
  %1851 = vmatprep.subr.mxu0 0.0
  %1852 = vmatpush1.msra.mxu0 0.0
  %1853 = vmatprep.subr.mxu0 0.0
  %1854 = vmatpush1.msra.mxu0 0.0
  %1855 = vmatprep.subr.mxu0 0.0
  %1856 = vmatpush1.msra.mxu0 0.0
  %1857 = vmatprep.subr.mxu0 0.0
  %1858 = vmatpush1.msra.mxu0 0.0
  %1859 = vmatprep.subr.mxu0 0.0
  %1860 = vmatpush1.msra.mxu0 0.0
  %1861 = vmatprep.subr.mxu0 0.0
  %1862 = vmatpush1.msra.mxu0 0.0
  %1863 = vmatprep.subr.mxu0 0.0
  %1864 = vmatpush1.msra.mxu0 0.0
  %1865 = vmatprep.subr.mxu0 0.0
  %1866 = vmatpush1.msra.mxu0 0.0
  %1867 = vmatprep.subr.mxu0 0.0
  %1868 = vmatpush1.msra.mxu0 0.0
  %1869 = vmatprep.subr.mxu0 0.0
  %1870 = vmatpush1.msra.mxu0 0.0
  %1871 = vmatprep.subr.mxu0 0.0
  %1872 = vmatpush1.msra.mxu0 0.0
  %1873 = vmatprep.subr.mxu0 0.0
  %1874 = vmatpush1.msra.mxu0 0.0
  %1875 = vmatprep.mubr.f32.mxu0 0.0
  %1876 = vmatmul.mubr.f32.gmra.mrb[0].mxu0 %v1809
  %v1877 = vpop.f32.mrb[0].mxu0
  %v1878 = vadd.f32 0.0, %v1877
  %v1879 = vpop.f32.mrb[0].mxu0
  %1880 = vdwg.mxu0
  %v1881 = vadd.f32 %v226, %v1806
  %v1882 = vxor.u32 %v1881, 2147483648
  %v1883 = vmul.f32 %v1882, 1.442695
  %v1884 = vpow.pop %v1883
  %v1885 = vadd.f32 %v1884, 1.0
  %v1886 = vrcp.pop %v1885
  %v1887 = vmul.f32 1.0, %v1886
  %v1888 = vadd.f32 %v1806, %v399
  %1890 = vrot.lane.b32.xlu0 %v1888, 112
  %v1891 = vpop.permute.xlu0 %1890
  %v1893 = vmul.f32 %v1887, %v1891
  %1895 = vrot.lane.b32.xlu0 %v1893, 16
  %v1896 = vpop.permute.xlu0 %1895
  %v1898 = vadd.f32 %v226, %v1896
  %v1899 = vtanh.pop %v1898
  %v1900 = vsub.f32 1.0, %v1887
  %1902 = vrot.lane.b32.xlu0 %v1899, 120
  %v1903 = vpop.permute.xlu0 %1902
  %v1905 = vmul.f32 %v1900, %v1903
  %v1906 = vmul.f32 %v1887, %v1695
  %v1907 = vadd.f32 %v1905, %v1906
  %1909 = vrot.lane.b32.xlu0 %v1878, 24
  %v1910 = vpop.permute.xlu0 %1909
  %v1912 = vadd.f32 %v191, %v1910
  %v1913 = vxor.u32 %v1912, 2147483648
  %v1914 = vmul.f32 %v1913, 1.442695
  %v1915 = vpow.pop %v1914
  %v1916 = vadd.f32 %v1915, 1.0
  %v1917 = vrcp.pop %v1916
  %v1918 = vmul.f32 1.0, %v1917
  %v1919 = vadd.f32 %v1878, %v433
  %1921 = vrot.lane.b32.xlu0 %v1919, 8
  %v1922 = vpop.permute.xlu0 %1921
  %v1924 = vmul.f32 %v1918, %v1922
  %1926 = vrot.lane.b32.xlu0 %v1924, 16
  %v1927 = vpop.permute.xlu0 %1926
  %v1929 = vadd.f32 %v191, %v1927
  %v1930 = vtanh.pop %v1929
  %v1931 = vsub.f32 1.0, %v1918
  %1933 = vrot.lane.b32.xlu0 %v1930, 120
  %v1934 = vpop.permute.xlu0 %1933
  %v1936 = vmul.f32 %v1931, %v1934
  %v1937 = vmul.f32 %v1918, %v1726
  %v1938 = vadd.f32 %v1936, %v1937
  %1940 = vrot.lane.b32.xlu0 %v1907, 120
  %v1941 = vpop.permute.xlu0 %1940
  %1943 = vst.msk [vmem:[#allocation2 + $0x38] sm:$0xff] %vm247, %v1941
  %1945 = vrot.lane.b32.xlu0 %v1938, 96
  %v1946 = vpop.permute.xlu0 %1945
  %1948 = vst.msk [vmem:[#allocation3] sm:$0xff] %vm247, %v1946
  %v1949 = vld [vmem:[#allocation2] sm:$0xff]
  %v1950 = vld [vmem:[#allocation2 + $0x8] sm:$0xff]
  %v1951 = vld [vmem:[#allocation2 + $0x10] sm:$0xff]
  %v1952 = vld [vmem:[#allocation2 + $0x18] sm:$0xff]
  %v1953 = vld [vmem:[#allocation2 + $0x20] sm:$0xff]
  %v1954 = vld [vmem:[#allocation2 + $0x28] sm:$0xff]
  %v1955 = vld [vmem:[#allocation2 + $0x30] sm:$0xff]
  %v1956 = vld [vmem:[#allocation2 + $0x38] sm:$0xff]
  %v1957 = vld [vmem:[#allocation3] sm:$0xff]
  %v1958 = vld [vmem:[#allocation3 + $0x8] sm:$0xff]
  %v1959 = vld [vmem:[#allocation3 + $0x10] sm:$0xff]
  %v1960 = vld [vmem:[#allocation3 + $0x18] sm:$0xff]
  %v1961 = vld [vmem:[#allocation3 + $0x20] sm:$0xff]
  %v1962 = vld [vmem:[#allocation3 + $0x28] sm:$0xff]
  %v1963 = vld [vmem:[#allocation3 + $0x30] sm:$0xff]
  %v1964 = vld [vmem:[#allocation3 + $0x38] sm:$0xff]
  %v1966 = vsel %vm247, %v1957, 0
  %v1969 = vsel %vm247, %v1958, 0
  %v1972 = vsel %vm247, %v1959, 0
  %v1975 = vsel %vm247, %v1960, 0
  %v1978 = vsel %vm247, %v1961, 0
  %v1981 = vsel %vm247, %v1962, 0
  %v1984 = vsel %vm247, %v1963, 0
  %v1987 = vsel %vm247, %v1964, 0
  %1989 = vmatprep.subr.mxu0 0.0
  %1990 = vmatpush1.msra.mxu0 %v234
  %1991 = vmatprep.subr.mxu0 0.0
  %1992 = vmatpush1.msra.mxu0 0.0
  %1993 = vmatprep.subr.mxu0 0.0
  %1994 = vmatpush1.msra.mxu0 0.0
  %1995 = vmatprep.subr.mxu0 0.0
  %1996 = vmatpush1.msra.mxu0 0.0
  %1997 = vmatprep.subr.mxu0 0.0
  %1998 = vmatpush1.msra.mxu0 0.0
  %1999 = vmatprep.subr.mxu0 0.0
  %2000 = vmatpush1.msra.mxu0 0.0
  %2001 = vmatprep.subr.mxu0 0.0
  %2002 = vmatpush1.msra.mxu0 0.0
  %2003 = vmatprep.subr.mxu0 0.0
  %2004 = vmatpush1.msra.mxu0 0.0
  %2005 = vmatprep.subr.mxu0 0.0
  %2006 = vmatpush1.msra.mxu0 0.0
  %2007 = vmatprep.subr.mxu0 0.0
  %2008 = vmatpush1.msra.mxu0 0.0
  %2009 = vmatprep.subr.mxu0 0.0
  %2010 = vmatpush1.msra.mxu0 0.0
  %2011 = vmatprep.subr.mxu0 0.0
  %2012 = vmatpush1.msra.mxu0 0.0
  %2013 = vmatprep.subr.mxu0 0.0
  %2014 = vmatpush1.msra.mxu0 0.0
  %2015 = vmatprep.subr.mxu0 0.0
  %2016 = vmatpush1.msra.mxu0 0.0
  %2017 = vmatprep.subr.mxu0 0.0
  %2018 = vmatpush1.msra.mxu0 0.0
  %2019 = vmatprep.subr.mxu0 0.0
  %2020 = vmatpush1.msra.mxu0 0.0
  %2021 = vmatprep.subr.mxu0 0.0
  %2022 = vmatpush1.msra.mxu0 0.0
  %2023 = vmatprep.subr.mxu0 0.0
  %2024 = vmatpush1.msra.mxu0 0.0
  %2025 = vmatprep.subr.mxu0 0.0
  %2026 = vmatpush1.msra.mxu0 0.0
  %2027 = vmatprep.subr.mxu0 0.0
  %2028 = vmatpush1.msra.mxu0 0.0
  %2029 = vmatprep.subr.mxu0 0.0
  %2030 = vmatpush1.msra.mxu0 0.0
  %2031 = vmatprep.subr.mxu0 0.0
  %2032 = vmatpush1.msra.mxu0 0.0
  %2033 = vmatprep.subr.mxu0 0.0
  %2034 = vmatpush1.msra.mxu0 0.0
  %2035 = vmatprep.subr.mxu0 0.0
  %2036 = vmatpush1.msra.mxu0 0.0
  %2037 = vmatprep.subr.mxu0 0.0
  %2038 = vmatpush1.msra.mxu0 0.0
  %2039 = vmatprep.subr.mxu0 0.0
  %2040 = vmatpush1.msra.mxu0 0.0
  %2041 = vmatprep.subr.mxu0 0.0
  %2042 = vmatpush1.msra.mxu0 0.0
  %2043 = vmatprep.subr.mxu0 0.0
  %2044 = vmatpush1.msra.mxu0 0.0
  %2045 = vmatprep.subr.mxu0 0.0
  %2046 = vmatpush1.msra.mxu0 0.0
  %2047 = vmatprep.subr.mxu0 0.0
  %2048 = vmatpush1.msra.mxu0 0.0
  %2049 = vmatprep.subr.mxu0 0.0
  %2050 = vmatpush1.msra.mxu0 0.0
  %2051 = vmatprep.subr.mxu0 0.0
  %2052 = vmatpush1.msra.mxu0 0.0
  %2053 = vmatprep.mubr.f32.mxu0 0.0
  %2054 = vmatmul.mubr.f32.gmra.mrb[0].mxu0 %v1966
  %v2055 = vpop.f32.mrb[0].mxu0
  %v2056 = vadd.f32 0.0, %v2055
  %v2057 = vpop.f32.mrb[0].mxu0
  %2058 = vmatprep.mubr.f32.mxu0 0.0
  %2059 = vmatmul.mubr.f32.gmra.mrb[0].mxu0 %v1969
  %v2060 = vpop.f32.mrb[0].mxu0
  %v2061 = vadd.f32 0.0, %v2060
  %v2062 = vpop.f32.mrb[0].mxu0
  %2063 = vmatprep.mubr.f32.mxu0 0.0
  %2064 = vmatmul.mubr.f32.gmra.mrb[0].mxu0 %v1972
  %v2065 = vpop.f32.mrb[0].mxu0
  %v2066 = vadd.f32 0.0, %v2065
  %v2067 = vpop.f32.mrb[0].mxu0
  %2068 = vmatprep.mubr.f32.mxu0 0.0
  %2069 = vmatmul.mubr.f32.gmra.mrb[0].mxu0 %v1975
  %v2070 = vpop.f32.mrb[0].mxu0
  %v2071 = vadd.f32 0.0, %v2070
  %v2072 = vpop.f32.mrb[0].mxu0
  %2073 = vmatprep.mubr.f32.mxu0 0.0
  %2074 = vmatmul.mubr.f32.gmra.mrb[0].mxu0 %v1978
  %v2075 = vpop.f32.mrb[0].mxu0
  %v2076 = vadd.f32 0.0, %v2075
  %v2077 = vpop.f32.mrb[0].mxu0
  %2078 = vmatprep.mubr.f32.mxu0 0.0
  %2079 = vmatmul.mubr.f32.gmra.mrb[0].mxu0 %v1981
  %v2080 = vpop.f32.mrb[0].mxu0
  %v2081 = vadd.f32 0.0, %v2080
  %v2082 = vpop.f32.mrb[0].mxu0
  %2083 = vmatprep.mubr.f32.mxu0 0.0
  %2084 = vmatmul.mubr.f32.gmra.mrb[0].mxu0 %v1984
  %v2085 = vpop.f32.mrb[0].mxu0
  %v2086 = vadd.f32 0.0, %v2085
  %v2087 = vpop.f32.mrb[0].mxu0
  %2088 = vmatprep.mubr.f32.mxu0 0.0
  %2089 = vmatmul.mubr.f32.gmra.mrb[0].mxu0 %v1987
  %v2090 = vpop.f32.mrb[0].mxu0
  %v2091 = vadd.f32 0.0, %v2090
  %v2092 = vpop.f32.mrb[0].mxu0
  %2093 = vdwg.mxu0
  %v2095 = vsel %vm247, %v1949, 0
  %v2098 = vsel %vm247, %v1950, 0
  %v2101 = vsel %vm247, %v1951, 0
  %v2104 = vsel %vm247, %v1952, 0
  %v2107 = vsel %vm247, %v1953, 0
  %v2110 = vsel %vm247, %v1954, 0
  %v2113 = vsel %vm247, %v1955, 0
  %v2116 = vsel %vm247, %v1956, 0
  %2118 = vmatprep.subr.mxu0 0.0
  %2119 = vmatpush1.msra.mxu0 %v233
  %2120 = vmatprep.subr.mxu0 0.0
  %2121 = vmatpush1.msra.mxu0 0.0
  %2122 = vmatprep.subr.mxu0 0.0
  %2123 = vmatpush1.msra.mxu0 0.0
  %2124 = vmatprep.subr.mxu0 0.0
  %2125 = vmatpush1.msra.mxu0 0.0
  %2126 = vmatprep.subr.mxu0 0.0
  %2127 = vmatpush1.msra.mxu0 0.0
  %2128 = vmatprep.subr.mxu0 0.0
  %2129 = vmatpush1.msra.mxu0 0.0
  %2130 = vmatprep.subr.mxu0 0.0
  %2131 = vmatpush1.msra.mxu0 0.0
  %2132 = vmatprep.subr.mxu0 0.0
  %2133 = vmatpush1.msra.mxu0 0.0
  %2134 = vmatprep.subr.mxu0 0.0
  %2135 = vmatpush1.msra.mxu0 0.0
  %2136 = vmatprep.subr.mxu0 0.0
  %2137 = vmatpush1.msra.mxu0 0.0
  %2138 = vmatprep.subr.mxu0 0.0
  %2139 = vmatpush1.msra.mxu0 0.0
  %2140 = vmatprep.subr.mxu0 0.0
  %2141 = vmatpush1.msra.mxu0 0.0
  %2142 = vmatprep.subr.mxu0 0.0
  %2143 = vmatpush1.msra.mxu0 0.0
  %2144 = vmatprep.subr.mxu0 0.0
  %2145 = vmatpush1.msra.mxu0 0.0
  %2146 = vmatprep.subr.mxu0 0.0
  %2147 = vmatpush1.msra.mxu0 0.0
  %2148 = vmatprep.subr.mxu0 0.0
  %2149 = vmatpush1.msra.mxu0 0.0
  %2150 = vmatprep.subr.mxu0 0.0
  %2151 = vmatpush1.msra.mxu0 0.0
  %2152 = vmatprep.subr.mxu0 0.0
  %2153 = vmatpush1.msra.mxu0 0.0
  %2154 = vmatprep.subr.mxu0 0.0
  %2155 = vmatpush1.msra.mxu0 0.0
  %2156 = vmatprep.subr.mxu0 0.0
  %2157 = vmatpush1.msra.mxu0 0.0
  %2158 = vmatprep.subr.mxu0 0.0
  %2159 = vmatpush1.msra.mxu0 0.0
  %2160 = vmatprep.subr.mxu0 0.0
  %2161 = vmatpush1.msra.mxu0 0.0
  %2162 = vmatprep.subr.mxu0 0.0
  %2163 = vmatpush1.msra.mxu0 0.0
  %2164 = vmatprep.subr.mxu0 0.0
  %2165 = vmatpush1.msra.mxu0 0.0
  %2166 = vmatprep.subr.mxu0 0.0
  %2167 = vmatpush1.msra.mxu0 0.0
  %2168 = vmatprep.subr.mxu0 0.0
  %2169 = vmatpush1.msra.mxu0 0.0
  %2170 = vmatprep.subr.mxu0 0.0
  %2171 = vmatpush1.msra.mxu0 0.0
  %2172 = vmatprep.subr.mxu0 0.0
  %2173 = vmatpush1.msra.mxu0 0.0
  %2174 = vmatprep.subr.mxu0 0.0
  %2175 = vmatpush1.msra.mxu0 0.0
  %2176 = vmatprep.subr.mxu0 0.0
  %2177 = vmatpush1.msra.mxu0 0.0
  %2178 = vmatprep.subr.mxu0 0.0
  %2179 = vmatpush1.msra.mxu0 0.0
  %2180 = vmatprep.subr.mxu0 0.0
  %2181 = vmatpush1.msra.mxu0 0.0
  %2182 = vmatprep.mubr.f32.mxu0 0.0
  %2183 = vmatmul.mubr.f32.gmra.mrb[0].mxu0 %v2095
  %v2184 = vpop.f32.mrb[0].mxu0
  %v2185 = vadd.f32 %v2056, %v2184
  %v2186 = vpop.f32.mrb[0].mxu0
  %2187 = vmatprep.mubr.f32.mxu0 0.0
  %2188 = vmatmul.mubr.f32.gmra.mrb[0].mxu0 %v2098
  %v2189 = vpop.f32.mrb[0].mxu0
  %v2190 = vadd.f32 %v2061, %v2189
  %v2191 = vpop.f32.mrb[0].mxu0
  %2192 = vmatprep.mubr.f32.mxu0 0.0
  %2193 = vmatmul.mubr.f32.gmra.mrb[0].mxu0 %v2101
  %v2194 = vpop.f32.mrb[0].mxu0
  %v2195 = vadd.f32 %v2066, %v2194
  %v2196 = vpop.f32.mrb[0].mxu0
  %2197 = vmatprep.mubr.f32.mxu0 0.0
  %2198 = vmatmul.mubr.f32.gmra.mrb[0].mxu0 %v2104
  %v2199 = vpop.f32.mrb[0].mxu0
  %v2200 = vadd.f32 %v2071, %v2199
  %v2201 = vpop.f32.mrb[0].mxu0
  %2202 = vmatprep.mubr.f32.mxu0 0.0
  %2203 = vmatmul.mubr.f32.gmra.mrb[0].mxu0 %v2107
  %v2204 = vpop.f32.mrb[0].mxu0
  %v2205 = vadd.f32 %v2076, %v2204
  %v2206 = vpop.f32.mrb[0].mxu0
  %2207 = vmatprep.mubr.f32.mxu0 0.0
  %2208 = vmatmul.mubr.f32.gmra.mrb[0].mxu0 %v2110
  %v2209 = vpop.f32.mrb[0].mxu0
  %v2210 = vadd.f32 %v2081, %v2209
  %v2211 = vpop.f32.mrb[0].mxu0
  %2212 = vmatprep.mubr.f32.mxu0 0.0
  %2213 = vmatmul.mubr.f32.gmra.mrb[0].mxu0 %v2113
  %v2214 = vpop.f32.mrb[0].mxu0
  %v2215 = vadd.f32 %v2086, %v2214
  %v2216 = vpop.f32.mrb[0].mxu0
  %2217 = vmatprep.mubr.f32.mxu0 0.0
  %2218 = vmatmul.mubr.f32.gmra.mrb[0].mxu0 %v2116
  %v2219 = vpop.f32.mrb[0].mxu0
  %v2220 = vadd.f32 %v2091, %v2219
  %v2221 = vpop.f32.mrb[0].mxu0
  %2222 = vdwg.mxu0
  %v2224 = vlaneseq
  %v2225 = vshrl.u32 %v2224, 7
  %v2226 = vsub.s32 0, %v2225
  %v2227 = vrot.slane %v235, %v2226
  %v2229 = vadd.f32 %v2185, %v2227
  %v2230 = vadd.f32 %v2190, %v2227
  %v2231 = vadd.f32 %v2195, %v2227
  %v2232 = vadd.f32 %v2200, %v2227
  %v2233 = vadd.f32 %v2205, %v2227
  %v2234 = vadd.f32 %v2210, %v2227
  %v2235 = vadd.f32 %v2215, %v2227
  %v2236 = vadd.f32 %v2220, %v2227
  %v2237 = vtanh.pop %v2229
  %v2238 = vtanh.pop %v2230
  %v2239 = vtanh.pop %v2231
  %v2240 = vtanh.pop %v2232
  %v2241 = vtanh.pop %v2233
  %v2242 = vtanh.pop %v2234
  %v2243 = vtanh.pop %v2235
  %v2244 = vtanh.pop %v2236
  %v2246 = vlaneseq
  %v2247 = vshrl.u32 %v2246, 7
  %v2248 = vsub.s32 0, %v2247
  %v2249 = vrot.slane %v236, %v2248
  %v2251 = vmul.f32 %v2237, %v2249
  %v2252 = vsel %vm99, %v2251, 0.0
  %2253 = vadd.xlane.f32.xlu0 %v2252
  %v2254 = vpop.xlane.xlu0 %2253
  %v2255 = vmul.f32 %v2238, %v2249
  %v2256 = vsel %vm99, %v2255, 0.0
  %2257 = vadd.xlane.f32.xlu0 %v2256
  %v2258 = vpop.xlane.xlu0 %2257
  %v2259 = vmul.f32 %v2239, %v2249
  %v2260 = vsel %vm99, %v2259, 0.0
  %2261 = vadd.xlane.f32.xlu0 %v2260
  %v2262 = vpop.xlane.xlu0 %2261
  %v2263 = vmul.f32 %v2240, %v2249
  %v2264 = vsel %vm99, %v2263, 0.0
  %2265 = vadd.xlane.f32.xlu0 %v2264
  %v2266 = vpop.xlane.xlu0 %2265
  %v2267 = vmul.f32 %v2241, %v2249
  %v2268 = vsel %vm99, %v2267, 0.0
  %2269 = vadd.xlane.f32.xlu0 %v2268
  %v2270 = vpop.xlane.xlu0 %2269
  %v2271 = vmul.f32 %v2242, %v2249
  %v2272 = vsel %vm99, %v2271, 0.0
  %2273 = vadd.xlane.f32.xlu0 %v2272
  %v2274 = vpop.xlane.xlu0 %2273
  %v2275 = vmul.f32 %v2243, %v2249
  %v2276 = vsel %vm99, %v2275, 0.0
  %2277 = vadd.xlane.f32.xlu0 %v2276
  %v2278 = vpop.xlane.xlu0 %2277
  %v2279 = vmul.f32 %v2244, %v2249
  %v2280 = vsel %vm99, %v2279, 0.0
  %2281 = vadd.xlane.f32.xlu0 %v2280
  %v2282 = vpop.xlane.xlu0 %2281
  %v2283 = vmax.f32 %v2254, %v2258
  %v2284 = vmax.f32 %v2283, %v2262
  %v2285 = vmax.f32 %v2284, %v2266
  %v2286 = vmax.f32 %v2285, %v2270
  %v2287 = vmax.f32 %v2286, %v2274
  %v2288 = vmax.f32 %v2287, %v2278
  %v2289 = vmax.f32 %v2288, %v2282
  %v2290 = vsub.f32 %v2254, %v2289
  %v2291 = vmul.f32 %v2290, 1.442695
  %v2292 = vpow.pop %v2291
  %v2293 = vsub.f32 %v2258, %v2289
  %v2294 = vmul.f32 %v2293, 1.442695
  %v2295 = vpow.pop %v2294
  %v2296 = vsub.f32 %v2262, %v2289
  %v2297 = vmul.f32 %v2296, 1.442695
  %v2298 = vpow.pop %v2297
  %v2299 = vsub.f32 %v2266, %v2289
  %v2300 = vmul.f32 %v2299, 1.442695
  %v2301 = vpow.pop %v2300
  %v2302 = vsub.f32 %v2270, %v2289
  %v2303 = vmul.f32 %v2302, 1.442695
  %v2304 = vpow.pop %v2303
  %v2305 = vsub.f32 %v2274, %v2289
  %v2306 = vmul.f32 %v2305, 1.442695
  %v2307 = vpow.pop %v2306
  %v2308 = vsub.f32 %v2278, %v2289
  %v2309 = vmul.f32 %v2308, 1.442695
  %v2310 = vpow.pop %v2309
  %v2311 = vsub.f32 %v2282, %v2289
  %v2312 = vmul.f32 %v2311, 1.442695
  %v2313 = vpow.pop %v2312
  %v2314 = vadd.f32 %v2292, %v2295
  %v2315 = vadd.f32 %v2314, %v2298
  %v2316 = vadd.f32 %v2315, %v2301
  %v2317 = vadd.f32 %v2316, %v2304
  %v2318 = vadd.f32 %v2317, %v2307
  %v2319 = vadd.f32 %v2318, %v2310
  %v2320 = vadd.f32 %v2319, %v2313
  %v2321 = vrcp.pop %v2320
  %v2322 = vmul.f32 1.0, %v2321
  %v2323 = vmul.f32 %v2292, %v2322
  %v2324 = vmul.f32 %v2323, %v1949
  %v2325 = vadd.f32 %v2324, 0.0
  %v2326 = vmul.f32 %v2323, %v1957
  %v2327 = vadd.f32 %v2326, 0.0
  %v2328 = vmul.f32 %v2295, %v2322
  %v2329 = vmul.f32 %v2328, %v1950
  %v2330 = vadd.f32 %v2325, %v2329
  %v2331 = vmul.f32 %v2328, %v1958
  %v2332 = vadd.f32 %v2327, %v2331
  %v2333 = vmul.f32 %v2298, %v2322
  %v2334 = vmul.f32 %v2333, %v1951
  %v2335 = vadd.f32 %v2330, %v2334
  %v2336 = vmul.f32 %v2333, %v1959
  %v2337 = vadd.f32 %v2332, %v2336
  %v2338 = vmul.f32 %v2301, %v2322
  %v2339 = vmul.f32 %v2338, %v1952
  %v2340 = vadd.f32 %v2335, %v2339
  %v2341 = vmul.f32 %v2338, %v1960
  %v2342 = vadd.f32 %v2337, %v2341
  %v2343 = vmul.f32 %v2304, %v2322
  %v2344 = vmul.f32 %v2343, %v1953
  %v2345 = vadd.f32 %v2340, %v2344
  %v2346 = vmul.f32 %v2343, %v1961
  %v2347 = vadd.f32 %v2342, %v2346
  %v2348 = vmul.f32 %v2307, %v2322
  %v2349 = vmul.f32 %v2348, %v1954
  %v2350 = vadd.f32 %v2345, %v2349
  %v2351 = vmul.f32 %v2348, %v1962
  %v2352 = vadd.f32 %v2347, %v2351
  %v2353 = vmul.f32 %v2310, %v2322
  %v2354 = vmul.f32 %v2353, %v1955
  %v2355 = vadd.f32 %v2350, %v2354
  %v2356 = vmul.f32 %v2353, %v1963
  %v2357 = vadd.f32 %v2352, %v2356
  %v2358 = vmul.f32 %v2313, %v2322
  %v2359 = vmul.f32 %v2358, %v1956
  %v2360 = vadd.f32 %v2355, %v2359
  %v2361 = vmul.f32 %v2358, %v1964
  %v2362 = vadd.f32 %v2357, %v2361
  %v2363 = vld [vmem:[%s11] sm:$0xff]
  %v2364 = vld [vmem:[%s12] sm:$0xff]
  %v2366 = vsel %vm247, %v2362, 0
  %2368 = vmatprep.subr.mxu0 0.0
  %2369 = vmatpush1.msra.mxu0 %v2364
  %2370 = vmatprep.subr.mxu0 0.0
  %2371 = vmatpush1.msra.mxu0 0.0
  %2372 = vmatprep.subr.mxu0 0.0
  %2373 = vmatpush1.msra.mxu0 0.0
  %2374 = vmatprep.subr.mxu0 0.0
  %2375 = vmatpush1.msra.mxu0 0.0
  %2376 = vmatprep.subr.mxu0 0.0
  %2377 = vmatpush1.msra.mxu0 0.0
  %2378 = vmatprep.subr.mxu0 0.0
  %2379 = vmatpush1.msra.mxu0 0.0
  %2380 = vmatprep.subr.mxu0 0.0
  %2381 = vmatpush1.msra.mxu0 0.0
  %2382 = vmatprep.subr.mxu0 0.0
  %2383 = vmatpush1.msra.mxu0 0.0
  %2384 = vmatprep.subr.mxu0 0.0
  %2385 = vmatpush1.msra.mxu0 0.0
  %2386 = vmatprep.subr.mxu0 0.0
  %2387 = vmatpush1.msra.mxu0 0.0
  %2388 = vmatprep.subr.mxu0 0.0
  %2389 = vmatpush1.msra.mxu0 0.0
  %2390 = vmatprep.subr.mxu0 0.0
  %2391 = vmatpush1.msra.mxu0 0.0
  %2392 = vmatprep.subr.mxu0 0.0
  %2393 = vmatpush1.msra.mxu0 0.0
  %2394 = vmatprep.subr.mxu0 0.0
  %2395 = vmatpush1.msra.mxu0 0.0
  %2396 = vmatprep.subr.mxu0 0.0
  %2397 = vmatpush1.msra.mxu0 0.0
  %2398 = vmatprep.subr.mxu0 0.0
  %2399 = vmatpush1.msra.mxu0 0.0
  %2400 = vmatprep.subr.mxu0 0.0
  %2401 = vmatpush1.msra.mxu0 0.0
  %2402 = vmatprep.subr.mxu0 0.0
  %2403 = vmatpush1.msra.mxu0 0.0
  %2404 = vmatprep.subr.mxu0 0.0
  %2405 = vmatpush1.msra.mxu0 0.0
  %2406 = vmatprep.subr.mxu0 0.0
  %2407 = vmatpush1.msra.mxu0 0.0
  %2408 = vmatprep.subr.mxu0 0.0
  %2409 = vmatpush1.msra.mxu0 0.0
  %2410 = vmatprep.subr.mxu0 0.0
  %2411 = vmatpush1.msra.mxu0 0.0
  %2412 = vmatprep.subr.mxu0 0.0
  %2413 = vmatpush1.msra.mxu0 0.0
  %2414 = vmatprep.subr.mxu0 0.0
  %2415 = vmatpush1.msra.mxu0 0.0
  %2416 = vmatprep.subr.mxu0 0.0
  %2417 = vmatpush1.msra.mxu0 0.0
  %2418 = vmatprep.subr.mxu0 0.0
  %2419 = vmatpush1.msra.mxu0 0.0
  %2420 = vmatprep.subr.mxu0 0.0
  %2421 = vmatpush1.msra.mxu0 0.0
  %2422 = vmatprep.subr.mxu0 0.0
  %2423 = vmatpush1.msra.mxu0 0.0
  %2424 = vmatprep.subr.mxu0 0.0
  %2425 = vmatpush1.msra.mxu0 0.0
  %2426 = vmatprep.subr.mxu0 0.0
  %2427 = vmatpush1.msra.mxu0 0.0
  %2428 = vmatprep.subr.mxu0 0.0
  %2429 = vmatpush1.msra.mxu0 0.0
  %2430 = vmatprep.subr.mxu0 0.0
  %2431 = vmatpush1.msra.mxu0 0.0
  %2432 = vmatprep.mubr.f32.mxu0 0.0
  %2433 = vmatmul.mubr.f32.gmra.mrb[0].mxu0 %v2366
  %v2434 = vpop.f32.mrb[0].mxu0
  %v2435 = vadd.f32 0.0, %v2434
  %v2436 = vpop.f32.mrb[0].mxu0
  %2437 = vdwg.mxu0
  %v2439 = vsel %vm247, %v2360, 0
  %2441 = vmatprep.subr.mxu0 0.0
  %2442 = vmatpush1.msra.mxu0 %v2363
  %2443 = vmatprep.subr.mxu0 0.0
  %2444 = vmatpush1.msra.mxu0 0.0
  %2445 = vmatprep.subr.mxu0 0.0
  %2446 = vmatpush1.msra.mxu0 0.0
  %2447 = vmatprep.subr.mxu0 0.0
  %2448 = vmatpush1.msra.mxu0 0.0
  %2449 = vmatprep.subr.mxu0 0.0
  %2450 = vmatpush1.msra.mxu0 0.0
  %2451 = vmatprep.subr.mxu0 0.0
  %2452 = vmatpush1.msra.mxu0 0.0
  %2453 = vmatprep.subr.mxu0 0.0
  %2454 = vmatpush1.msra.mxu0 0.0
  %2455 = vmatprep.subr.mxu0 0.0
  %2456 = vmatpush1.msra.mxu0 0.0
  %2457 = vmatprep.subr.mxu0 0.0
  %2458 = vmatpush1.msra.mxu0 0.0
  %2459 = vmatprep.subr.mxu0 0.0
  %2460 = vmatpush1.msra.mxu0 0.0
  %2461 = vmatprep.subr.mxu0 0.0
  %2462 = vmatpush1.msra.mxu0 0.0
  %2463 = vmatprep.subr.mxu0 0.0
  %2464 = vmatpush1.msra.mxu0 0.0
  %2465 = vmatprep.subr.mxu0 0.0
  %2466 = vmatpush1.msra.mxu0 0.0
  %2467 = vmatprep.subr.mxu0 0.0
  %2468 = vmatpush1.msra.mxu0 0.0
  %2469 = vmatprep.subr.mxu0 0.0
  %2470 = vmatpush1.msra.mxu0 0.0
  %2471 = vmatprep.subr.mxu0 0.0
  %2472 = vmatpush1.msra.mxu0 0.0
  %2473 = vmatprep.subr.mxu0 0.0
  %2474 = vmatpush1.msra.mxu0 0.0
  %2475 = vmatprep.subr.mxu0 0.0
  %2476 = vmatpush1.msra.mxu0 0.0
  %2477 = vmatprep.subr.mxu0 0.0
  %2478 = vmatpush1.msra.mxu0 0.0
  %2479 = vmatprep.subr.mxu0 0.0
  %2480 = vmatpush1.msra.mxu0 0.0
  %2481 = vmatprep.subr.mxu0 0.0
  %2482 = vmatpush1.msra.mxu0 0.0
  %2483 = vmatprep.subr.mxu0 0.0
  %2484 = vmatpush1.msra.mxu0 0.0
  %2485 = vmatprep.subr.mxu0 0.0
  %2486 = vmatpush1.msra.mxu0 0.0
  %2487 = vmatprep.subr.mxu0 0.0
  %2488 = vmatpush1.msra.mxu0 0.0
  %2489 = vmatprep.subr.mxu0 0.0
  %2490 = vmatpush1.msra.mxu0 0.0
  %2491 = vmatprep.subr.mxu0 0.0
  %2492 = vmatpush1.msra.mxu0 0.0
  %2493 = vmatprep.subr.mxu0 0.0
  %2494 = vmatpush1.msra.mxu0 0.0
  %2495 = vmatprep.subr.mxu0 0.0
  %2496 = vmatpush1.msra.mxu0 0.0
  %2497 = vmatprep.subr.mxu0 0.0
  %2498 = vmatpush1.msra.mxu0 0.0
  %2499 = vmatprep.subr.mxu0 0.0
  %2500 = vmatpush1.msra.mxu0 0.0
  %2501 = vmatprep.subr.mxu0 0.0
  %2502 = vmatpush1.msra.mxu0 0.0
  %2503 = vmatprep.subr.mxu0 0.0
  %2504 = vmatpush1.msra.mxu0 0.0
  %2505 = vmatprep.mubr.f32.mxu0 0.0
  %2506 = vmatmul.mubr.f32.gmra.mrb[0].mxu0 %v2439
  %v2507 = vpop.f32.mrb[0].mxu0
  %v2508 = vadd.f32 %v2435, %v2507
  %v2509 = vpop.f32.mrb[0].mxu0
  %2510 = vdwg.mxu0
  %v2511 = vld [vmem:[%s15] sm:$0x1]
  %v2513 = vlaneseq
  %v2514 = vshrl.u32 %v2513, 7
  %v2515 = vsub.s32 0, %v2514
  %v2516 = vrot.slane %v2511, %v2515
  %v2518 = vadd.f32 %v2508, %v2516
  %v2519 = vld [vmem:[%s13] sm:$0xff]
  %v2520 = vld [vmem:[%s14] sm:$0xff]
  %v2521 = vld [vmem:[%s16] sm:$0x1]
  %v2522 = vld [vmem:[%s17] sm:$0x1]
  %v2523 = vld [vmem:[%s18] sm:$0xff]
  %v2524 = vld [vmem:[%s19] sm:$0xff]
  %v2525 = vld [vmem:[%s20] sm:$0x1]
  %v2526 = vld [vmem:[%s21] sm:$0x1]
  %v2528 = vlaneseq
  %v2529 = vshrl.u32 %v2528, 7
  %v2530 = vsub.s32 0, %v2529
  %v2531 = vrot.slane %v2521, %v2530
  %v2533 = vlaneseq
  %v2534 = vshrl.u32 %v2533, 7
  %v2535 = vsub.s32 0, %v2534
  %v2536 = vrot.slane %v2522, %v2535
  %2537 = vmatprep.subr.mxu0 0.0
  %2538 = vmatpush1.msra.mxu0 %v2519
  %2539 = vmatprep.subr.mxu0 0.0
  %2540 = vmatpush1.msra.mxu0 0.0
  %2541 = vmatprep.subr.mxu0 0.0
  %2542 = vmatpush1.msra.mxu0 0.0
  %2543 = vmatprep.subr.mxu0 0.0
  %2544 = vmatpush1.msra.mxu0 0.0
  %2545 = vmatprep.subr.mxu0 0.0
  %2546 = vmatpush1.msra.mxu0 0.0
  %2547 = vmatprep.subr.mxu0 0.0
  %2548 = vmatpush1.msra.mxu0 0.0
  %2549 = vmatprep.subr.mxu0 0.0
  %2550 = vmatpush1.msra.mxu0 0.0
  %2551 = vmatprep.subr.mxu0 0.0
  %2552 = vmatpush1.msra.mxu0 0.0
  %2553 = vmatprep.subr.mxu0 0.0
  %2554 = vmatpush1.msra.mxu0 0.0
  %2555 = vmatprep.subr.mxu0 0.0
  %2556 = vmatpush1.msra.mxu0 0.0
  %2557 = vmatprep.subr.mxu0 0.0
  %2558 = vmatpush1.msra.mxu0 0.0
  %2559 = vmatprep.subr.mxu0 0.0
  %2560 = vmatpush1.msra.mxu0 0.0
  %2561 = vmatprep.subr.mxu0 0.0
  %2562 = vmatpush1.msra.mxu0 0.0
  %2563 = vmatprep.subr.mxu0 0.0
  %2564 = vmatpush1.msra.mxu0 0.0
  %2565 = vmatprep.subr.mxu0 0.0
  %2566 = vmatpush1.msra.mxu0 0.0
  %2567 = vmatprep.subr.mxu0 0.0
  %2568 = vmatpush1.msra.mxu0 0.0
  %2569 = vmatprep.subr.mxu0 0.0
  %2570 = vmatpush1.msra.mxu0 0.0
  %2571 = vmatprep.subr.mxu0 0.0
  %2572 = vmatpush1.msra.mxu0 0.0
  %2573 = vmatprep.subr.mxu0 0.0
  %2574 = vmatpush1.msra.mxu0 0.0
  %2575 = vmatprep.subr.mxu0 0.0
  %2576 = vmatpush1.msra.mxu0 0.0
  %2577 = vmatprep.subr.mxu0 0.0
  %2578 = vmatpush1.msra.mxu0 0.0
  %2579 = vmatprep.subr.mxu0 0.0
  %2580 = vmatpush1.msra.mxu0 0.0
  %2581 = vmatprep.subr.mxu0 0.0
  %2582 = vmatpush1.msra.mxu0 0.0
  %2583 = vmatprep.subr.mxu0 0.0
  %2584 = vmatpush1.msra.mxu0 0.0
  %2585 = vmatprep.subr.mxu0 0.0
  %2586 = vmatpush1.msra.mxu0 0.0
  %2587 = vmatprep.subr.mxu0 0.0
  %2588 = vmatpush1.msra.mxu0 0.0
  %2589 = vmatprep.subr.mxu0 0.0
  %2590 = vmatpush1.msra.mxu0 0.0
  %2591 = vmatprep.subr.mxu0 0.0
  %2592 = vmatpush1.msra.mxu0 0.0
  %2593 = vmatprep.subr.mxu0 0.0
  %2594 = vmatpush1.msra.mxu0 0.0
  %2595 = vmatprep.subr.mxu0 0.0
  %2596 = vmatpush1.msra.mxu0 0.0
  %2597 = vmatprep.subr.mxu0 0.0
  %2598 = vmatpush1.msra.mxu0 0.0
  %2599 = vmatprep.subr.mxu0 0.0
  %2600 = vmatpush1.msra.mxu0 0.0
  %2601 = vmatprep.mubr.f32.mxu0 0.0
  %2602 = vmatmul.mubr.f32.gmra.mrb[0].mxu0 %v249
  %v2603 = vpop.f32.mrb[0].mxu0
  %v2604 = vadd.f32 0.0, %v2603
  %v2605 = vpop.f32.mrb[0].mxu0
  %2606 = vdwg.mxu0
  %2607 = vmatprep.subr.mxu0 0.0
  %2608 = vmatpush1.msra.mxu0 %v2520
  %2609 = vmatprep.subr.mxu0 0.0
  %2610 = vmatpush1.msra.mxu0 0.0
  %2611 = vmatprep.subr.mxu0 0.0
  %2612 = vmatpush1.msra.mxu0 0.0
  %2613 = vmatprep.subr.mxu0 0.0
  %2614 = vmatpush1.msra.mxu0 0.0
  %2615 = vmatprep.subr.mxu0 0.0
  %2616 = vmatpush1.msra.mxu0 0.0
  %2617 = vmatprep.subr.mxu0 0.0
  %2618 = vmatpush1.msra.mxu0 0.0
  %2619 = vmatprep.subr.mxu0 0.0
  %2620 = vmatpush1.msra.mxu0 0.0
  %2621 = vmatprep.subr.mxu0 0.0
  %2622 = vmatpush1.msra.mxu0 0.0
  %2623 = vmatprep.subr.mxu0 0.0
  %2624 = vmatpush1.msra.mxu0 0.0
  %2625 = vmatprep.subr.mxu0 0.0
  %2626 = vmatpush1.msra.mxu0 0.0
  %2627 = vmatprep.subr.mxu0 0.0
  %2628 = vmatpush1.msra.mxu0 0.0
  %2629 = vmatprep.subr.mxu0 0.0
  %2630 = vmatpush1.msra.mxu0 0.0
  %2631 = vmatprep.subr.mxu0 0.0
  %2632 = vmatpush1.msra.mxu0 0.0
  %2633 = vmatprep.subr.mxu0 0.0
  %2634 = vmatpush1.msra.mxu0 0.0
  %2635 = vmatprep.subr.mxu0 0.0
  %2636 = vmatpush1.msra.mxu0 0.0
  %2637 = vmatprep.subr.mxu0 0.0
  %2638 = vmatpush1.msra.mxu0 0.0
  %2639 = vmatprep.subr.mxu0 0.0
  %2640 = vmatpush1.msra.mxu0 0.0
  %2641 = vmatprep.subr.mxu0 0.0
  %2642 = vmatpush1.msra.mxu0 0.0
  %2643 = vmatprep.subr.mxu0 0.0
  %2644 = vmatpush1.msra.mxu0 0.0
  %2645 = vmatprep.subr.mxu0 0.0
  %2646 = vmatpush1.msra.mxu0 0.0
  %2647 = vmatprep.subr.mxu0 0.0
  %2648 = vmatpush1.msra.mxu0 0.0
  %2649 = vmatprep.subr.mxu0 0.0
  %2650 = vmatpush1.msra.mxu0 0.0
  %2651 = vmatprep.subr.mxu0 0.0
  %2652 = vmatpush1.msra.mxu0 0.0
  %2653 = vmatprep.subr.mxu0 0.0
  %2654 = vmatpush1.msra.mxu0 0.0
  %2655 = vmatprep.subr.mxu0 0.0
  %2656 = vmatpush1.msra.mxu0 0.0
  %2657 = vmatprep.subr.mxu0 0.0
  %2658 = vmatpush1.msra.mxu0 0.0
  %2659 = vmatprep.subr.mxu0 0.0
  %2660 = vmatpush1.msra.mxu0 0.0
  %2661 = vmatprep.subr.mxu0 0.0
  %2662 = vmatpush1.msra.mxu0 0.0
  %2663 = vmatprep.subr.mxu0 0.0
  %2664 = vmatpush1.msra.mxu0 0.0
  %2665 = vmatprep.subr.mxu0 0.0
  %2666 = vmatpush1.msra.mxu0 0.0
  %2667 = vmatprep.subr.mxu0 0.0
  %2668 = vmatpush1.msra.mxu0 0.0
  %2669 = vmatprep.subr.mxu0 0.0
  %2670 = vmatpush1.msra.mxu0 0.0
  %2671 = vmatprep.mubr.f32.mxu0 0.0
  %2672 = vmatmul.mubr.f32.gmra.mrb[0].mxu0 %v249
  %v2673 = vpop.f32.mrb[0].mxu0
  %v2674 = vadd.f32 0.0, %v2673
  %v2675 = vpop.f32.mrb[0].mxu0
  %2676 = vdwg.mxu0
  %v2677 = vadd.f32 %v2518, %v2604
  %v2678 = vxor.u32 %v2677, 2147483648
  %v2679 = vmul.f32 %v2678, 1.442695
  %v2680 = vpow.pop %v2679
  %v2681 = vadd.f32 %v2680, 1.0
  %v2682 = vrcp.pop %v2681
  %v2683 = vmul.f32 1.0, %v2682
  %2684 = vrot.lane.b32.xlu0 %v2531, 16
  %v2685 = vpop.permute.xlu0 %2684
  %v2687 = vadd.f32 %v2604, %v2685
  %2689 = vrot.lane.b32.xlu0 %v2687, 112
  %v2690 = vpop.permute.xlu0 %2689
  %v2692 = vmul.f32 %v2683, %v2690
  %2694 = vrot.lane.b32.xlu0 %v2692, 16
  %v2695 = vpop.permute.xlu0 %2694
  %v2697 = vadd.f32 %v2518, %v2695
  %v2698 = vtanh.pop %v2697
  %v2699 = vsub.f32 1.0, %v2683
  %2701 = vrot.lane.b32.xlu0 %v2698, 120
  %v2702 = vpop.permute.xlu0 %2701
  %v2704 = vmul.f32 %v2699, %v2702
  %v2705 = vmul.f32 %v2683, 0.0
  %v2706 = vadd.f32 %v2704, %v2705
  %v2708 = vrot.slane %v2674, 2
  %2709 = vrot.lane.b32.xlu0 %v2708, 24
  %v2710 = vpop.permute.xlu0 %2709
  %v2712 = vadd.f32 %v2518, %v2710
  %v2713 = vxor.u32 %v2712, 2147483648
  %v2714 = vmul.f32 %v2713, 1.442695
  %v2715 = vpow.pop %v2714
  %v2716 = vadd.f32 %v2715, 1.0
  %v2717 = vrcp.pop %v2716
  %v2718 = vmul.f32 1.0, %v2717
  %2719 = vrot.lane.b32.xlu0 %v2536, 16
  %v2720 = vpop.permute.xlu0 %2719
  %v2722 = vadd.f32 %v2674, %v2720
  %v2724 = vrot.slane %v2722, 2
  %2725 = vrot.lane.b32.xlu0 %v2724, 8
  %v2726 = vpop.permute.xlu0 %2725
  %v2728 = vmul.f32 %v2718, %v2726
  %2730 = vrot.lane.b32.xlu0 %v2728, 16
  %v2731 = vpop.permute.xlu0 %2730
  %v2733 = vadd.f32 %v2518, %v2731
  %v2734 = vtanh.pop %v2733
  %v2735 = vsub.f32 1.0, %v2718
  %2737 = vrot.lane.b32.xlu0 %v2734, 120
  %v2738 = vpop.permute.xlu0 %2737
  %v2740 = vmul.f32 %v2735, %v2738
  %v2741 = vmul.f32 %v2718, 0.0
  %v2742 = vadd.f32 %v2740, %v2741
  %2744 = vrot.lane.b32.xlu0 %v2706, 120
  %v2745 = vpop.permute.xlu0 %2744
  %vm2747 = vcmask 58368
  %2748 = vst.msk [vmem:[#allocation4] sm:$0x3] %vm2747, %v2745
  %2750 = vrot.lane.b32.xlu0 %v2742, 96
  %v2751 = vpop.permute.xlu0 %2750
  %vm2753 = vcmask 64518
  %2754 = vst.msk [vmem:[#allocation5] sm:$0xc0] %vm2753, %v2751
  %v2755 = vsel %vm247, %v2745, 0
  %2757 = vmatprep.subr.mxu0 0.0
  %2758 = vmatpush1.msra.mxu0 %v2519
  %2759 = vmatprep.subr.mxu0 0.0
  %2760 = vmatpush1.msra.mxu0 0.0
  %2761 = vmatprep.subr.mxu0 0.0
  %2762 = vmatpush1.msra.mxu0 0.0
  %2763 = vmatprep.subr.mxu0 0.0
  %2764 = vmatpush1.msra.mxu0 0.0
  %2765 = vmatprep.subr.mxu0 0.0
  %2766 = vmatpush1.msra.mxu0 0.0
  %2767 = vmatprep.subr.mxu0 0.0
  %2768 = vmatpush1.msra.mxu0 0.0
  %2769 = vmatprep.subr.mxu0 0.0
  %2770 = vmatpush1.msra.mxu0 0.0
  %2771 = vmatprep.subr.mxu0 0.0
  %2772 = vmatpush1.msra.mxu0 0.0
  %2773 = vmatprep.subr.mxu0 0.0
  %2774 = vmatpush1.msra.mxu0 0.0
  %2775 = vmatprep.subr.mxu0 0.0
  %2776 = vmatpush1.msra.mxu0 0.0
  %2777 = vmatprep.subr.mxu0 0.0
  %2778 = vmatpush1.msra.mxu0 0.0
  %2779 = vmatprep.subr.mxu0 0.0
  %2780 = vmatpush1.msra.mxu0 0.0
  %2781 = vmatprep.subr.mxu0 0.0
  %2782 = vmatpush1.msra.mxu0 0.0
  %2783 = vmatprep.subr.mxu0 0.0
  %2784 = vmatpush1.msra.mxu0 0.0
  %2785 = vmatprep.subr.mxu0 0.0
  %2786 = vmatpush1.msra.mxu0 0.0
  %2787 = vmatprep.subr.mxu0 0.0
  %2788 = vmatpush1.msra.mxu0 0.0
  %2789 = vmatprep.subr.mxu0 0.0
  %2790 = vmatpush1.msra.mxu0 0.0
  %2791 = vmatprep.subr.mxu0 0.0
  %2792 = vmatpush1.msra.mxu0 0.0
  %2793 = vmatprep.subr.mxu0 0.0
  %2794 = vmatpush1.msra.mxu0 0.0
  %2795 = vmatprep.subr.mxu0 0.0
  %2796 = vmatpush1.msra.mxu0 0.0
  %2797 = vmatprep.subr.mxu0 0.0
  %2798 = vmatpush1.msra.mxu0 0.0
  %2799 = vmatprep.subr.mxu0 0.0
  %2800 = vmatpush1.msra.mxu0 0.0
  %2801 = vmatprep.subr.mxu0 0.0
  %2802 = vmatpush1.msra.mxu0 0.0
  %2803 = vmatprep.subr.mxu0 0.0
  %2804 = vmatpush1.msra.mxu0 0.0
  %2805 = vmatprep.subr.mxu0 0.0
  %2806 = vmatpush1.msra.mxu0 0.0
  %2807 = vmatprep.subr.mxu0 0.0
  %2808 = vmatpush1.msra.mxu0 0.0
  %2809 = vmatprep.subr.mxu0 0.0
  %2810 = vmatpush1.msra.mxu0 0.0
  %2811 = vmatprep.subr.mxu0 0.0
  %2812 = vmatpush1.msra.mxu0 0.0
  %2813 = vmatprep.subr.mxu0 0.0
  %2814 = vmatpush1.msra.mxu0 0.0
  %2815 = vmatprep.subr.mxu0 0.0
  %2816 = vmatpush1.msra.mxu0 0.0
  %2817 = vmatprep.subr.mxu0 0.0
  %2818 = vmatpush1.msra.mxu0 0.0
  %2819 = vmatprep.subr.mxu0 0.0
  %2820 = vmatpush1.msra.mxu0 0.0
  %2821 = vmatprep.mubr.f32.mxu0 0.0
  %2822 = vmatmul.mubr.f32.gmra.mrb[0].mxu0 %v2755
  %v2823 = vpop.f32.mrb[0].mxu0
  %v2824 = vadd.f32 0.0, %v2823
  %v2825 = vpop.f32.mrb[0].mxu0
  %2826 = vdwg.mxu0
  %v2827 = vrot.slane %v2742, 6
  %2828 = vrot.lane.b32.xlu0 %v2827, 96
  %v2829 = vpop.permute.xlu0 %2828
  %v2830 = vsel %vm247, %v2829, 0
  %2832 = vmatprep.subr.mxu0 0.0
  %2833 = vmatpush1.msra.mxu0 %v2520
  %2834 = vmatprep.subr.mxu0 0.0
  %2835 = vmatpush1.msra.mxu0 0.0
  %2836 = vmatprep.subr.mxu0 0.0
  %2837 = vmatpush1.msra.mxu0 0.0
  %2838 = vmatprep.subr.mxu0 0.0
  %2839 = vmatpush1.msra.mxu0 0.0
  %2840 = vmatprep.subr.mxu0 0.0
  %2841 = vmatpush1.msra.mxu0 0.0
  %2842 = vmatprep.subr.mxu0 0.0
  %2843 = vmatpush1.msra.mxu0 0.0
  %2844 = vmatprep.subr.mxu0 0.0
  %2845 = vmatpush1.msra.mxu0 0.0
  %2846 = vmatprep.subr.mxu0 0.0
  %2847 = vmatpush1.msra.mxu0 0.0
  %2848 = vmatprep.subr.mxu0 0.0
  %2849 = vmatpush1.msra.mxu0 0.0
  %2850 = vmatprep.subr.mxu0 0.0
  %2851 = vmatpush1.msra.mxu0 0.0
  %2852 = vmatprep.subr.mxu0 0.0
  %2853 = vmatpush1.msra.mxu0 0.0
  %2854 = vmatprep.subr.mxu0 0.0
  %2855 = vmatpush1.msra.mxu0 0.0
  %2856 = vmatprep.subr.mxu0 0.0
  %2857 = vmatpush1.msra.mxu0 0.0
  %2858 = vmatprep.subr.mxu0 0.0
  %2859 = vmatpush1.msra.mxu0 0.0
  %2860 = vmatprep.subr.mxu0 0.0
  %2861 = vmatpush1.msra.mxu0 0.0
  %2862 = vmatprep.subr.mxu0 0.0
  %2863 = vmatpush1.msra.mxu0 0.0
  %2864 = vmatprep.subr.mxu0 0.0
  %2865 = vmatpush1.msra.mxu0 0.0
  %2866 = vmatprep.subr.mxu0 0.0
  %2867 = vmatpush1.msra.mxu0 0.0
  %2868 = vmatprep.subr.mxu0 0.0
  %2869 = vmatpush1.msra.mxu0 0.0
  %2870 = vmatprep.subr.mxu0 0.0
  %2871 = vmatpush1.msra.mxu0 0.0
  %2872 = vmatprep.subr.mxu0 0.0
  %2873 = vmatpush1.msra.mxu0 0.0
  %2874 = vmatprep.subr.mxu0 0.0
  %2875 = vmatpush1.msra.mxu0 0.0
  %2876 = vmatprep.subr.mxu0 0.0
  %2877 = vmatpush1.msra.mxu0 0.0
  %2878 = vmatprep.subr.mxu0 0.0
  %2879 = vmatpush1.msra.mxu0 0.0
  %2880 = vmatprep.subr.mxu0 0.0
  %2881 = vmatpush1.msra.mxu0 0.0
  %2882 = vmatprep.subr.mxu0 0.0
  %2883 = vmatpush1.msra.mxu0 0.0
  %2884 = vmatprep.subr.mxu0 0.0
  %2885 = vmatpush1.msra.mxu0 0.0
  %2886 = vmatprep.subr.mxu0 0.0
  %2887 = vmatpush1.msra.mxu0 0.0
  %2888 = vmatprep.subr.mxu0 0.0
  %2889 = vmatpush1.msra.mxu0 0.0
  %2890 = vmatprep.subr.mxu0 0.0
  %2891 = vmatpush1.msra.mxu0 0.0
  %2892 = vmatprep.subr.mxu0 0.0
  %2893 = vmatpush1.msra.mxu0 0.0
  %2894 = vmatprep.subr.mxu0 0.0
  %2895 = vmatpush1.msra.mxu0 0.0
  %2896 = vmatprep.mubr.f32.mxu0 0.0
  %2897 = vmatmul.mubr.f32.gmra.mrb[0].mxu0 %v2830
  %v2898 = vpop.f32.mrb[0].mxu0
  %v2899 = vadd.f32 0.0, %v2898
  %v2900 = vpop.f32.mrb[0].mxu0
  %2901 = vdwg.mxu0
  %v2903 = vrot.slane %v2824, 6
  %v2905 = vadd.f32 %v2518, %v2903
  %v2906 = vxor.u32 %v2905, 2147483648
  %v2907 = vmul.f32 %v2906, 1.442695
  %v2908 = vpow.pop %v2907
  %v2909 = vadd.f32 %v2908, 1.0
  %v2910 = vrcp.pop %v2909
  %v2911 = vmul.f32 1.0, %v2910
  %v2912 = vadd.f32 %v2824, %v2685
  %v2914 = vrot.slane %v2912, 6
  %2915 = vrot.lane.b32.xlu0 %v2914, 112
  %v2916 = vpop.permute.xlu0 %2915
  %v2918 = vmul.f32 %v2911, %v2916
  %2920 = vrot.lane.b32.xlu0 %v2918, 16
  %v2921 = vpop.permute.xlu0 %2920
  %v2923 = vadd.f32 %v2518, %v2921
  %v2924 = vtanh.pop %v2923
  %v2925 = vsub.f32 1.0, %v2911
  %2927 = vrot.lane.b32.xlu0 %v2924, 120
  %v2928 = vpop.permute.xlu0 %2927
  %v2930 = vmul.f32 %v2925, %v2928
  %v2931 = vrot.slane %v2706, 6
  %v2933 = vmul.f32 %v2911, %v2931
  %v2934 = vadd.f32 %v2930, %v2933
  %v2936 = vrot.slane %v2899, 4
  %2937 = vrot.lane.b32.xlu0 %v2936, 24
  %v2938 = vpop.permute.xlu0 %2937
  %v2940 = vadd.f32 %v2518, %v2938
  %v2941 = vxor.u32 %v2940, 2147483648
  %v2942 = vmul.f32 %v2941, 1.442695
  %v2943 = vpow.pop %v2942
  %v2944 = vadd.f32 %v2943, 1.0
  %v2945 = vrcp.pop %v2944
  %v2946 = vmul.f32 1.0, %v2945
  %v2947 = vadd.f32 %v2899, %v2720
  %v2949 = vrot.slane %v2947, 4
  %2950 = vrot.lane.b32.xlu0 %v2949, 8
  %v2951 = vpop.permute.xlu0 %2950
  %v2953 = vmul.f32 %v2946, %v2951
  %2955 = vrot.lane.b32.xlu0 %v2953, 16
  %v2956 = vpop.permute.xlu0 %2955
  %v2958 = vadd.f32 %v2518, %v2956
  %v2959 = vtanh.pop %v2958
  %v2960 = vsub.f32 1.0, %v2946
  %2962 = vrot.lane.b32.xlu0 %v2959, 120
  %v2963 = vpop.permute.xlu0 %2962
  %v2965 = vmul.f32 %v2960, %v2963
  %v2966 = vrot.slane %v2742, 2
  %v2968 = vmul.f32 %v2946, %v2966
  %v2969 = vadd.f32 %v2965, %v2968
  %2971 = vrot.lane.b32.xlu0 %v2934, 120
  %v2972 = vpop.permute.xlu0 %2971
  %vm2974 = vcmask 60418
  %2975 = vst.msk [vmem:[#allocation4] sm:$0xc] %vm2974, %v2972
  %2977 = vrot.lane.b32.xlu0 %v2969, 96
  %v2978 = vpop.permute.xlu0 %2977
  %vm2980 = vcmask 62468
  %2981 = vst.msk [vmem:[#allocation5] sm:$0x30] %vm2980, %v2978
  %v2982 = vrot.slane %v2934, 2
  %2983 = vrot.lane.b32.xlu0 %v2982, 120
  %v2984 = vpop.permute.xlu0 %2983
  %v2985 = vsel %vm247, %v2984, 0
  %2987 = vmatprep.subr.mxu0 0.0
  %2988 = vmatpush1.msra.mxu0 %v2519
  %2989 = vmatprep.subr.mxu0 0.0
  %2990 = vmatpush1.msra.mxu0 0.0
  %2991 = vmatprep.subr.mxu0 0.0
  %2992 = vmatpush1.msra.mxu0 0.0
  %2993 = vmatprep.subr.mxu0 0.0
  %2994 = vmatpush1.msra.mxu0 0.0
  %2995 = vmatprep.subr.mxu0 0.0
  %2996 = vmatpush1.msra.mxu0 0.0
  %2997 = vmatprep.subr.mxu0 0.0
  %2998 = vmatpush1.msra.mxu0 0.0
  %2999 = vmatprep.subr.mxu0 0.0
  %3000 = vmatpush1.msra.mxu0 0.0
  %3001 = vmatprep.subr.mxu0 0.0
  %3002 = vmatpush1.msra.mxu0 0.0
  %3003 = vmatprep.subr.mxu0 0.0
  %3004 = vmatpush1.msra.mxu0 0.0
  %3005 = vmatprep.subr.mxu0 0.0
  %3006 = vmatpush1.msra.mxu0 0.0
  %3007 = vmatprep.subr.mxu0 0.0
  %3008 = vmatpush1.msra.mxu0 0.0
  %3009 = vmatprep.subr.mxu0 0.0
  %3010 = vmatpush1.msra.mxu0 0.0
  %3011 = vmatprep.subr.mxu0 0.0
  %3012 = vmatpush1.msra.mxu0 0.0
  %3013 = vmatprep.subr.mxu0 0.0
  %3014 = vmatpush1.msra.mxu0 0.0
  %3015 = vmatprep.subr.mxu0 0.0
  %3016 = vmatpush1.msra.mxu0 0.0
  %3017 = vmatprep.subr.mxu0 0.0
  %3018 = vmatpush1.msra.mxu0 0.0
  %3019 = vmatprep.subr.mxu0 0.0
  %3020 = vmatpush1.msra.mxu0 0.0
  %3021 = vmatprep.subr.mxu0 0.0
  %3022 = vmatpush1.msra.mxu0 0.0
  %3023 = vmatprep.subr.mxu0 0.0
  %3024 = vmatpush1.msra.mxu0 0.0
  %3025 = vmatprep.subr.mxu0 0.0
  %3026 = vmatpush1.msra.mxu0 0.0
  %3027 = vmatprep.subr.mxu0 0.0
  %3028 = vmatpush1.msra.mxu0 0.0
  %3029 = vmatprep.subr.mxu0 0.0
  %3030 = vmatpush1.msra.mxu0 0.0
  %3031 = vmatprep.subr.mxu0 0.0
  %3032 = vmatpush1.msra.mxu0 0.0
  %3033 = vmatprep.subr.mxu0 0.0
  %3034 = vmatpush1.msra.mxu0 0.0
  %3035 = vmatprep.subr.mxu0 0.0
  %3036 = vmatpush1.msra.mxu0 0.0
  %3037 = vmatprep.subr.mxu0 0.0
  %3038 = vmatpush1.msra.mxu0 0.0
  %3039 = vmatprep.subr.mxu0 0.0
  %3040 = vmatpush1.msra.mxu0 0.0
  %3041 = vmatprep.subr.mxu0 0.0
  %3042 = vmatpush1.msra.mxu0 0.0
  %3043 = vmatprep.subr.mxu0 0.0
  %3044 = vmatpush1.msra.mxu0 0.0
  %3045 = vmatprep.subr.mxu0 0.0
  %3046 = vmatpush1.msra.mxu0 0.0
  %3047 = vmatprep.subr.mxu0 0.0
  %3048 = vmatpush1.msra.mxu0 0.0
  %3049 = vmatprep.subr.mxu0 0.0
  %3050 = vmatpush1.msra.mxu0 0.0
  %3051 = vmatprep.mubr.f32.mxu0 0.0
  %3052 = vmatmul.mubr.f32.gmra.mrb[0].mxu0 %v2985
  %v3053 = vpop.f32.mrb[0].mxu0
  %v3054 = vadd.f32 0.0, %v3053
  %v3055 = vpop.f32.mrb[0].mxu0
  %3056 = vdwg.mxu0
  %v3057 = vrot.slane %v2969, 4
  %3058 = vrot.lane.b32.xlu0 %v3057, 96
  %v3059 = vpop.permute.xlu0 %3058
  %v3060 = vsel %vm247, %v3059, 0
  %3062 = vmatprep.subr.mxu0 0.0
  %3063 = vmatpush1.msra.mxu0 %v2520
  %3064 = vmatprep.subr.mxu0 0.0
  %3065 = vmatpush1.msra.mxu0 0.0
  %3066 = vmatprep.subr.mxu0 0.0
  %3067 = vmatpush1.msra.mxu0 0.0
  %3068 = vmatprep.subr.mxu0 0.0
  %3069 = vmatpush1.msra.mxu0 0.0
  %3070 = vmatprep.subr.mxu0 0.0
  %3071 = vmatpush1.msra.mxu0 0.0
  %3072 = vmatprep.subr.mxu0 0.0
  %3073 = vmatpush1.msra.mxu0 0.0
  %3074 = vmatprep.subr.mxu0 0.0
  %3075 = vmatpush1.msra.mxu0 0.0
  %3076 = vmatprep.subr.mxu0 0.0
  %3077 = vmatpush1.msra.mxu0 0.0
  %3078 = vmatprep.subr.mxu0 0.0
  %3079 = vmatpush1.msra.mxu0 0.0
  %3080 = vmatprep.subr.mxu0 0.0
  %3081 = vmatpush1.msra.mxu0 0.0
  %3082 = vmatprep.subr.mxu0 0.0
  %3083 = vmatpush1.msra.mxu0 0.0
  %3084 = vmatprep.subr.mxu0 0.0
  %3085 = vmatpush1.msra.mxu0 0.0
  %3086 = vmatprep.subr.mxu0 0.0
  %3087 = vmatpush1.msra.mxu0 0.0
  %3088 = vmatprep.subr.mxu0 0.0
  %3089 = vmatpush1.msra.mxu0 0.0
  %3090 = vmatprep.subr.mxu0 0.0
  %3091 = vmatpush1.msra.mxu0 0.0
  %3092 = vmatprep.subr.mxu0 0.0
  %3093 = vmatpush1.msra.mxu0 0.0
  %3094 = vmatprep.subr.mxu0 0.0
  %3095 = vmatpush1.msra.mxu0 0.0
  %3096 = vmatprep.subr.mxu0 0.0
  %3097 = vmatpush1.msra.mxu0 0.0
  %3098 = vmatprep.subr.mxu0 0.0
  %3099 = vmatpush1.msra.mxu0 0.0
  %3100 = vmatprep.subr.mxu0 0.0
  %3101 = vmatpush1.msra.mxu0 0.0
  %3102 = vmatprep.subr.mxu0 0.0
  %3103 = vmatpush1.msra.mxu0 0.0
  %3104 = vmatprep.subr.mxu0 0.0
  %3105 = vmatpush1.msra.mxu0 0.0
  %3106 = vmatprep.subr.mxu0 0.0
  %3107 = vmatpush1.msra.mxu0 0.0
  %3108 = vmatprep.subr.mxu0 0.0
  %3109 = vmatpush1.msra.mxu0 0.0
  %3110 = vmatprep.subr.mxu0 0.0
  %3111 = vmatpush1.msra.mxu0 0.0
  %3112 = vmatprep.subr.mxu0 0.0
  %3113 = vmatpush1.msra.mxu0 0.0
  %3114 = vmatprep.subr.mxu0 0.0
  %3115 = vmatpush1.msra.mxu0 0.0
  %3116 = vmatprep.subr.mxu0 0.0
  %3117 = vmatpush1.msra.mxu0 0.0
  %3118 = vmatprep.subr.mxu0 0.0
  %3119 = vmatpush1.msra.mxu0 0.0
  %3120 = vmatprep.subr.mxu0 0.0
  %3121 = vmatpush1.msra.mxu0 0.0
  %3122 = vmatprep.subr.mxu0 0.0
  %3123 = vmatpush1.msra.mxu0 0.0
  %3124 = vmatprep.subr.mxu0 0.0
  %3125 = vmatpush1.msra.mxu0 0.0
  %3126 = vmatprep.mubr.f32.mxu0 0.0
  %3127 = vmatmul.mubr.f32.gmra.mrb[0].mxu0 %v3060
  %v3128 = vpop.f32.mrb[0].mxu0
  %v3129 = vadd.f32 0.0, %v3128
  %v3130 = vpop.f32.mrb[0].mxu0
  %3131 = vdwg.mxu0
  %v3133 = vrot.slane %v3054, 4
  %v3135 = vadd.f32 %v2518, %v3133
  %v3136 = vxor.u32 %v3135, 2147483648
  %v3137 = vmul.f32 %v3136, 1.442695
  %v3138 = vpow.pop %v3137
  %v3139 = vadd.f32 %v3138, 1.0
  %v3140 = vrcp.pop %v3139
  %v3141 = vmul.f32 1.0, %v3140
  %v3142 = vadd.f32 %v3054, %v2685
  %v3144 = vrot.slane %v3142, 4
  %3145 = vrot.lane.b32.xlu0 %v3144, 112
  %v3146 = vpop.permute.xlu0 %3145
  %v3148 = vmul.f32 %v3141, %v3146
  %3150 = vrot.lane.b32.xlu0 %v3148, 16
  %v3151 = vpop.permute.xlu0 %3150
  %v3153 = vadd.f32 %v2518, %v3151
  %v3154 = vtanh.pop %v3153
  %v3155 = vsub.f32 1.0, %v3141
  %3157 = vrot.lane.b32.xlu0 %v3154, 120
  %v3158 = vpop.permute.xlu0 %3157
  %v3160 = vmul.f32 %v3155, %v3158
  %v3161 = vrot.slane %v2934, 6
  %v3163 = vmul.f32 %v3141, %v3161
  %v3164 = vadd.f32 %v3160, %v3163
  %v3166 = vrot.slane %v3129, 6
  %3167 = vrot.lane.b32.xlu0 %v3166, 24
  %v3168 = vpop.permute.xlu0 %3167
  %v3170 = vadd.f32 %v2518, %v3168
  %v3171 = vxor.u32 %v3170, 2147483648
  %v3172 = vmul.f32 %v3171, 1.442695
  %v3173 = vpow.pop %v3172
  %v3174 = vadd.f32 %v3173, 1.0
  %v3175 = vrcp.pop %v3174
  %v3176 = vmul.f32 1.0, %v3175
  %v3177 = vadd.f32 %v3129, %v2720
  %v3179 = vrot.slane %v3177, 6
  %3180 = vrot.lane.b32.xlu0 %v3179, 8
  %v3181 = vpop.permute.xlu0 %3180
  %v3183 = vmul.f32 %v3176, %v3181
  %3185 = vrot.lane.b32.xlu0 %v3183, 16
  %v3186 = vpop.permute.xlu0 %3185
  %v3188 = vadd.f32 %v2518, %v3186
  %v3189 = vtanh.pop %v3188
  %v3190 = vsub.f32 1.0, %v3176
  %3192 = vrot.lane.b32.xlu0 %v3189, 120
  %v3193 = vpop.permute.xlu0 %3192
  %v3195 = vmul.f32 %v3190, %v3193
  %v3196 = vrot.slane %v2969, 2
  %v3198 = vmul.f32 %v3176, %v3196
  %v3199 = vadd.f32 %v3195, %v3198
  %3201 = vrot.lane.b32.xlu0 %v3164, 120
  %v3202 = vpop.permute.xlu0 %3201
  %3204 = vst.msk [vmem:[#allocation4] sm:$0x30] %vm2980, %v3202
  %3206 = vrot.lane.b32.xlu0 %v3199, 96
  %v3207 = vpop.permute.xlu0 %3206
  %3209 = vst.msk [vmem:[#allocation5] sm:$0xc] %vm2974, %v3207
  %v3210 = vrot.slane %v3164, 4
  %3211 = vrot.lane.b32.xlu0 %v3210, 120
  %v3212 = vpop.permute.xlu0 %3211
  %v3213 = vsel %vm247, %v3212, 0
  %3215 = vmatprep.subr.mxu0 0.0
  %3216 = vmatpush1.msra.mxu0 %v2519
  %3217 = vmatprep.subr.mxu0 0.0
  %3218 = vmatpush1.msra.mxu0 0.0
  %3219 = vmatprep.subr.mxu0 0.0
  %3220 = vmatpush1.msra.mxu0 0.0
  %3221 = vmatprep.subr.mxu0 0.0
  %3222 = vmatpush1.msra.mxu0 0.0
  %3223 = vmatprep.subr.mxu0 0.0
  %3224 = vmatpush1.msra.mxu0 0.0
  %3225 = vmatprep.subr.mxu0 0.0
  %3226 = vmatpush1.msra.mxu0 0.0
  %3227 = vmatprep.subr.mxu0 0.0
  %3228 = vmatpush1.msra.mxu0 0.0
  %3229 = vmatprep.subr.mxu0 0.0
  %3230 = vmatpush1.msra.mxu0 0.0
  %3231 = vmatprep.subr.mxu0 0.0
  %3232 = vmatpush1.msra.mxu0 0.0
  %3233 = vmatprep.subr.mxu0 0.0
  %3234 = vmatpush1.msra.mxu0 0.0
  %3235 = vmatprep.subr.mxu0 0.0
  %3236 = vmatpush1.msra.mxu0 0.0
  %3237 = vmatprep.subr.mxu0 0.0
  %3238 = vmatpush1.msra.mxu0 0.0
  %3239 = vmatprep.subr.mxu0 0.0
  %3240 = vmatpush1.msra.mxu0 0.0
  %3241 = vmatprep.subr.mxu0 0.0
  %3242 = vmatpush1.msra.mxu0 0.0
  %3243 = vmatprep.subr.mxu0 0.0
  %3244 = vmatpush1.msra.mxu0 0.0
  %3245 = vmatprep.subr.mxu0 0.0
  %3246 = vmatpush1.msra.mxu0 0.0
  %3247 = vmatprep.subr.mxu0 0.0
  %3248 = vmatpush1.msra.mxu0 0.0
  %3249 = vmatprep.subr.mxu0 0.0
  %3250 = vmatpush1.msra.mxu0 0.0
  %3251 = vmatprep.subr.mxu0 0.0
  %3252 = vmatpush1.msra.mxu0 0.0
  %3253 = vmatprep.subr.mxu0 0.0
  %3254 = vmatpush1.msra.mxu0 0.0
  %3255 = vmatprep.subr.mxu0 0.0
  %3256 = vmatpush1.msra.mxu0 0.0
  %3257 = vmatprep.subr.mxu0 0.0
  %3258 = vmatpush1.msra.mxu0 0.0
  %3259 = vmatprep.subr.mxu0 0.0
  %3260 = vmatpush1.msra.mxu0 0.0
  %3261 = vmatprep.subr.mxu0 0.0
  %3262 = vmatpush1.msra.mxu0 0.0
  %3263 = vmatprep.subr.mxu0 0.0
  %3264 = vmatpush1.msra.mxu0 0.0
  %3265 = vmatprep.subr.mxu0 0.0
  %3266 = vmatpush1.msra.mxu0 0.0
  %3267 = vmatprep.subr.mxu0 0.0
  %3268 = vmatpush1.msra.mxu0 0.0
  %3269 = vmatprep.subr.mxu0 0.0
  %3270 = vmatpush1.msra.mxu0 0.0
  %3271 = vmatprep.subr.mxu0 0.0
  %3272 = vmatpush1.msra.mxu0 0.0
  %3273 = vmatprep.subr.mxu0 0.0
  %3274 = vmatpush1.msra.mxu0 0.0
  %3275 = vmatprep.subr.mxu0 0.0
  %3276 = vmatpush1.msra.mxu0 0.0
  %3277 = vmatprep.subr.mxu0 0.0
  %3278 = vmatpush1.msra.mxu0 0.0
  %3279 = vmatprep.mubr.f32.mxu0 0.0
  %3280 = vmatmul.mubr.f32.gmra.mrb[0].mxu0 %v3213
  %v3281 = vpop.f32.mrb[0].mxu0
  %v3282 = vadd.f32 0.0, %v3281
  %v3283 = vpop.f32.mrb[0].mxu0
  %3284 = vdwg.mxu0
  %v3285 = vrot.slane %v3199, 2
  %3286 = vrot.lane.b32.xlu0 %v3285, 96
  %v3287 = vpop.permute.xlu0 %3286
  %v3288 = vsel %vm247, %v3287, 0
  %3290 = vmatprep.subr.mxu0 0.0
  %3291 = vmatpush1.msra.mxu0 %v2520
  %3292 = vmatprep.subr.mxu0 0.0
  %3293 = vmatpush1.msra.mxu0 0.0
  %3294 = vmatprep.subr.mxu0 0.0
  %3295 = vmatpush1.msra.mxu0 0.0
  %3296 = vmatprep.subr.mxu0 0.0
  %3297 = vmatpush1.msra.mxu0 0.0
  %3298 = vmatprep.subr.mxu0 0.0
  %3299 = vmatpush1.msra.mxu0 0.0
  %3300 = vmatprep.subr.mxu0 0.0
  %3301 = vmatpush1.msra.mxu0 0.0
  %3302 = vmatprep.subr.mxu0 0.0
  %3303 = vmatpush1.msra.mxu0 0.0
  %3304 = vmatprep.subr.mxu0 0.0
  %3305 = vmatpush1.msra.mxu0 0.0
  %3306 = vmatprep.subr.mxu0 0.0
  %3307 = vmatpush1.msra.mxu0 0.0
  %3308 = vmatprep.subr.mxu0 0.0
  %3309 = vmatpush1.msra.mxu0 0.0
  %3310 = vmatprep.subr.mxu0 0.0
  %3311 = vmatpush1.msra.mxu0 0.0
  %3312 = vmatprep.subr.mxu0 0.0
  %3313 = vmatpush1.msra.mxu0 0.0
  %3314 = vmatprep.subr.mxu0 0.0
  %3315 = vmatpush1.msra.mxu0 0.0
  %3316 = vmatprep.subr.mxu0 0.0
  %3317 = vmatpush1.msra.mxu0 0.0
  %3318 = vmatprep.subr.mxu0 0.0
  %3319 = vmatpush1.msra.mxu0 0.0
  %3320 = vmatprep.subr.mxu0 0.0
  %3321 = vmatpush1.msra.mxu0 0.0
  %3322 = vmatprep.subr.mxu0 0.0
  %3323 = vmatpush1.msra.mxu0 0.0
  %3324 = vmatprep.subr.mxu0 0.0
  %3325 = vmatpush1.msra.mxu0 0.0
  %3326 = vmatprep.subr.mxu0 0.0
  %3327 = vmatpush1.msra.mxu0 0.0
  %3328 = vmatprep.subr.mxu0 0.0
  %3329 = vmatpush1.msra.mxu0 0.0
  %3330 = vmatprep.subr.mxu0 0.0
  %3331 = vmatpush1.msra.mxu0 0.0
  %3332 = vmatprep.subr.mxu0 0.0
  %3333 = vmatpush1.msra.mxu0 0.0
  %3334 = vmatprep.subr.mxu0 0.0
  %3335 = vmatpush1.msra.mxu0 0.0
  %3336 = vmatprep.subr.mxu0 0.0
  %3337 = vmatpush1.msra.mxu0 0.0
  %3338 = vmatprep.subr.mxu0 0.0
  %3339 = vmatpush1.msra.mxu0 0.0
  %3340 = vmatprep.subr.mxu0 0.0
  %3341 = vmatpush1.msra.mxu0 0.0
  %3342 = vmatprep.subr.mxu0 0.0
  %3343 = vmatpush1.msra.mxu0 0.0
  %3344 = vmatprep.subr.mxu0 0.0
  %3345 = vmatpush1.msra.mxu0 0.0
  %3346 = vmatprep.subr.mxu0 0.0
  %3347 = vmatpush1.msra.mxu0 0.0
  %3348 = vmatprep.subr.mxu0 0.0
  %3349 = vmatpush1.msra.mxu0 0.0
  %3350 = vmatprep.subr.mxu0 0.0
  %3351 = vmatpush1.msra.mxu0 0.0
  %3352 = vmatprep.subr.mxu0 0.0
  %3353 = vmatpush1.msra.mxu0 0.0
  %3354 = vmatprep.mubr.f32.mxu0 0.0
  %3355 = vmatmul.mubr.f32.gmra.mrb[0].mxu0 %v3288
  %v3356 = vpop.f32.mrb[0].mxu0
  %v3357 = vadd.f32 0.0, %v3356
  %v3358 = vpop.f32.mrb[0].mxu0
  %3359 = vdwg.mxu0
  %v3361 = vrot.slane %v3282, 2
  %v3363 = vadd.f32 %v2518, %v3361
  %v3364 = vxor.u32 %v3363, 2147483648
  %v3365 = vmul.f32 %v3364, 1.442695
  %v3366 = vpow.pop %v3365
  %v3367 = vadd.f32 %v3366, 1.0
  %v3368 = vrcp.pop %v3367
  %v3369 = vmul.f32 1.0, %v3368
  %v3370 = vadd.f32 %v3282, %v2685
  %v3372 = vrot.slane %v3370, 2
  %3373 = vrot.lane.b32.xlu0 %v3372, 112
  %v3374 = vpop.permute.xlu0 %3373
  %v3376 = vmul.f32 %v3369, %v3374
  %3378 = vrot.lane.b32.xlu0 %v3376, 16
  %v3379 = vpop.permute.xlu0 %3378
  %v3381 = vadd.f32 %v2518, %v3379
  %v3382 = vtanh.pop %v3381
  %v3383 = vsub.f32 1.0, %v3369
  %3385 = vrot.lane.b32.xlu0 %v3382, 120
  %v3386 = vpop.permute.xlu0 %3385
  %v3388 = vmul.f32 %v3383, %v3386
  %v3389 = vrot.slane %v3164, 6
  %v3391 = vmul.f32 %v3369, %v3389
  %v3392 = vadd.f32 %v3388, %v3391
  %3394 = vrot.lane.b32.xlu0 %v3357, 24
  %v3395 = vpop.permute.xlu0 %3394
  %v3397 = vadd.f32 %v2518, %v3395
  %v3398 = vxor.u32 %v3397, 2147483648
  %v3399 = vmul.f32 %v3398, 1.442695
  %v3400 = vpow.pop %v3399
  %v3401 = vadd.f32 %v3400, 1.0
  %v3402 = vrcp.pop %v3401
  %v3403 = vmul.f32 1.0, %v3402
  %v3404 = vadd.f32 %v3357, %v2720
  %3406 = vrot.lane.b32.xlu0 %v3404, 8
  %v3407 = vpop.permute.xlu0 %3406
  %v3409 = vmul.f32 %v3403, %v3407
  %3411 = vrot.lane.b32.xlu0 %v3409, 16
  %v3412 = vpop.permute.xlu0 %3411
  %v3414 = vadd.f32 %v2518, %v3412
  %v3415 = vtanh.pop %v3414
  %v3416 = vsub.f32 1.0, %v3403
  %3418 = vrot.lane.b32.xlu0 %v3415, 120
  %v3419 = vpop.permute.xlu0 %3418
  %v3421 = vmul.f32 %v3416, %v3419
  %v3423 = vmul.f32 %v3403, %v3285
  %v3424 = vadd.f32 %v3421, %v3423
  %3426 = vrot.lane.b32.xlu0 %v3392, 120
  %v3427 = vpop.permute.xlu0 %3426
  %3429 = vst.msk [vmem:[#allocation4] sm:$0xc0] %vm2753, %v3427
  %3431 = vrot.lane.b32.xlu0 %v3424, 96
  %v3432 = vpop.permute.xlu0 %3431
  %3434 = vst.msk [vmem:[#allocation5] sm:$0x3] %vm2747, %v3432
  %v3435 = vld [vmem:[#allocation4] sm:$0xff]
  %v3436 = vld [vmem:[#allocation5] sm:$0xff]
  %v3438 = vsel %vm247, %v3436, 0
  %3440 = vmatprep.subr.mxu0 0.0
  %3441 = vmatpush1.msra.mxu0 %v2524
  %3442 = vmatprep.subr.mxu0 0.0
  %3443 = vmatpush1.msra.mxu0 0.0
  %3444 = vmatprep.subr.mxu0 0.0
  %3445 = vmatpush1.msra.mxu0 0.0
  %3446 = vmatprep.subr.mxu0 0.0
  %3447 = vmatpush1.msra.mxu0 0.0
  %3448 = vmatprep.subr.mxu0 0.0
  %3449 = vmatpush1.msra.mxu0 0.0
  %3450 = vmatprep.subr.mxu0 0.0
  %3451 = vmatpush1.msra.mxu0 0.0
  %3452 = vmatprep.subr.mxu0 0.0
  %3453 = vmatpush1.msra.mxu0 0.0
  %3454 = vmatprep.subr.mxu0 0.0
  %3455 = vmatpush1.msra.mxu0 0.0
  %3456 = vmatprep.subr.mxu0 0.0
  %3457 = vmatpush1.msra.mxu0 0.0
  %3458 = vmatprep.subr.mxu0 0.0
  %3459 = vmatpush1.msra.mxu0 0.0
  %3460 = vmatprep.subr.mxu0 0.0
  %3461 = vmatpush1.msra.mxu0 0.0
  %3462 = vmatprep.subr.mxu0 0.0
  %3463 = vmatpush1.msra.mxu0 0.0
  %3464 = vmatprep.subr.mxu0 0.0
  %3465 = vmatpush1.msra.mxu0 0.0
  %3466 = vmatprep.subr.mxu0 0.0
  %3467 = vmatpush1.msra.mxu0 0.0
  %3468 = vmatprep.subr.mxu0 0.0
  %3469 = vmatpush1.msra.mxu0 0.0
  %3470 = vmatprep.subr.mxu0 0.0
  %3471 = vmatpush1.msra.mxu0 0.0
  %3472 = vmatprep.subr.mxu0 0.0
  %3473 = vmatpush1.msra.mxu0 0.0
  %3474 = vmatprep.subr.mxu0 0.0
  %3475 = vmatpush1.msra.mxu0 0.0
  %3476 = vmatprep.subr.mxu0 0.0
  %3477 = vmatpush1.msra.mxu0 0.0
  %3478 = vmatprep.subr.mxu0 0.0
  %3479 = vmatpush1.msra.mxu0 0.0
  %3480 = vmatprep.subr.mxu0 0.0
  %3481 = vmatpush1.msra.mxu0 0.0
  %3482 = vmatprep.subr.mxu0 0.0
  %3483 = vmatpush1.msra.mxu0 0.0
  %3484 = vmatprep.subr.mxu0 0.0
  %3485 = vmatpush1.msra.mxu0 0.0
  %3486 = vmatprep.subr.mxu0 0.0
  %3487 = vmatpush1.msra.mxu0 0.0
  %3488 = vmatprep.subr.mxu0 0.0
  %3489 = vmatpush1.msra.mxu0 0.0
  %3490 = vmatprep.subr.mxu0 0.0
  %3491 = vmatpush1.msra.mxu0 0.0
  %3492 = vmatprep.subr.mxu0 0.0
  %3493 = vmatpush1.msra.mxu0 0.0
  %3494 = vmatprep.subr.mxu0 0.0
  %3495 = vmatpush1.msra.mxu0 0.0
  %3496 = vmatprep.subr.mxu0 0.0
  %3497 = vmatpush1.msra.mxu0 0.0
  %3498 = vmatprep.subr.mxu0 0.0
  %3499 = vmatpush1.msra.mxu0 0.0
  %3500 = vmatprep.subr.mxu0 0.0
  %3501 = vmatpush1.msra.mxu0 0.0
  %3502 = vmatprep.subr.mxu0 0.0
  %3503 = vmatpush1.msra.mxu0 0.0
  %3504 = vmatprep.mubr.f32.mxu0 0.0
  %3505 = vmatmul.mubr.f32.gmra.mrb[0].mxu0 %v3438
  %v3506 = vpop.f32.mrb[0].mxu0
  %v3507 = vadd.f32 0.0, %v3506
  %v3508 = vpop.f32.mrb[0].mxu0
  %3509 = vdwg.mxu0
  %v3511 = vsel %vm247, %v3435, 0
  %3513 = vmatprep.subr.mxu0 0.0
  %3514 = vmatpush1.msra.mxu0 %v2523
  %3515 = vmatprep.subr.mxu0 0.0
  %3516 = vmatpush1.msra.mxu0 0.0
  %3517 = vmatprep.subr.mxu0 0.0
  %3518 = vmatpush1.msra.mxu0 0.0
  %3519 = vmatprep.subr.mxu0 0.0
  %3520 = vmatpush1.msra.mxu0 0.0
  %3521 = vmatprep.subr.mxu0 0.0
  %3522 = vmatpush1.msra.mxu0 0.0
  %3523 = vmatprep.subr.mxu0 0.0
  %3524 = vmatpush1.msra.mxu0 0.0
  %3525 = vmatprep.subr.mxu0 0.0
  %3526 = vmatpush1.msra.mxu0 0.0
  %3527 = vmatprep.subr.mxu0 0.0
  %3528 = vmatpush1.msra.mxu0 0.0
  %3529 = vmatprep.subr.mxu0 0.0
  %3530 = vmatpush1.msra.mxu0 0.0
  %3531 = vmatprep.subr.mxu0 0.0
  %3532 = vmatpush1.msra.mxu0 0.0
  %3533 = vmatprep.subr.mxu0 0.0
  %3534 = vmatpush1.msra.mxu0 0.0
  %3535 = vmatprep.subr.mxu0 0.0
  %3536 = vmatpush1.msra.mxu0 0.0
  %3537 = vmatprep.subr.mxu0 0.0
  %3538 = vmatpush1.msra.mxu0 0.0
  %3539 = vmatprep.subr.mxu0 0.0
  %3540 = vmatpush1.msra.mxu0 0.0
  %3541 = vmatprep.subr.mxu0 0.0
  %3542 = vmatpush1.msra.mxu0 0.0
  %3543 = vmatprep.subr.mxu0 0.0
  %3544 = vmatpush1.msra.mxu0 0.0
  %3545 = vmatprep.subr.mxu0 0.0
  %3546 = vmatpush1.msra.mxu0 0.0
  %3547 = vmatprep.subr.mxu0 0.0
  %3548 = vmatpush1.msra.mxu0 0.0
  %3549 = vmatprep.subr.mxu0 0.0
  %3550 = vmatpush1.msra.mxu0 0.0
  %3551 = vmatprep.subr.mxu0 0.0
  %3552 = vmatpush1.msra.mxu0 0.0
  %3553 = vmatprep.subr.mxu0 0.0
  %3554 = vmatpush1.msra.mxu0 0.0
  %3555 = vmatprep.subr.mxu0 0.0
  %3556 = vmatpush1.msra.mxu0 0.0
  %3557 = vmatprep.subr.mxu0 0.0
  %3558 = vmatpush1.msra.mxu0 0.0
  %3559 = vmatprep.subr.mxu0 0.0
  %3560 = vmatpush1.msra.mxu0 0.0
  %3561 = vmatprep.subr.mxu0 0.0
  %3562 = vmatpush1.msra.mxu0 0.0
  %3563 = vmatprep.subr.mxu0 0.0
  %3564 = vmatpush1.msra.mxu0 0.0
  %3565 = vmatprep.subr.mxu0 0.0
  %3566 = vmatpush1.msra.mxu0 0.0
  %3567 = vmatprep.subr.mxu0 0.0
  %3568 = vmatpush1.msra.mxu0 0.0
  %3569 = vmatprep.subr.mxu0 0.0
  %3570 = vmatpush1.msra.mxu0 0.0
  %3571 = vmatprep.subr.mxu0 0.0
  %3572 = vmatpush1.msra.mxu0 0.0
  %3573 = vmatprep.subr.mxu0 0.0
  %3574 = vmatpush1.msra.mxu0 0.0
  %3575 = vmatprep.subr.mxu0 0.0
  %3576 = vmatpush1.msra.mxu0 0.0
  %3577 = vmatprep.mubr.f32.mxu0 0.0
  %3578 = vmatmul.mubr.f32.gmra.mrb[0].mxu0 %v3511
  %v3579 = vpop.f32.mrb[0].mxu0
  %v3580 = vadd.f32 %v3507, %v3579
  %v3581 = vpop.f32.mrb[0].mxu0
  %3582 = vdwg.mxu0
  %v3584 = vlaneseq
  %v3585 = vshrl.u32 %v3584, 7
  %v3586 = vsub.s32 0, %v3585
  %v3587 = vrot.slane %v2525, %v3586
  %v3589 = vadd.f32 %v3580, %v3587
  %v3590 = vtanh.pop %v3589
  %v3592 = vlaneseq
  %v3593 = vshrl.u32 %v3592, 7
  %v3594 = vsub.s32 0, %v3593
  %v3595 = vrot.slane %v2526, %v3594
  %v3597 = vmul.f32 %v3590, %v3595
  %vm3598 = vcmask 123904
  %v3599 = vsel %vm3598, %v3597, 0.0
  %3600 = vadd.xlane.f32.xlu0 %v3599
  %v3601 = vpop.xlane.xlu0 %3600
  %vm3602 = vcmask 125954
  %v3603 = vsel %vm3602, %v3597, 0.0
  %3604 = vadd.xlane.f32.xlu0 %v3603
  %v3605 = vpop.xlane.xlu0 %3604
  %vm3606 = vcmask 128004
  %v3607 = vsel %vm3606, %v3597, 0.0
  %3608 = vadd.xlane.f32.xlu0 %v3607
  %v3609 = vpop.xlane.xlu0 %3608
  %vm3610 = vcmask 130054
  %v3611 = vsel %vm3610, %v3597, 0.0
  %3612 = vadd.xlane.f32.xlu0 %v3611
  %v3613 = vpop.xlane.xlu0 %3612
  %v3615 = vrot.slane %v3605, 2
  %v3617 = vmax.f32 %v3601, %v3615
  %v3619 = vrot.slane %v3609, 4
  %v3621 = vmax.f32 %v3617, %v3619
  %v3623 = vrot.slane %v3613, 6
  %v3625 = vmax.f32 %v3621, %v3623
  %v3626 = vsub.f32 %v3601, %v3625
  %v3627 = vmul.f32 %v3626, 1.442695
  %v3628 = vpow.pop %v3627
  %v3630 = vrot.slane %v3625, 6
  %v3632 = vsub.f32 %v3605, %v3630
  %v3633 = vmul.f32 %v3632, 1.442695
  %v3634 = vpow.pop %v3633
  %v3635 = vrot.slane %v3625, 4
  %v3637 = vsub.f32 %v3609, %v3635
  %v3638 = vmul.f32 %v3637, 1.442695
  %v3639 = vpow.pop %v3638
  %v3640 = vrot.slane %v3625, 2
  %v3642 = vsub.f32 %v3613, %v3640
  %v3643 = vmul.f32 %v3642, 1.442695
  %v3644 = vpow.pop %v3643
  %v3646 = vrot.slane %v3634, 2
  %v3648 = vadd.f32 %v3628, %v3646
  %v3650 = vrot.slane %v3639, 4
  %v3652 = vadd.f32 %v3648, %v3650
  %v3654 = vrot.slane %v3644, 6
  %v3656 = vadd.f32 %v3652, %v3654
  %v3657 = vrcp.pop %v3656
  %v3658 = vmul.f32 1.0, %v3657
  %v3659 = vmul.f32 %v3628, %v3658
  %3661 = vset.pattern.permute.xlu0 0
  %3662 = vperm.xlu0 %3661, %v3659
  %v3663 = vpop.permute.xlu0 %3662
  %v3665 = vmul.f32 %v3663, %v3435
  %v3666 = vadd.f32 %v3665, 0.0
  %v3667 = vmul.f32 %v3663, %v3436
  %v3668 = vadd.f32 %v3667, 0.0
  %v3670 = vrot.slane %v3658, 6
  %v3672 = vmul.f32 %v3634, %v3670
  %3674 = vset.pattern.permute.xlu0 0
  %3675 = vperm.xlu0 %3674, %v3672
  %v3676 = vpop.permute.xlu0 %3675
  %v3678 = vmul.f32 %v3676, %v3435
  %v3680 = vrot.slane %v3678, 2
  %v3682 = vadd.f32 %v3666, %v3680
  %v3683 = vmul.f32 %v3676, %v3436
  %v3685 = vrot.slane %v3683, 2
  %v3687 = vadd.f32 %v3668, %v3685
  %v3688 = vrot.slane %v3658, 4
  %v3690 = vmul.f32 %v3639, %v3688
  %3692 = vset.pattern.permute.xlu0 0
  %3693 = vperm.xlu0 %3692, %v3690
  %v3694 = vpop.permute.xlu0 %3693
  %v3696 = vmul.f32 %v3694, %v3435
  %v3698 = vrot.slane %v3696, 4
  %v3700 = vadd.f32 %v3682, %v3698
  %v3701 = vmul.f32 %v3694, %v3436
  %v3703 = vrot.slane %v3701, 4
  %v3705 = vadd.f32 %v3687, %v3703
  %v3706 = vrot.slane %v3658, 2
  %v3708 = vmul.f32 %v3644, %v3706
  %3710 = vset.pattern.permute.xlu0 0
  %3711 = vperm.xlu0 %3710, %v3708
  %v3712 = vpop.permute.xlu0 %3711
  %v3714 = vmul.f32 %v3712, %v3435
  %v3716 = vrot.slane %v3714, 6
  %v3718 = vadd.f32 %v3700, %v3716
  %v3719 = vmul.f32 %v3712, %v3436
  %v3721 = vrot.slane %v3719, 6
  %v3723 = vadd.f32 %v3705, %v3721
  %v3724 = vld [vmem:[%s22] sm:$0xff]
  %v3725 = vld [vmem:[%s23] sm:$0xff]
  %v3727 = vsel %vm247, %v3723, 0
  %3729 = vmatprep.subr.mxu0 0.0
  %3730 = vmatpush1.msra.mxu0 %v3725
  %3731 = vmatprep.subr.mxu0 0.0
  %3732 = vmatpush1.msra.mxu0 0.0
  %3733 = vmatprep.subr.mxu0 0.0
  %3734 = vmatpush1.msra.mxu0 0.0
  %3735 = vmatprep.subr.mxu0 0.0
  %3736 = vmatpush1.msra.mxu0 0.0
  %3737 = vmatprep.subr.mxu0 0.0
  %3738 = vmatpush1.msra.mxu0 0.0
  %3739 = vmatprep.subr.mxu0 0.0
  %3740 = vmatpush1.msra.mxu0 0.0
  %3741 = vmatprep.subr.mxu0 0.0
  %3742 = vmatpush1.msra.mxu0 0.0
  %3743 = vmatprep.subr.mxu0 0.0
  %3744 = vmatpush1.msra.mxu0 0.0
  %3745 = vmatprep.subr.mxu0 0.0
  %3746 = vmatpush1.msra.mxu0 0.0
  %3747 = vmatprep.subr.mxu0 0.0
  %3748 = vmatpush1.msra.mxu0 0.0
  %3749 = vmatprep.subr.mxu0 0.0
  %3750 = vmatpush1.msra.mxu0 0.0
  %3751 = vmatprep.subr.mxu0 0.0
  %3752 = vmatpush1.msra.mxu0 0.0
  %3753 = vmatprep.subr.mxu0 0.0
  %3754 = vmatpush1.msra.mxu0 0.0
  %3755 = vmatprep.subr.mxu0 0.0
  %3756 = vmatpush1.msra.mxu0 0.0
  %3757 = vmatprep.subr.mxu0 0.0
  %3758 = vmatpush1.msra.mxu0 0.0
  %3759 = vmatprep.subr.mxu0 0.0
  %3760 = vmatpush1.msra.mxu0 0.0
  %3761 = vmatprep.subr.mxu0 0.0
  %3762 = vmatpush1.msra.mxu0 0.0
  %3763 = vmatprep.subr.mxu0 0.0
  %3764 = vmatpush1.msra.mxu0 0.0
  %3765 = vmatprep.subr.mxu0 0.0
  %3766 = vmatpush1.msra.mxu0 0.0
  %3767 = vmatprep.subr.mxu0 0.0
  %3768 = vmatpush1.msra.mxu0 0.0
  %3769 = vmatprep.subr.mxu0 0.0
  %3770 = vmatpush1.msra.mxu0 0.0
  %3771 = vmatprep.subr.mxu0 0.0
  %3772 = vmatpush1.msra.mxu0 0.0
  %3773 = vmatprep.subr.mxu0 0.0
  %3774 = vmatpush1.msra.mxu0 0.0
  %3775 = vmatprep.subr.mxu0 0.0
  %3776 = vmatpush1.msra.mxu0 0.0
  %3777 = vmatprep.subr.mxu0 0.0
  %3778 = vmatpush1.msra.mxu0 0.0
  %3779 = vmatprep.subr.mxu0 0.0
  %3780 = vmatpush1.msra.mxu0 0.0
  %3781 = vmatprep.subr.mxu0 0.0
  %3782 = vmatpush1.msra.mxu0 0.0
  %3783 = vmatprep.subr.mxu0 0.0
  %3784 = vmatpush1.msra.mxu0 0.0
  %3785 = vmatprep.subr.mxu0 0.0
  %3786 = vmatpush1.msra.mxu0 0.0
  %3787 = vmatprep.subr.mxu0 0.0
  %3788 = vmatpush1.msra.mxu0 0.0
  %3789 = vmatprep.subr.mxu0 0.0
  %3790 = vmatpush1.msra.mxu0 0.0
  %3791 = vmatprep.subr.mxu0 0.0
  %3792 = vmatpush1.msra.mxu0 0.0
  %3793 = vmatprep.mubr.f32.mxu0 0.0
  %3794 = vmatmul.mubr.f32.gmra.mrb[0].mxu0 %v3727
  %v3795 = vpop.f32.mrb[0].mxu0
  %v3796 = vadd.f32 0.0, %v3795
  %v3797 = vpop.f32.mrb[0].mxu0
  %3798 = vdwg.mxu0
  %v3800 = vsel %vm247, %v3718, 0
  %3802 = vmatprep.subr.mxu0 0.0
  %3803 = vmatpush1.msra.mxu0 %v3724
  %3804 = vmatprep.subr.mxu0 0.0
  %3805 = vmatpush1.msra.mxu0 0.0
  %3806 = vmatprep.subr.mxu0 0.0
  %3807 = vmatpush1.msra.mxu0 0.0
  %3808 = vmatprep.subr.mxu0 0.0
  %3809 = vmatpush1.msra.mxu0 0.0
  %3810 = vmatprep.subr.mxu0 0.0
  %3811 = vmatpush1.msra.mxu0 0.0
  %3812 = vmatprep.subr.mxu0 0.0
  %3813 = vmatpush1.msra.mxu0 0.0
  %3814 = vmatprep.subr.mxu0 0.0
  %3815 = vmatpush1.msra.mxu0 0.0
  %3816 = vmatprep.subr.mxu0 0.0
  %3817 = vmatpush1.msra.mxu0 0.0
  %3818 = vmatprep.subr.mxu0 0.0
  %3819 = vmatpush1.msra.mxu0 0.0
  %3820 = vmatprep.subr.mxu0 0.0
  %3821 = vmatpush1.msra.mxu0 0.0
  %3822 = vmatprep.subr.mxu0 0.0
  %3823 = vmatpush1.msra.mxu0 0.0
  %3824 = vmatprep.subr.mxu0 0.0
  %3825 = vmatpush1.msra.mxu0 0.0
  %3826 = vmatprep.subr.mxu0 0.0
  %3827 = vmatpush1.msra.mxu0 0.0
  %3828 = vmatprep.subr.mxu0 0.0
  %3829 = vmatpush1.msra.mxu0 0.0
  %3830 = vmatprep.subr.mxu0 0.0
  %3831 = vmatpush1.msra.mxu0 0.0
  %3832 = vmatprep.subr.mxu0 0.0
  %3833 = vmatpush1.msra.mxu0 0.0
  %3834 = vmatprep.subr.mxu0 0.0
  %3835 = vmatpush1.msra.mxu0 0.0
  %3836 = vmatprep.subr.mxu0 0.0
  %3837 = vmatpush1.msra.mxu0 0.0
  %3838 = vmatprep.subr.mxu0 0.0
  %3839 = vmatpush1.msra.mxu0 0.0
  %3840 = vmatprep.subr.mxu0 0.0
  %3841 = vmatpush1.msra.mxu0 0.0
  %3842 = vmatprep.subr.mxu0 0.0
  %3843 = vmatpush1.msra.mxu0 0.0
  %3844 = vmatprep.subr.mxu0 0.0
  %3845 = vmatpush1.msra.mxu0 0.0
  %3846 = vmatprep.subr.mxu0 0.0
  %3847 = vmatpush1.msra.mxu0 0.0
  %3848 = vmatprep.subr.mxu0 0.0
  %3849 = vmatpush1.msra.mxu0 0.0
  %3850 = vmatprep.subr.mxu0 0.0
  %3851 = vmatpush1.msra.mxu0 0.0
  %3852 = vmatprep.subr.mxu0 0.0
  %3853 = vmatpush1.msra.mxu0 0.0
  %3854 = vmatprep.subr.mxu0 0.0
  %3855 = vmatpush1.msra.mxu0 0.0
  %3856 = vmatprep.subr.mxu0 0.0
  %3857 = vmatpush1.msra.mxu0 0.0
  %3858 = vmatprep.subr.mxu0 0.0
  %3859 = vmatpush1.msra.mxu0 0.0
  %3860 = vmatprep.subr.mxu0 0.0
  %3861 = vmatpush1.msra.mxu0 0.0
  %3862 = vmatprep.subr.mxu0 0.0
  %3863 = vmatpush1.msra.mxu0 0.0
  %3864 = vmatprep.subr.mxu0 0.0
  %3865 = vmatpush1.msra.mxu0 0.0
  %3866 = vmatprep.mubr.f32.mxu0 0.0
  %3867 = vmatmul.mubr.f32.gmra.mrb[0].mxu0 %v3800
  %v3868 = vpop.f32.mrb[0].mxu0
  %v3869 = vadd.f32 %v3796, %v3868
  %v3870 = vpop.f32.mrb[0].mxu0
  %3871 = vdwg.mxu0
  %v3872 = vld [vmem:[#allocation6] sm:$0x1]
  %v3874 = vlaneseq
  %v3875 = vshrl.u32 %v3874, 7
  %v3876 = vsub.s32 0, %v3875
  %v3877 = vrot.slane %v3872, %v3876
  %v3879 = vadd.f32 %v3869, %v3877
  %v3880 = vxor.u32 %v3879, 2147483648
  %v3881 = vmul.f32 %v3880, 1.442695
  %v3882 = vpow.pop %v3881
  %v3883 = vadd.f32 %v3882, 1.0
  %v3884 = vrcp.pop %v3883
  %v3885 = vmul.f32 1.0, %v3884
  %vm3886 = vcmask 1024
  %3887 = vst.msk [vmem:[%s25] sm:$0x3] %vm3886, %v3885
  // Predicated region
  $region102: #{tpu_custom_call.1} parent=0 // pred_check
    _
  $region103: #{tpu_custom_call.1} parent=0 // pred_check_branch
    %3889 = sbr.rel (0) target = $region105
  $region104: #{tpu_custom_call.1} parent=0 // pred_region
    _
  $region105: #{tpu_custom_call.1} parent=0 // pred_fallthru
    _
  // Predicated region
  $region106: #{tpu_custom_call.1} parent=0 // pred_check
    _
  $region107: #{tpu_custom_call.1} parent=0 // pred_check_branch
    %3891 = sbr.rel (0) target = $region109
  $region108: #{tpu_custom_call.1} parent=0 // pred_region
    _
  $region109: #{tpu_custom_call.1} parent=0 // pred_fallthru
    _

</llo_original>
